<compile_context>
chip_gen: v6e
topology: v6e:2x2x1
jax: 0.10.0
libtpu: 0.0.40
codegen_flags: <defaults>
</compile_context>

<pallas_src>
import jax
import jax.numpy as jnp
from jax import lax
from jax.experimental import pallas as pl
from jax.experimental.pallas import tpu as pltpu


def _motion_encoder_kernel(
    x_ref,                                    # (N, Din), rows ordered (s, b): r = s*B + b
    c1w_ref, c1b_ref, c2w_ref, c2b_ref,       # conv taps (3, in, out), bias (1, out)
    l0_wih_ref, l0_whh_ref, l0_b_ref,         # direction-fused LSTM layer 0
    l1_wih_ref, l1_whh_ref, l1_b_ref,         # direction-fused LSTM layer 1
    wqkv_ref, bqkv_ref, wo_ref, bo_ref, wh_ref, bh_ref,
    eps_ref,                                  # (B, L)
    mu_ref, logvar_ref, z_ref,                # (B, L) each
    gx_scr, l0_scr, l1_scr,                   # (N, 8H), (N, 2H), (N, 2H)
):
    f32 = jnp.float32
    N, _ = x_ref.shape
    B, L = eps_ref.shape
    S = N // B
    H = l0_whh_ref.shape[0] // 2
    H2 = 2 * H
    H8 = 8 * H
    A = wqkv_ref.shape[1] // 3

    # ------------------------------------------------------------------
    # Conv stage: conv1(k=3,pad=1) -> ReLU -> conv2(k=3,pad=1) -> ReLU.
    # Time-shifted neighbours come from static slice + zero-row concat
    # (rows are time-major, so frame t-1 is row r-B); no (N,N) shift matmuls.
    # ------------------------------------------------------------------
    def conv_relu(inp, w_ref, b_ref):
        zr = jnp.zeros((B, inp.shape[1]), f32)
        xp = jnp.concatenate([zr, inp[:N - B, :]], axis=0)   # frame t-1 (zero at t=0)
        xn = jnp.concatenate([inp[B:, :], zr], axis=0)       # frame t+1 (zero at t=S-1)
        y = (jnp.dot(xp, w_ref[0], preferred_element_type=f32)
             + jnp.dot(inp, w_ref[1], preferred_element_type=f32)
             + jnp.dot(xn, w_ref[2], preferred_element_type=f32)
             + b_ref[...])
        return jnp.maximum(y, 0.0)

    x2d = x_ref[...]
    h1 = conv_relu(x2d, c1w_ref, c1b_ref)     # (N, H)
    # TODO(synk): nn.Dropout after conv treated as identity (eval mode).
    h2 = conv_relu(h1, c2w_ref, c2b_ref)      # (N, H)

    # ------------------------------------------------------------------
    # Direction-fused 2-layer bidirectional LSTM, statically unrolled over S.
    # State h_cat/c_cat = (B, 2H) = [fwd | bwd]; gate columns interleaved per
    # gate block: [i_f i_b | f_f f_b | g_f g_b | o_f o_b] (PyTorch gate order).
    # Step t processes fwd time t and bwd time S-1-t together.
    # ------------------------------------------------------------------
    lane = lax.broadcasted_iota(jnp.int32, (B, H8), 1)
    fwd_lane = (lane % H2) < H                # first H lanes of each 2H gate block = fwd

    def run_bilstm(x_in, wih_ref, whh_ref, b_ref, out_scr):
        # Hoisted, direction-fused input projection -> staged in VMEM scratch.
        gx_scr[...] = (jnp.dot(x_in, wih_ref[...], preferred_element_type=f32)
                       + b_ref[...])
        whh = whh_ref[...]                    # (2H, 8H) block-diagonal
        h = jnp.zeros((B, H2), f32)
        c = jnp.zeros((B, H2), f32)
        for t in range(S):                    # static unroll (S = 8)
            rf = t * B                        # rows of fwd time step t
            rb = (S - 1 - t) * B              # rows of bwd time step S-1-t
            gf = gx_scr[rf:rf + B, :]
            gb = gx_scr[rb:rb + B, :]
            gates = (jnp.where(fwd_lane, gf, gb)
                     + jnp.dot(h, whh, preferred_element_type=f32))
            sig = jax.nn.sigmoid(gates)       # one wide push covers i, f, o
            g = jnp.tanh(gates[:, 2 * H2:3 * H2])
            c = sig[:, H2:2 * H2] * c + sig[:, 0:H2] * g
            h = sig[:, 3 * H2:4 * H2] * jnp.tanh(c)
            out_scr[rf:rf + B, 0:H] = h[:, 0:H]       # fwd h at time t
            out_scr[rb:rb + B, H:H2] = h[:, H:H2]     # bwd h at time S-1-t

    run_bilstm(h2, l0_wih_ref, l0_whh_ref, l0_b_ref, l0_scr)
    # TODO(synk): inter-layer LSTM dropout treated as identity (eval mode).
    run_bilstm(l0_scr[...], l1_wih_ref, l1_whh_ref, l1_b_ref, l1_scr)
    feats = l1_scr[...]                       # (N, 2H), row r = s*B + b

    # ------------------------------------------------------------------
    # Temporal self-attention (fused QKV, flattened 2-D with cross-batch mask)
    # + mean pooling (before fc_out) + VAE heads + reparameterization.
    # ------------------------------------------------------------------
    qkv = jnp.dot(feats, wqkv_ref[...], preferred_element_type=f32) + bqkv_ref[...]
    q = qkv[:, 0:A]
    k = qkv[:, A:2 * A]
    v = qkv[:, 2 * A:3 * A]

    scores = lax.dot_general(q, k, (((1,), (1,)), ((), ())),
                             preferred_element_type=f32) * (1.0 / (float(A) ** 0.5))
    rb_idx = lax.broadcasted_iota(jnp.int32, (N, N), 0) % B
    cb_idx = lax.broadcasted_iota(jnp.int32, (N, N), 1) % B
    scores = jnp.where(rb_idx == cb_idx, scores, -1e30)      # mask cross-batch pairs
    scores = scores - jnp.max(scores, axis=-1, keepdims=True)
    e = jnp.exp(scores)
    attn = e * pl.reciprocal(jnp.sum(e, axis=-1, keepdims=True), approx=True)
    ctx = jnp.dot(attn, v, preferred_element_type=f32)       # (N, A)

    # Mean over time per batch BEFORE fc_out (exact: mean is linear, fc_out affine).
    pb = lax.broadcasted_iota(jnp.int32, (B, N), 0)
    pc = lax.broadcasted_iota(jnp.int32, (B, N), 1)
    pool = jnp.where((pc % B) == pb, 1.0 / S, 0.0).astype(f32)
    ctx_avg = jnp.dot(pool, ctx, preferred_element_type=f32)                 # (B, A)
    ctx_proj = jnp.dot(ctx_avg, wo_ref[...], preferred_element_type=f32) + bo_ref[...]

    heads = jnp.dot(ctx_proj, wh_ref[...], preferred_element_type=f32) + bh_ref[...]
    mu = heads[:, 0:L]
    logvar = heads[:, L:2 * L]
    mu_ref[...] = mu
    logvar_ref[...] = logvar
    z_ref[...] = mu + eps_ref[...] * jnp.exp(0.5 * logvar)


def motion_encoder_forward(x, p, eps):
    B, S, Din = x.shape
    N = B * S
    H = p['l0_whh'].shape[0] // 2
    L = p['bh'].shape[1] // 2

    # Time-major flat layout (row r = s*B + b): per-step LSTM reads/writes are
    # contiguous sublane blocks and the kernel needs no internal relayouts.
    x2d = x.transpose(1, 0, 2).reshape(N, Din)

    vmem = pl.BlockSpec(memory_space=pltpu.MemorySpace.VMEM)
    return pl.pallas_call(
        _motion_encoder_kernel,
        out_shape=(jax.ShapeDtypeStruct((B, L), jnp.float32),
                   jax.ShapeDtypeStruct((B, L), jnp.float32),
                   jax.ShapeDtypeStruct((B, L), jnp.float32)),
        in_specs=[vmem] * 18,
        out_specs=(vmem, vmem, vmem),
        scratch_shapes=[pltpu.VMEM((N, 8 * H), jnp.float32),   # staged gate pre-activations
                        pltpu.VMEM((N, 2 * H), jnp.float32),   # layer-0 bi-LSTM output
                        pltpu.VMEM((N, 2 * H), jnp.float32)],  # layer-1 bi-LSTM output
    )(x2d,
      p['conv1_w'], p['conv1_b'], p['conv2_w'], p['conv2_b'],
      p['l0_wih'], p['l0_whh'], p['l0_b'],
      p['l1_wih'], p['l1_whh'], p['l1_b'],
      p['wqkv'], p['bqkv'], p['wo'], p['bo'], p['wh'], p['bh'],
      eps)


def init_params(key, input_dim, hidden_dim, latent_dim, attention_dim=128):
    keys = iter(jax.random.split(key, 40))

    def u(shape, fan_in):
        bound = 1.0 / (fan_in ** 0.5)
        return jax.random.uniform(next(keys), shape, jnp.float32, -bound, bound)

    H, A, L = hidden_dim, attention_dim, latent_dim
    D2 = 2 * H
    p = {}
    # Conv1d taps stored (k, in, out); PyTorch (out, in, k) maps via transpose(2, 1, 0).
    p['conv1_w'] = u((3, input_dim, H), 3 * input_dim)
    p['conv1_b'] = u((1, H), 3 * input_dim)
    p['conv2_w'] = u((3, H, H), 3 * H)
    p['conv2_b'] = u((1, H), 3 * H)

    # Per-direction LSTM params: (in, 4H)/(H, 4H), PyTorch gate order (i, f, g, o),
    # bias = b_ih + b_hh pre-summed.  Fused host-side (once) into the kernel layout.
    def lstm_dir(din):
        return u((din, 4 * H), H), u((H, 4 * H), H), u((1, 4 * H), H)

    def fuse_dir(fwd, bwd):
        wih_f, whh_f, b_f = fwd
        wih_b, whh_b, b_b = bwd
        z = jnp.zeros((H, H), jnp.float32)
        wih_cols, whh_cols, b_cols = [], [], []
        for g in range(4):                              # gate blocks [fwd H | bwd H]
            sl = slice(g * H, (g + 1) * H)
            wih_cols += [wih_f[:, sl], wih_b[:, sl]]
            whh_cols += [jnp.concatenate([whh_f[:, sl], z], axis=0),
                         jnp.concatenate([z, whh_b[:, sl]], axis=0)]
            b_cols += [b_f[:, sl], b_b[:, sl]]
        return (jnp.concatenate(wih_cols, axis=1),      # (din, 8H)
                jnp.concatenate(whh_cols, axis=1),      # (2H, 8H) block-diagonal
                jnp.concatenate(b_cols, axis=1))        # (1, 8H)

    p['l0_wih'], p['l0_whh'], p['l0_b'] = fuse_dir(lstm_dir(H), lstm_dir(H))
    p['l1_wih'], p['l1_whh'], p['l1_b'] = fuse_dir(lstm_dir(D2), lstm_dir(D2))

    # Attention: Q/K/V fused into one (2H, 3A) projection; fc_out (A, 2H).
    p['wqkv'] = u((D2, 3 * A), D2)
    p['bqkv'] = u((1, 3 * A), D2)
    p['wo'] = u((A, D2), A)
    p['bo'] = u((1, D2), A)
    # fc_mu / fc_logvar fused into one (2H, 2L) head: [:, :L]=mu, [:, L:]=logvar.
    p['wh'] = u((D2, 2 * L), D2)
    p['bh'] = u((1, 2 * L), D2)
    return p


if __name__ == "__main__":
    key = jax.random.PRNGKey(0)
    kp, kx, ke = jax.random.split(key, 3)

    B, S, Din = 2, 8, 6          # batch, seq_len, input_dim
    H, L = 32, 16                # hidden_dim, latent_dim (attention_dim = 128)

    params = init_params(kp, Din, H, L)
    x = jax.random.normal(kx, (B, S, Din), jnp.float32)
    eps = jax.random.normal(ke, (B, L), jnp.float32)   # reparameterization noise

    fwd = jax.jit(motion_encoder_forward)
    mu, logvar, z = fwd(x, params, eps)
    jax.block_until_ready((mu, logvar, z))

    assert mu.shape == (B, L) and logvar.shape == (B, L) and z.shape == (B, L)
    assert bool(jnp.all(jnp.isfinite(mu)))
    assert bool(jnp.all(jnp.isfinite(logvar)))
    assert bool(jnp.all(jnp.isfinite(z)))
    print("KERNEL_OK")
</pallas_src>

<mosaic_0001>
module attributes {stable_mosaic.version = 11 : i64} {
  func.func @_motion_encoder_kernel(%arg0: memref<16x6xf32, #tpu.memory_space<vmem>>, %arg1: memref<3x6x32xf32, #tpu.memory_space<vmem>>, %arg2: memref<1x32xf32, #tpu.memory_space<vmem>>, %arg3: memref<3x32x32xf32, #tpu.memory_space<vmem>>, %arg4: memref<1x32xf32, #tpu.memory_space<vmem>>, %arg5: memref<32x256xf32, #tpu.memory_space<vmem>>, %arg6: memref<64x256xf32, #tpu.memory_space<vmem>>, %arg7: memref<1x256xf32, #tpu.memory_space<vmem>>, %arg8: memref<64x256xf32, #tpu.memory_space<vmem>>, %arg9: memref<64x256xf32, #tpu.memory_space<vmem>>, %arg10: memref<1x256xf32, #tpu.memory_space<vmem>>, %arg11: memref<64x384xf32, #tpu.memory_space<vmem>>, %arg12: memref<1x384xf32, #tpu.memory_space<vmem>>, %arg13: memref<128x64xf32, #tpu.memory_space<vmem>>, %arg14: memref<1x64xf32, #tpu.memory_space<vmem>>, %arg15: memref<64x32xf32, #tpu.memory_space<vmem>>, %arg16: memref<1x32xf32, #tpu.memory_space<vmem>>, %arg17: memref<2x16xf32, #tpu.memory_space<vmem>>, %arg18: memref<2x16xf32, #tpu.memory_space<vmem>>, %arg19: memref<2x16xf32, #tpu.memory_space<vmem>>, %arg20: memref<2x16xf32, #tpu.memory_space<vmem>>, %arg21: memref<16x256xf32, #tpu.memory_space<vmem>>, %arg22: memref<16x64xf32, #tpu.memory_space<vmem>>, %arg23: memref<16x64xf32, #tpu.memory_space<vmem>>) attributes {dimension_semantics = [], scalar_prefetch = 0 : i64, scratch_operands = 3 : i64, tpu.core_type = #tpu.core_type<tc>} {
    %c0 = arith.constant 0 : index
    %c0_0 = arith.constant 0 : index
    %0 = vector.load %arg0[%c0, %c0_0] : memref<16x6xf32, #tpu.memory_space<vmem>>, vector<16x6xf32>
    %cst = arith.constant 0.000000e+00 : f32
    %1 = vector.broadcast %cst : f32 to vector<2x6xf32>
    %2 = vector.extract_strided_slice %0 {offsets = [0, 0], sizes = [14, 6], strides = [1, 1]} : vector<16x6xf32> to vector<14x6xf32>
    %3 = tpu.concatenate %1, %2 in 0 : vector<2x6xf32>, vector<14x6xf32> -> vector<16x6xf32>
    %4 = vector.extract_strided_slice %0 {offsets = [2, 0], sizes = [14, 6], strides = [1, 1]} : vector<16x6xf32> to vector<14x6xf32>
    %5 = tpu.concatenate %4, %1 in 0 : vector<14x6xf32>, vector<2x6xf32> -> vector<16x6xf32>
    %c0_1 = arith.constant 0 : index
    %c0_2 = arith.constant 0 : index
    %c0_3 = arith.constant 0 : index
    %6 = vector.load %arg1[%c0_1, %c0_2, %c0_3] : memref<3x6x32xf32, #tpu.memory_space<vmem>>, vector<1x6x32xf32>
    %7 = vector.shape_cast %6 : vector<1x6x32xf32> to vector<6x32xf32>
    %cst_4 = arith.constant dense<0.000000e+00> : vector<16x32xf32>
    %8 = tpu.matmul %3, %7, %cst_4 {dimension_numbers = #tpu.dot_dimension_numbers<[1], [0], [0], [1], [0, 0, 1, 1], [], []>} : vector<16x6xf32>, vector<6x32xf32>, vector<16x32xf32> -> vector<16x32xf32>
    %c1 = arith.constant 1 : index
    %c0_5 = arith.constant 0 : index
    %c0_6 = arith.constant 0 : index
    %9 = vector.load %arg1[%c1, %c0_5, %c0_6] : memref<3x6x32xf32, #tpu.memory_space<vmem>>, vector<1x6x32xf32>
    %10 = vector.shape_cast %9 : vector<1x6x32xf32> to vector<6x32xf32>
    %cst_7 = arith.constant dense<0.000000e+00> : vector<16x32xf32>
    %11 = tpu.matmul %0, %10, %cst_7 {dimension_numbers = #tpu.dot_dimension_numbers<[1], [0], [0], [1], [0, 0, 1, 1], [], []>} : vector<16x6xf32>, vector<6x32xf32>, vector<16x32xf32> -> vector<16x32xf32>
    %12 = arith.addf %8, %11 : vector<16x32xf32>
    %c2 = arith.constant 2 : index
    %c0_8 = arith.constant 0 : index
    %c0_9 = arith.constant 0 : index
    %13 = vector.load %arg1[%c2, %c0_8, %c0_9] : memref<3x6x32xf32, #tpu.memory_space<vmem>>, vector<1x6x32xf32>
    %14 = vector.shape_cast %13 : vector<1x6x32xf32> to vector<6x32xf32>
    %cst_10 = arith.constant dense<0.000000e+00> : vector<16x32xf32>
    %15 = tpu.matmul %5, %14, %cst_10 {dimension_numbers = #tpu.dot_dimension_numbers<[1], [0], [0], [1], [0, 0, 1, 1], [], []>} : vector<16x6xf32>, vector<6x32xf32>, vector<16x32xf32> -> vector<16x32xf32>
    %16 = arith.addf %12, %15 : vector<16x32xf32>
    %c0_11 = arith.constant 0 : index
    %c0_12 = arith.constant 0 : index
    %17 = vector.load %arg2[%c0_11, %c0_12] : memref<1x32xf32, #tpu.memory_space<vmem>>, vector<1x32xf32>
    %18 = vector.broadcast %17 : vector<1x32xf32> to vector<16x32xf32>
    %19 = arith.addf %16, %18 : vector<16x32xf32>
    %cst_13 = arith.constant 0.000000e+00 : f32
    %20 = vector.broadcast %cst_13 : f32 to vector<16x32xf32>
    %21 = arith.maximumf %19, %20 : vector<16x32xf32>
    %cst_14 = arith.constant 0.000000e+00 : f32
    %22 = vector.broadcast %cst_14 : f32 to vector<2x32xf32>
    %23 = vector.extract_strided_slice %21 {offsets = [0, 0], sizes = [14, 32], strides = [1, 1]} : vector<16x32xf32> to vector<14x32xf32>
    %24 = tpu.concatenate %22, %23 in 0 : vector<2x32xf32>, vector<14x32xf32> -> vector<16x32xf32>
    %25 = vector.extract_strided_slice %21 {offsets = [2, 0], sizes = [14, 32], strides = [1, 1]} : vector<16x32xf32> to vector<14x32xf32>
    %26 = tpu.concatenate %25, %22 in 0 : vector<14x32xf32>, vector<2x32xf32> -> vector<16x32xf32>
    %c0_15 = arith.constant 0 : index
    %c0_16 = arith.constant 0 : index
    %c0_17 = arith.constant 0 : index
    %27 = vector.load %arg3[%c0_15, %c0_16, %c0_17] : memref<3x32x32xf32, #tpu.memory_space<vmem>>, vector<1x32x32xf32>
    %28 = vector.shape_cast %27 : vector<1x32x32xf32> to vector<32x32xf32>
    %cst_18 = arith.constant dense<0.000000e+00> : vector<16x32xf32>
    %29 = tpu.matmul %24, %28, %cst_18 {dimension_numbers = #tpu.dot_dimension_numbers<[1], [0], [0], [1], [0, 0, 1, 1], [], []>} : vector<16x32xf32>, vector<32x32xf32>, vector<16x32xf32> -> vector<16x32xf32>
    %c1_19 = arith.constant 1 : index
    %c0_20 = arith.constant 0 : index
    %c0_21 = arith.constant 0 : index
    %30 = vector.load %arg3[%c1_19, %c0_20, %c0_21] : memref<3x32x32xf32, #tpu.memory_space<vmem>>, vector<1x32x32xf32>
    %31 = vector.shape_cast %30 : vector<1x32x32xf32> to vector<32x32xf32>
    %cst_22 = arith.constant dense<0.000000e+00> : vector<16x32xf32>
    %32 = tpu.matmul %21, %31, %cst_22 {dimension_numbers = #tpu.dot_dimension_numbers<[1], [0], [0], [1], [0, 0, 1, 1], [], []>} : vector<16x32xf32>, vector<32x32xf32>, vector<16x32xf32> -> vector<16x32xf32>
    %33 = arith.addf %29, %32 : vector<16x32xf32>
    %c2_23 = arith.constant 2 : index
    %c0_24 = arith.constant 0 : index
    %c0_25 = arith.constant 0 : index
    %34 = vector.load %arg3[%c2_23, %c0_24, %c0_25] : memref<3x32x32xf32, #tpu.memory_space<vmem>>, vector<1x32x32xf32>
    %35 = vector.shape_cast %34 : vector<1x32x32xf32> to vector<32x32xf32>
    %cst_26 = arith.constant dense<0.000000e+00> : vector<16x32xf32>
    %36 = tpu.matmul %26, %35, %cst_26 {dimension_numbers = #tpu.dot_dimension_numbers<[1], [0], [0], [1], [0, 0, 1, 1], [], []>} : vector<16x32xf32>, vector<32x32xf32>, vector<16x32xf32> -> vector<16x32xf32>
    %37 = arith.addf %33, %36 : vector<16x32xf32>
    %c0_27 = arith.constant 0 : index
    %c0_28 = arith.constant 0 : index
    %38 = vector.load %arg4[%c0_27, %c0_28] : memref<1x32xf32, #tpu.memory_space<vmem>>, vector<1x32xf32>
    %39 = vector.broadcast %38 : vector<1x32xf32> to vector<16x32xf32>
    %40 = arith.addf %37, %39 : vector<16x32xf32>
    %cst_29 = arith.constant 0.000000e+00 : f32
    %41 = vector.broadcast %cst_29 : f32 to vector<16x32xf32>
    %42 = arith.maximumf %40, %41 : vector<16x32xf32>
    %43 = tpu.iota {dimensions = array<i32: 1>} : vector<2x256xi32>
    %c64_i32 = arith.constant 64 : i32
    %c0_i32 = arith.constant 0 : i32
    %44 = arith.cmpi eq, %c64_i32, %c0_i32 : i32
    %c1_i32 = arith.constant 1 : i32
    %45 = arith.select %44, %c1_i32, %c64_i32 : i32
    %46 = vector.broadcast %45 : i32 to vector<2x256xi32>
    %47 = arith.remsi %43, %46 : vector<2x256xi32>
    %c0_i32_30 = arith.constant 0 : i32
    %48 = vector.broadcast %c0_i32_30 : i32 to vector<2x256xi32>
    %49 = arith.cmpi ne, %47, %48 : vector<2x256xi32>
    %c0_i32_31 = arith.constant 0 : i32
    %50 = vector.broadcast %c0_i32_31 : i32 to vector<2x256xi32>
    %51 = arith.cmpi slt, %47, %50 : vector<2x256xi32>
    %c0_i32_32 = arith.constant 0 : i32
    %52 = arith.cmpi slt, %45, %c0_i32_32 : i32
    %53 = vector.broadcast %52 : i1 to vector<2x256xi1>
    %54 = vector.broadcast %53 : vector<2x256xi1> to vector<2x256xi1>
    %55 = arith.xori %51, %54 : vector<2x256xi1>
    %56 = arith.andi %55, %49 : vector<2x256xi1>
    %57 = vector.broadcast %45 : i32 to vector<2x256xi32>
    %58 = arith.addi %47, %57 : vector<2x256xi32>
    %59 = arith.select %56, %58, %47 : vector<2x256xi1>, vector<2x256xi32>
    %c32_i32 = arith.constant 32 : i32
    %60 = vector.broadcast %c32_i32 : i32 to vector<2x256xi32>
    %61 = arith.cmpi slt, %59, %60 : vector<2x256xi32>
    %c0_33 = arith.constant 0 : index
    %c0_34 = arith.constant 0 : index
    %62 = vector.load %arg5[%c0_33, %c0_34] : memref<32x256xf32, #tpu.memory_space<vmem>>, vector<32x256xf32>
    %cst_35 = arith.constant dense<0.000000e+00> : vector<16x256xf32>
    %63 = tpu.matmul %42, %62, %cst_35 {dimension_numbers = #tpu.dot_dimension_numbers<[1], [0], [0], [1], [0, 0, 1, 1], [], []>} : vector<16x32xf32>, vector<32x256xf32>, vector<16x256xf32> -> vector<16x256xf32>
    %c0_36 = arith.constant 0 : index
    %c0_37 = arith.constant 0 : index
    %64 = vector.load %arg7[%c0_36, %c0_37] : memref<1x256xf32, #tpu.memory_space<vmem>>, vector<1x256xf32>
    %65 = vector.broadcast %64 : vector<1x256xf32> to vector<16x256xf32>
    %66 = arith.addf %63, %65 : vector<16x256xf32>
    %c0_38 = arith.constant 0 : index
    %c0_39 = arith.constant 0 : index
    %67 = vector.load %arg21[%c0_38, %c0_39] : memref<16x256xf32, #tpu.memory_space<vmem>>, vector<16x256xf32>
    tpu.vector_store %arg21[%c0_38, %c0_39], %66 {strides = array<i32>} : memref<16x256xf32, #tpu.memory_space<vmem>>, vector<16x256xf32>,
    %c0_40 = arith.constant 0 : index
    %c0_41 = arith.constant 0 : index
    %68 = vector.load %arg6[%c0_40, %c0_41] : memref<64x256xf32, #tpu.memory_space<vmem>>, vector<64x256xf32>
    %cst_42 = arith.constant 0.000000e+00 : f32
    %69 = vector.broadcast %cst_42 : f32 to vector<2x64xf32>
    %cst_43 = arith.constant 0.000000e+00 : f32
    %70 = vector.broadcast %cst_43 : f32 to vector<2x64xf32>
    %c0_44 = arith.constant 0 : index
    %c0_45 = arith.constant 0 : index
    %71 = vector.load %arg21[%c0_44, %c0_45] : memref<16x256xf32, #tpu.memory_space<vmem>>, vector<2x256xf32>
    %c14 = arith.constant 14 : index
    %c0_46 = arith.constant 0 : index
    %72 = vector.load %arg21[%c14, %c0_46] : memref<16x256xf32, #tpu.memory_space<vmem>>, vector<2x256xf32>
    %73 = arith.select %61, %71, %72 : vector<2x256xi1>, vector<2x256xf32>
    %cst_47 = arith.constant dense<0.000000e+00> : vector<2x256xf32>
    %74 = tpu.matmul %69, %68, %cst_47 {dimension_numbers = #tpu.dot_dimension_numbers<[1], [0], [0], [1], [0, 0, 1, 1], [], []>} : vector<2x64xf32>, vector<64x256xf32>, vector<2x256xf32> -> vector<2x256xf32>
    %75 = arith.addf %73, %74 : vector<2x256xf32>
    %76 = arith.negf %75 : vector<2x256xf32>
    %77 = math.exp %76 : vector<2x256xf32>
    %cst_48 = arith.constant 1.000000e+00 : f32
    %78 = vector.broadcast %cst_48 : f32 to vector<2x256xf32>
    %79 = arith.addf %78, %77 : vector<2x256xf32>
    %80 = arith.divf %78, %79 : vector<2x256xf32>
    %81 = vector.extract_strided_slice %75 {offsets = [0, 128], sizes = [2, 64], strides = [1, 1]} : vector<2x256xf32> to vector<2x64xf32>
    %82 = math.tanh %81 : vector<2x64xf32>
    %83 = vector.extract_strided_slice %80 {offsets = [0, 64], sizes = [2, 64], strides = [1, 1]} : vector<2x256xf32> to vector<2x64xf32>
    %84 = arith.mulf %83, %70 : vector<2x64xf32>
    %85 = vector.extract_strided_slice %80 {offsets = [0, 0], sizes = [2, 64], strides = [1, 1]} : vector<2x256xf32> to vector<2x64xf32>
    %86 = arith.mulf %85, %82 : vector<2x64xf32>
    %87 = arith.addf %84, %86 : vector<2x64xf32>
    %88 = vector.extract_strided_slice %80 {offsets = [0, 192], sizes = [2, 64], strides = [1, 1]} : vector<2x256xf32> to vector<2x64xf32>
    %89 = math.tanh %87 : vector<2x64xf32>
    %90 = arith.mulf %88, %89 : vector<2x64xf32>
    %91 = vector.extract_strided_slice %90 {offsets = [0, 0], sizes = [2, 32], strides = [1, 1]} : vector<2x64xf32> to vector<2x32xf32>
    %c0_49 = arith.constant 0 : index
    %c0_50 = arith.constant 0 : index
    %92 = vector.load %arg22[%c0_49, %c0_50] : memref<16x64xf32, #tpu.memory_space<vmem>>, vector<2x32xf32>
    tpu.vector_store %arg22[%c0_49, %c0_50], %91 {strides = array<i32>} : memref<16x64xf32, #tpu.memory_space<vmem>>, vector<2x32xf32>,
    %93 = vector.extract_strided_slice %90 {offsets = [0, 32], sizes = [2, 32], strides = [1, 1]} : vector<2x64xf32> to vector<2x32xf32>
    %c14_51 = arith.constant 14 : index
    %c32 = arith.constant 32 : index
    %94 = vector.load %arg22[%c14_51, %c32] : memref<16x64xf32, #tpu.memory_space<vmem>>, vector<2x32xf32>
    tpu.vector_store %arg22[%c14_51, %c32], %93 {strides = array<i32>} : memref<16x64xf32, #tpu.memory_space<vmem>>, vector<2x32xf32>,
    %c2_52 = arith.constant 2 : index
    %c0_53 = arith.constant 0 : index
    %95 = vector.load %arg21[%c2_52, %c0_53] : memref<16x256xf32, #tpu.memory_space<vmem>>, vector<2x256xf32>
    %c12 = arith.constant 12 : index
    %c0_54 = arith.constant 0 : index
    %96 = vector.load %arg21[%c12, %c0_54] : memref<16x256xf32, #tpu.memory_space<vmem>>, vector<2x256xf32>
    %97 = arith.select %61, %95, %96 : vector<2x256xi1>, vector<2x256xf32>
    %cst_55 = arith.constant dense<0.000000e+00> : vector<2x256xf32>
    %98 = tpu.matmul %90, %68, %cst_55 {dimension_numbers = #tpu.dot_dimension_numbers<[1], [0], [0], [1], [0, 0, 1, 1], [], []>} : vector<2x64xf32>, vector<64x256xf32>, vector<2x256xf32> -> vector<2x256xf32>
    %99 = arith.addf %97, %98 : vector<2x256xf32>
    %100 = arith.negf %99 : vector<2x256xf32>
    %101 = math.exp %100 : vector<2x256xf32>
    %cst_56 = arith.constant 1.000000e+00 : f32
    %102 = vector.broadcast %cst_56 : f32 to vector<2x256xf32>
    %103 = arith.addf %102, %101 : vector<2x256xf32>
    %104 = arith.divf %102, %103 : vector<2x256xf32>
    %105 = vector.extract_strided_slice %99 {offsets = [0, 128], sizes = [2, 64], strides = [1, 1]} : vector<2x256xf32> to vector<2x64xf32>
    %106 = math.tanh %105 : vector<2x64xf32>
    %107 = vector.extract_strided_slice %104 {offsets = [0, 64], sizes = [2, 64], strides = [1, 1]} : vector<2x256xf32> to vector<2x64xf32>
    %108 = arith.mulf %107, %87 : vector<2x64xf32>
    %109 = vector.extract_strided_slice %104 {offsets = [0, 0], sizes = [2, 64], strides = [1, 1]} : vector<2x256xf32> to vector<2x64xf32>
    %110 = arith.mulf %109, %106 : vector<2x64xf32>
    %111 = arith.addf %108, %110 : vector<2x64xf32>
    %112 = vector.extract_strided_slice %104 {offsets = [0, 192], sizes = [2, 64], strides = [1, 1]} : vector<2x256xf32> to vector<2x64xf32>
    %113 = math.tanh %111 : vector<2x64xf32>
    %114 = arith.mulf %112, %113 : vector<2x64xf32>
    %115 = vector.extract_strided_slice %114 {offsets = [0, 0], sizes = [2, 32], strides = [1, 1]} : vector<2x64xf32> to vector<2x32xf32>
    %c2_57 = arith.constant 2 : index
    %c0_58 = arith.constant 0 : index
    %116 = vector.load %arg22[%c2_57, %c0_58] : memref<16x64xf32, #tpu.memory_space<vmem>>, vector<2x32xf32>
    tpu.vector_store %arg22[%c2_57, %c0_58], %115 {strides = array<i32>} : memref<16x64xf32, #tpu.memory_space<vmem>>, vector<2x32xf32>,
    %117 = vector.extract_strided_slice %114 {offsets = [0, 32], sizes = [2, 32], strides = [1, 1]} : vector<2x64xf32> to vector<2x32xf32>
    %c12_59 = arith.constant 12 : index
    %c32_60 = arith.constant 32 : index
    %118 = vector.load %arg22[%c12_59, %c32_60] : memref<16x64xf32, #tpu.memory_space<vmem>>, vector<2x32xf32>
    tpu.vector_store %arg22[%c12_59, %c32_60], %117 {strides = array<i32>} : memref<16x64xf32, #tpu.memory_space<vmem>>, vector<2x32xf32>,
    %c4 = arith.constant 4 : index
    %c0_61 = arith.constant 0 : index
    %119 = vector.load %arg21[%c4, %c0_61] : memref<16x256xf32, #tpu.memory_space<vmem>>, vector<2x256xf32>
    %c10 = arith.constant 10 : index
    %c0_62 = arith.constant 0 : index
    %120 = vector.load %arg21[%c10, %c0_62] : memref<16x256xf32, #tpu.memory_space<vmem>>, vector<2x256xf32>
    %121 = arith.select %61, %119, %120 : vector<2x256xi1>, vector<2x256xf32>
    %cst_63 = arith.constant dense<0.000000e+00> : vector<2x256xf32>
    %122 = tpu.matmul %114, %68, %cst_63 {dimension_numbers = #tpu.dot_dimension_numbers<[1], [0], [0], [1], [0, 0, 1, 1], [], []>} : vector<2x64xf32>, vector<64x256xf32>, vector<2x256xf32> -> vector<2x256xf32>
    %123 = arith.addf %121, %122 : vector<2x256xf32>
    %124 = arith.negf %123 : vector<2x256xf32>
    %125 = math.exp %124 : vector<2x256xf32>
    %cst_64 = arith.constant 1.000000e+00 : f32
    %126 = vector.broadcast %cst_64 : f32 to vector<2x256xf32>
    %127 = arith.addf %126, %125 : vector<2x256xf32>
    %128 = arith.divf %126, %127 : vector<2x256xf32>
    %129 = vector.extract_strided_slice %123 {offsets = [0, 128], sizes = [2, 64], strides = [1, 1]} : vector<2x256xf32> to vector<2x64xf32>
    %130 = math.tanh %129 : vector<2x64xf32>
    %131 = vector.extract_strided_slice %128 {offsets = [0, 64], sizes = [2, 64], strides = [1, 1]} : vector<2x256xf32> to vector<2x64xf32>
    %132 = arith.mulf %131, %111 : vector<2x64xf32>
    %133 = vector.extract_strided_slice %128 {offsets = [0, 0], sizes = [2, 64], strides = [1, 1]} : vector<2x256xf32> to vector<2x64xf32>
    %134 = arith.mulf %133, %130 : vector<2x64xf32>
    %135 = arith.addf %132, %134 : vector<2x64xf32>
    %136 = vector.extract_strided_slice %128 {offsets = [0, 192], sizes = [2, 64], strides = [1, 1]} : vector<2x256xf32> to vector<2x64xf32>
    %137 = math.tanh %135 : vector<2x64xf32>
    %138 = arith.mulf %136, %137 : vector<2x64xf32>
    %139 = vector.extract_strided_slice %138 {offsets = [0, 0], sizes = [2, 32], strides = [1, 1]} : vector<2x64xf32> to vector<2x32xf32>
    %c4_65 = arith.constant 4 : index
    %c0_66 = arith.constant 0 : index
    %140 = vector.load %arg22[%c4_65, %c0_66] : memref<16x64xf32, #tpu.memory_space<vmem>>, vector<2x32xf32>
    tpu.vector_store %arg22[%c4_65, %c0_66], %139 {strides = array<i32>} : memref<16x64xf32, #tpu.memory_space<vmem>>, vector<2x32xf32>,
    %141 = vector.extract_strided_slice %138 {offsets = [0, 32], sizes = [2, 32], strides = [1, 1]} : vector<2x64xf32> to vector<2x32xf32>
    %c10_67 = arith.constant 10 : index
    %c32_68 = arith.constant 32 : index
    %142 = vector.load %arg22[%c10_67, %c32_68] : memref<16x64xf32, #tpu.memory_space<vmem>>, vector<2x32xf32>
    tpu.vector_store %arg22[%c10_67, %c32_68], %141 {strides = array<i32>} : memref<16x64xf32, #tpu.memory_space<vmem>>, vector<2x32xf32>,
    %c6 = arith.constant 6 : index
    %c0_69 = arith.constant 0 : index
    %143 = vector.load %arg21[%c6, %c0_69] : memref<16x256xf32, #tpu.memory_space<vmem>>, vector<2x256xf32>
    %c8 = arith.constant 8 : index
    %c0_70 = arith.constant 0 : index
    %144 = vector.load %arg21[%c8, %c0_70] : memref<16x256xf32, #tpu.memory_space<vmem>>, vector<2x256xf32>
    %145 = arith.select %61, %143, %144 : vector<2x256xi1>, vector<2x256xf32>
    %cst_71 = arith.constant dense<0.000000e+00> : vector<2x256xf32>
    %146 = tpu.matmul %138, %68, %cst_71 {dimension_numbers = #tpu.dot_dimension_numbers<[1], [0], [0], [1], [0, 0, 1, 1], [], []>} : vector<2x64xf32>, vector<64x256xf32>, vector<2x256xf32> -> vector<2x256xf32>
    %147 = arith.addf %145, %146 : vector<2x256xf32>
    %148 = arith.negf %147 : vector<2x256xf32>
    %149 = math.exp %148 : vector<2x256xf32>
    %cst_72 = arith.constant 1.000000e+00 : f32
    %150 = vector.broadcast %cst_72 : f32 to vector<2x256xf32>
    %151 = arith.addf %150, %149 : vector<2x256xf32>
    %152 = arith.divf %150, %151 : vector<2x256xf32>
    %153 = vector.extract_strided_slice %147 {offsets = [0, 128], sizes = [2, 64], strides = [1, 1]} : vector<2x256xf32> to vector<2x64xf32>
    %154 = math.tanh %153 : vector<2x64xf32>
    %155 = vector.extract_strided_slice %152 {offsets = [0, 64], sizes = [2, 64], strides = [1, 1]} : vector<2x256xf32> to vector<2x64xf32>
    %156 = arith.mulf %155, %135 : vector<2x64xf32>
    %157 = vector.extract_strided_slice %152 {offsets = [0, 0], sizes = [2, 64], strides = [1, 1]} : vector<2x256xf32> to vector<2x64xf32>
    %158 = arith.mulf %157, %154 : vector<2x64xf32>
    %159 = arith.addf %156, %158 : vector<2x64xf32>
    %160 = vector.extract_strided_slice %152 {offsets = [0, 192], sizes = [2, 64], strides = [1, 1]} : vector<2x256xf32> to vector<2x64xf32>
    %161 = math.tanh %159 : vector<2x64xf32>
    %162 = arith.mulf %160, %161 : vector<2x64xf32>
    %163 = vector.extract_strided_slice %162 {offsets = [0, 0], sizes = [2, 32], strides = [1, 1]} : vector<2x64xf32> to vector<2x32xf32>
    %c6_73 = arith.constant 6 : index
    %c0_74 = arith.constant 0 : index
    %164 = vector.load %arg22[%c6_73, %c0_74] : memref<16x64xf32, #tpu.memory_space<vmem>>, vector<2x32xf32>
    tpu.vector_store %arg22[%c6_73, %c0_74], %163 {strides = array<i32>} : memref<16x64xf32, #tpu.memory_space<vmem>>, vector<2x32xf32>,
    %165 = vector.extract_strided_slice %162 {offsets = [0, 32], sizes = [2, 32], strides = [1, 1]} : vector<2x64xf32> to vector<2x32xf32>
    %c8_75 = arith.constant 8 : index
    %c32_76 = arith.constant 32 : index
    %166 = vector.load %arg22[%c8_75, %c32_76] : memref<16x64xf32, #tpu.memory_space<vmem>>, vector<2x32xf32>
    tpu.vector_store %arg22[%c8_75, %c32_76], %165 {strides = array<i32>} : memref<16x64xf32, #tpu.memory_space<vmem>>, vector<2x32xf32>,
    %c8_77 = arith.constant 8 : index
    %c0_78 = arith.constant 0 : index
    %167 = vector.load %arg21[%c8_77, %c0_78] : memref<16x256xf32, #tpu.memory_space<vmem>>, vector<2x256xf32>
    %c6_79 = arith.constant 6 : index
    %c0_80 = arith.constant 0 : index
    %168 = vector.load %arg21[%c6_79, %c0_80] : memref<16x256xf32, #tpu.memory_space<vmem>>, vector<2x256xf32>
    %169 = arith.select %61, %167, %168 : vector<2x256xi1>, vector<2x256xf32>
    %cst_81 = arith.constant dense<0.000000e+00> : vector<2x256xf32>
    %170 = tpu.matmul %162, %68, %cst_81 {dimension_numbers = #tpu.dot_dimension_numbers<[1], [0], [0], [1], [0, 0, 1, 1], [], []>} : vector<2x64xf32>, vector<64x256xf32>, vector<2x256xf32> -> vector<2x256xf32>
    %171 = arith.addf %169, %170 : vector<2x256xf32>
    %172 = arith.negf %171 : vector<2x256xf32>
    %173 = math.exp %172 : vector<2x256xf32>
    %cst_82 = arith.constant 1.000000e+00 : f32
    %174 = vector.broadcast %cst_82 : f32 to vector<2x256xf32>
    %175 = arith.addf %174, %173 : vector<2x256xf32>
    %176 = arith.divf %174, %175 : vector<2x256xf32>
    %177 = vector.extract_strided_slice %171 {offsets = [0, 128], sizes = [2, 64], strides = [1, 1]} : vector<2x256xf32> to vector<2x64xf32>
    %178 = math.tanh %177 : vector<2x64xf32>
    %179 = vector.extract_strided_slice %176 {offsets = [0, 64], sizes = [2, 64], strides = [1, 1]} : vector<2x256xf32> to vector<2x64xf32>
    %180 = arith.mulf %179, %159 : vector<2x64xf32>
    %181 = vector.extract_strided_slice %176 {offsets = [0, 0], sizes = [2, 64], strides = [1, 1]} : vector<2x256xf32> to vector<2x64xf32>
    %182 = arith.mulf %181, %178 : vector<2x64xf32>
    %183 = arith.addf %180, %182 : vector<2x64xf32>
    %184 = vector.extract_strided_slice %176 {offsets = [0, 192], sizes = [2, 64], strides = [1, 1]} : vector<2x256xf32> to vector<2x64xf32>
    %185 = math.tanh %183 : vector<2x64xf32>
    %186 = arith.mulf %184, %185 : vector<2x64xf32>
    %187 = vector.extract_strided_slice %186 {offsets = [0, 0], sizes = [2, 32], strides = [1, 1]} : vector<2x64xf32> to vector<2x32xf32>
    %c8_83 = arith.constant 8 : index
    %c0_84 = arith.constant 0 : index
    %188 = vector.load %arg22[%c8_83, %c0_84] : memref<16x64xf32, #tpu.memory_space<vmem>>, vector<2x32xf32>
    tpu.vector_store %arg22[%c8_83, %c0_84], %187 {strides = array<i32>} : memref<16x64xf32, #tpu.memory_space<vmem>>, vector<2x32xf32>,
    %189 = vector.extract_strided_slice %186 {offsets = [0, 32], sizes = [2, 32], strides = [1, 1]} : vector<2x64xf32> to vector<2x32xf32>
    %c6_85 = arith.constant 6 : index
    %c32_86 = arith.constant 32 : index
    %190 = vector.load %arg22[%c6_85, %c32_86] : memref<16x64xf32, #tpu.memory_space<vmem>>, vector<2x32xf32>
    tpu.vector_store %arg22[%c6_85, %c32_86], %189 {strides = array<i32>} : memref<16x64xf32, #tpu.memory_space<vmem>>, vector<2x32xf32>,
    %c10_87 = arith.constant 10 : index
    %c0_88 = arith.constant 0 : index
    %191 = vector.load %arg21[%c10_87, %c0_88] : memref<16x256xf32, #tpu.memory_space<vmem>>, vector<2x256xf32>
    %c4_89 = arith.constant 4 : index
    %c0_90 = arith.constant 0 : index
    %192 = vector.load %arg21[%c4_89, %c0_90] : memref<16x256xf32, #tpu.memory_space<vmem>>, vector<2x256xf32>
    %193 = arith.select %61, %191, %192 : vector<2x256xi1>, vector<2x256xf32>
    %cst_91 = arith.constant dense<0.000000e+00> : vector<2x256xf32>
    %194 = tpu.matmul %186, %68, %cst_91 {dimension_numbers = #tpu.dot_dimension_numbers<[1], [0], [0], [1], [0, 0, 1, 1], [], []>} : vector<2x64xf32>, vector<64x256xf32>, vector<2x256xf32> -> vector<2x256xf32>
    %195 = arith.addf %193, %194 : vector<2x256xf32>
    %196 = arith.negf %195 : vector<2x256xf32>
    %197 = math.exp %196 : vector<2x256xf32>
    %cst_92 = arith.constant 1.000000e+00 : f32
    %198 = vector.broadcast %cst_92 : f32 to vector<2x256xf32>
    %199 = arith.addf %198, %197 : vector<2x256xf32>
    %200 = arith.divf %198, %199 : vector<2x256xf32>
    %201 = vector.extract_strided_slice %195 {offsets = [0, 128], sizes = [2, 64], strides = [1, 1]} : vector<2x256xf32> to vector<2x64xf32>
    %202 = math.tanh %201 : vector<2x64xf32>
    %203 = vector.extract_strided_slice %200 {offsets = [0, 64], sizes = [2, 64], strides = [1, 1]} : vector<2x256xf32> to vector<2x64xf32>
    %204 = arith.mulf %203, %183 : vector<2x64xf32>
    %205 = vector.extract_strided_slice %200 {offsets = [0, 0], sizes = [2, 64], strides = [1, 1]} : vector<2x256xf32> to vector<2x64xf32>
    %206 = arith.mulf %205, %202 : vector<2x64xf32>
    %207 = arith.addf %204, %206 : vector<2x64xf32>
    %208 = vector.extract_strided_slice %200 {offsets = [0, 192], sizes = [2, 64], strides = [1, 1]} : vector<2x256xf32> to vector<2x64xf32>
    %209 = math.tanh %207 : vector<2x64xf32>
    %210 = arith.mulf %208, %209 : vector<2x64xf32>
    %211 = vector.extract_strided_slice %210 {offsets = [0, 0], sizes = [2, 32], strides = [1, 1]} : vector<2x64xf32> to vector<2x32xf32>
    %c10_93 = arith.constant 10 : index
    %c0_94 = arith.constant 0 : index
    %212 = vector.load %arg22[%c10_93, %c0_94] : memref<16x64xf32, #tpu.memory_space<vmem>>, vector<2x32xf32>
    tpu.vector_store %arg22[%c10_93, %c0_94], %211 {strides = array<i32>} : memref<16x64xf32, #tpu.memory_space<vmem>>, vector<2x32xf32>,
    %213 = vector.extract_strided_slice %210 {offsets = [0, 32], sizes = [2, 32], strides = [1, 1]} : vector<2x64xf32> to vector<2x32xf32>
    %c4_95 = arith.constant 4 : index
    %c32_96 = arith.constant 32 : index
    %214 = vector.load %arg22[%c4_95, %c32_96] : memref<16x64xf32, #tpu.memory_space<vmem>>, vector<2x32xf32>
    tpu.vector_store %arg22[%c4_95, %c32_96], %213 {strides = array<i32>} : memref<16x64xf32, #tpu.memory_space<vmem>>, vector<2x32xf32>,
    %c12_97 = arith.constant 12 : index
    %c0_98 = arith.constant 0 : index
    %215 = vector.load %arg21[%c12_97, %c0_98] : memref<16x256xf32, #tpu.memory_space<vmem>>, vector<2x256xf32>
    %c2_99 = arith.constant 2 : index
    %c0_100 = arith.constant 0 : index
    %216 = vector.load %arg21[%c2_99, %c0_100] : memref<16x256xf32, #tpu.memory_space<vmem>>, vector<2x256xf32>
    %217 = arith.select %61, %215, %216 : vector<2x256xi1>, vector<2x256xf32>
    %cst_101 = arith.constant dense<0.000000e+00> : vector<2x256xf32>
    %218 = tpu.matmul %210, %68, %cst_101 {dimension_numbers = #tpu.dot_dimension_numbers<[1], [0], [0], [1], [0, 0, 1, 1], [], []>} : vector<2x64xf32>, vector<64x256xf32>, vector<2x256xf32> -> vector<2x256xf32>
    %219 = arith.addf %217, %218 : vector<2x256xf32>
    %220 = arith.negf %219 : vector<2x256xf32>
    %221 = math.exp %220 : vector<2x256xf32>
    %cst_102 = arith.constant 1.000000e+00 : f32
    %222 = vector.broadcast %cst_102 : f32 to vector<2x256xf32>
    %223 = arith.addf %222, %221 : vector<2x256xf32>
    %224 = arith.divf %222, %223 : vector<2x256xf32>
    %225 = vector.extract_strided_slice %219 {offsets = [0, 128], sizes = [2, 64], strides = [1, 1]} : vector<2x256xf32> to vector<2x64xf32>
    %226 = math.tanh %225 : vector<2x64xf32>
    %227 = vector.extract_strided_slice %224 {offsets = [0, 64], sizes = [2, 64], strides = [1, 1]} : vector<2x256xf32> to vector<2x64xf32>
    %228 = arith.mulf %227, %207 : vector<2x64xf32>
    %229 = vector.extract_strided_slice %224 {offsets = [0, 0], sizes = [2, 64], strides = [1, 1]} : vector<2x256xf32> to vector<2x64xf32>
    %230 = arith.mulf %229, %226 : vector<2x64xf32>
    %231 = arith.addf %228, %230 : vector<2x64xf32>
    %232 = vector.extract_strided_slice %224 {offsets = [0, 192], sizes = [2, 64], strides = [1, 1]} : vector<2x256xf32> to vector<2x64xf32>
    %233 = math.tanh %231 : vector<2x64xf32>
    %234 = arith.mulf %232, %233 : vector<2x64xf32>
    %235 = vector.extract_strided_slice %234 {offsets = [0, 0], sizes = [2, 32], strides = [1, 1]} : vector<2x64xf32> to vector<2x32xf32>
    %c12_103 = arith.constant 12 : index
    %c0_104 = arith.constant 0 : index
    %236 = vector.load %arg22[%c12_103, %c0_104] : memref<16x64xf32, #tpu.memory_space<vmem>>, vector<2x32xf32>
    tpu.vector_store %arg22[%c12_103, %c0_104], %235 {strides = array<i32>} : memref<16x64xf32, #tpu.memory_space<vmem>>, vector<2x32xf32>,
    %237 = vector.extract_strided_slice %234 {offsets = [0, 32], sizes = [2, 32], strides = [1, 1]} : vector<2x64xf32> to vector<2x32xf32>
    %c2_105 = arith.constant 2 : index
    %c32_106 = arith.constant 32 : index
    %238 = vector.load %arg22[%c2_105, %c32_106] : memref<16x64xf32, #tpu.memory_space<vmem>>, vector<2x32xf32>
    tpu.vector_store %arg22[%c2_105, %c32_106], %237 {strides = array<i32>} : memref<16x64xf32, #tpu.memory_space<vmem>>, vector<2x32xf32>,
    %c14_107 = arith.constant 14 : index
    %c0_108 = arith.constant 0 : index
    %239 = vector.load %arg21[%c14_107, %c0_108] : memref<16x256xf32, #tpu.memory_space<vmem>>, vector<2x256xf32>
    %c0_109 = arith.constant 0 : index
    %c0_110 = arith.constant 0 : index
    %240 = vector.load %arg21[%c0_109, %c0_110] : memref<16x256xf32, #tpu.memory_space<vmem>>, vector<2x256xf32>
    %241 = arith.select %61, %239, %240 : vector<2x256xi1>, vector<2x256xf32>
    %cst_111 = arith.constant dense<0.000000e+00> : vector<2x256xf32>
    %242 = tpu.matmul %234, %68, %cst_111 {dimension_numbers = #tpu.dot_dimension_numbers<[1], [0], [0], [1], [0, 0, 1, 1], [], []>} : vector<2x64xf32>, vector<64x256xf32>, vector<2x256xf32> -> vector<2x256xf32>
    %243 = arith.addf %241, %242 : vector<2x256xf32>
    %244 = arith.negf %243 : vector<2x256xf32>
    %245 = math.exp %244 : vector<2x256xf32>
    %cst_112 = arith.constant 1.000000e+00 : f32
    %246 = vector.broadcast %cst_112 : f32 to vector<2x256xf32>
    %247 = arith.addf %246, %245 : vector<2x256xf32>
    %248 = arith.divf %246, %247 : vector<2x256xf32>
    %249 = vector.extract_strided_slice %243 {offsets = [0, 128], sizes = [2, 64], strides = [1, 1]} : vector<2x256xf32> to vector<2x64xf32>
    %250 = math.tanh %249 : vector<2x64xf32>
    %251 = vector.extract_strided_slice %248 {offsets = [0, 64], sizes = [2, 64], strides = [1, 1]} : vector<2x256xf32> to vector<2x64xf32>
    %252 = arith.mulf %251, %231 : vector<2x64xf32>
    %253 = vector.extract_strided_slice %248 {offsets = [0, 0], sizes = [2, 64], strides = [1, 1]} : vector<2x256xf32> to vector<2x64xf32>
    %254 = arith.mulf %253, %250 : vector<2x64xf32>
    %255 = arith.addf %252, %254 : vector<2x64xf32>
    %256 = vector.extract_strided_slice %248 {offsets = [0, 192], sizes = [2, 64], strides = [1, 1]} : vector<2x256xf32> to vector<2x64xf32>
    %257 = math.tanh %255 : vector<2x64xf32>
    %258 = arith.mulf %256, %257 : vector<2x64xf32>
    %259 = vector.extract_strided_slice %258 {offsets = [0, 0], sizes = [2, 32], strides = [1, 1]} : vector<2x64xf32> to vector<2x32xf32>
    %c14_113 = arith.constant 14 : index
    %c0_114 = arith.constant 0 : index
    %260 = vector.load %arg22[%c14_113, %c0_114] : memref<16x64xf32, #tpu.memory_space<vmem>>, vector<2x32xf32>
    tpu.vector_store %arg22[%c14_113, %c0_114], %259 {strides = array<i32>} : memref<16x64xf32, #tpu.memory_space<vmem>>, vector<2x32xf32>,
    %261 = vector.extract_strided_slice %258 {offsets = [0, 32], sizes = [2, 32], strides = [1, 1]} : vector<2x64xf32> to vector<2x32xf32>
    %c0_115 = arith.constant 0 : index
    %c32_116 = arith.constant 32 : index
    %262 = vector.load %arg22[%c0_115, %c32_116] : memref<16x64xf32, #tpu.memory_space<vmem>>, vector<2x32xf32>
    tpu.vector_store %arg22[%c0_115, %c32_116], %261 {strides = array<i32>} : memref<16x64xf32, #tpu.memory_space<vmem>>, vector<2x32xf32>,
    %c0_117 = arith.constant 0 : index
    %c0_118 = arith.constant 0 : index
    %263 = vector.load %arg22[%c0_117, %c0_118] : memref<16x64xf32, #tpu.memory_space<vmem>>, vector<16x64xf32>
    %c0_119 = arith.constant 0 : index
    %c0_120 = arith.constant 0 : index
    %264 = vector.load %arg8[%c0_119, %c0_120] : memref<64x256xf32, #tpu.memory_space<vmem>>, vector<64x256xf32>
    %cst_121 = arith.constant dense<0.000000e+00> : vector<16x256xf32>
    %265 = tpu.matmul %263, %264, %cst_121 {dimension_numbers = #tpu.dot_dimension_numbers<[1], [0], [0], [1], [0, 0, 1, 1], [], []>} : vector<16x64xf32>, vector<64x256xf32>, vector<16x256xf32> -> vector<16x256xf32>
    %c0_122 = arith.constant 0 : index
    %c0_123 = arith.constant 0 : index
    %266 = vector.load %arg10[%c0_122, %c0_123] : memref<1x256xf32, #tpu.memory_space<vmem>>, vector<1x256xf32>
    %267 = vector.broadcast %266 : vector<1x256xf32> to vector<16x256xf32>
    %268 = arith.addf %265, %267 : vector<16x256xf32>
    %c0_124 = arith.constant 0 : index
    %c0_125 = arith.constant 0 : index
    %269 = vector.load %arg21[%c0_124, %c0_125] : memref<16x256xf32, #tpu.memory_space<vmem>>, vector<16x256xf32>
    tpu.vector_store %arg21[%c0_124, %c0_125], %268 {strides = array<i32>} : memref<16x256xf32, #tpu.memory_space<vmem>>, vector<16x256xf32>,
    %c0_126 = arith.constant 0 : index
    %c0_127 = arith.constant 0 : index
    %270 = vector.load %arg9[%c0_126, %c0_127] : memref<64x256xf32, #tpu.memory_space<vmem>>, vector<64x256xf32>
    %cst_128 = arith.constant 0.000000e+00 : f32
    %271 = vector.broadcast %cst_128 : f32 to vector<2x64xf32>
    %cst_129 = arith.constant 0.000000e+00 : f32
    %272 = vector.broadcast %cst_129 : f32 to vector<2x64xf32>
    %c0_130 = arith.constant 0 : index
    %c0_131 = arith.constant 0 : index
    %273 = vector.load %arg21[%c0_130, %c0_131] : memref<16x256xf32, #tpu.memory_space<vmem>>, vector<2x256xf32>
    %c14_132 = arith.constant 14 : index
    %c0_133 = arith.constant 0 : index
    %274 = vector.load %arg21[%c14_132, %c0_133] : memref<16x256xf32, #tpu.memory_space<vmem>>, vector<2x256xf32>
    %275 = arith.select %61, %273, %274 : vector<2x256xi1>, vector<2x256xf32>
    %cst_134 = arith.constant dense<0.000000e+00> : vector<2x256xf32>
    %276 = tpu.matmul %271, %270, %cst_134 {dimension_numbers = #tpu.dot_dimension_numbers<[1], [0], [0], [1], [0, 0, 1, 1], [], []>} : vector<2x64xf32>, vector<64x256xf32>, vector<2x256xf32> -> vector<2x256xf32>
    %277 = arith.addf %275, %276 : vector<2x256xf32>
    %278 = arith.negf %277 : vector<2x256xf32>
    %279 = math.exp %278 : vector<2x256xf32>
    %cst_135 = arith.constant 1.000000e+00 : f32
    %280 = vector.broadcast %cst_135 : f32 to vector<2x256xf32>
    %281 = arith.addf %280, %279 : vector<2x256xf32>
    %282 = arith.divf %280, %281 : vector<2x256xf32>
    %283 = vector.extract_strided_slice %277 {offsets = [0, 128], sizes = [2, 64], strides = [1, 1]} : vector<2x256xf32> to vector<2x64xf32>
    %284 = math.tanh %283 : vector<2x64xf32>
    %285 = vector.extract_strided_slice %282 {offsets = [0, 64], sizes = [2, 64], strides = [1, 1]} : vector<2x256xf32> to vector<2x64xf32>
    %286 = arith.mulf %285, %272 : vector<2x64xf32>
    %287 = vector.extract_strided_slice %282 {offsets = [0, 0], sizes = [2, 64], strides = [1, 1]} : vector<2x256xf32> to vector<2x64xf32>
    %288 = arith.mulf %287, %284 : vector<2x64xf32>
    %289 = arith.addf %286, %288 : vector<2x64xf32>
    %290 = vector.extract_strided_slice %282 {offsets = [0, 192], sizes = [2, 64], strides = [1, 1]} : vector<2x256xf32> to vector<2x64xf32>
    %291 = math.tanh %289 : vector<2x64xf32>
    %292 = arith.mulf %290, %291 : vector<2x64xf32>
    %293 = vector.extract_strided_slice %292 {offsets = [0, 0], sizes = [2, 32], strides = [1, 1]} : vector<2x64xf32> to vector<2x32xf32>
    %c0_136 = arith.constant 0 : index
    %c0_137 = arith.constant 0 : index
    %294 = vector.load %arg23[%c0_136, %c0_137] : memref<16x64xf32, #tpu.memory_space<vmem>>, vector<2x32xf32>
    tpu.vector_store %arg23[%c0_136, %c0_137], %293 {strides = array<i32>} : memref<16x64xf32, #tpu.memory_space<vmem>>, vector<2x32xf32>,
    %295 = vector.extract_strided_slice %292 {offsets = [0, 32], sizes = [2, 32], strides = [1, 1]} : vector<2x64xf32> to vector<2x32xf32>
    %c14_138 = arith.constant 14 : index
    %c32_139 = arith.constant 32 : index
    %296 = vector.load %arg23[%c14_138, %c32_139] : memref<16x64xf32, #tpu.memory_space<vmem>>, vector<2x32xf32>
    tpu.vector_store %arg23[%c14_138, %c32_139], %295 {strides = array<i32>} : memref<16x64xf32, #tpu.memory_space<vmem>>, vector<2x32xf32>,
    %c2_140 = arith.constant 2 : index
    %c0_141 = arith.constant 0 : index
    %297 = vector.load %arg21[%c2_140, %c0_141] : memref<16x256xf32, #tpu.memory_space<vmem>>, vector<2x256xf32>
    %c12_142 = arith.constant 12 : index
    %c0_143 = arith.constant 0 : index
    %298 = vector.load %arg21[%c12_142, %c0_143] : memref<16x256xf32, #tpu.memory_space<vmem>>, vector<2x256xf32>
    %299 = arith.select %61, %297, %298 : vector<2x256xi1>, vector<2x256xf32>
    %cst_144 = arith.constant dense<0.000000e+00> : vector<2x256xf32>
    %300 = tpu.matmul %292, %270, %cst_144 {dimension_numbers = #tpu.dot_dimension_numbers<[1], [0], [0], [1], [0, 0, 1, 1], [], []>} : vector<2x64xf32>, vector<64x256xf32>, vector<2x256xf32> -> vector<2x256xf32>
    %301 = arith.addf %299, %300 : vector<2x256xf32>
    %302 = arith.negf %301 : vector<2x256xf32>
    %303 = math.exp %302 : vector<2x256xf32>
    %cst_145 = arith.constant 1.000000e+00 : f32
    %304 = vector.broadcast %cst_145 : f32 to vector<2x256xf32>
    %305 = arith.addf %304, %303 : vector<2x256xf32>
    %306 = arith.divf %304, %305 : vector<2x256xf32>
    %307 = vector.extract_strided_slice %301 {offsets = [0, 128], sizes = [2, 64], strides = [1, 1]} : vector<2x256xf32> to vector<2x64xf32>
    %308 = math.tanh %307 : vector<2x64xf32>
    %309 = vector.extract_strided_slice %306 {offsets = [0, 64], sizes = [2, 64], strides = [1, 1]} : vector<2x256xf32> to vector<2x64xf32>
    %310 = arith.mulf %309, %289 : vector<2x64xf32>
    %311 = vector.extract_strided_slice %306 {offsets = [0, 0], sizes = [2, 64], strides = [1, 1]} : vector<2x256xf32> to vector<2x64xf32>
    %312 = arith.mulf %311, %308 : vector<2x64xf32>
    %313 = arith.addf %310, %312 : vector<2x64xf32>
    %314 = vector.extract_strided_slice %306 {offsets = [0, 192], sizes = [2, 64], strides = [1, 1]} : vector<2x256xf32> to vector<2x64xf32>
    %315 = math.tanh %313 : vector<2x64xf32>
    %316 = arith.mulf %314, %315 : vector<2x64xf32>
    %317 = vector.extract_strided_slice %316 {offsets = [0, 0], sizes = [2, 32], strides = [1, 1]} : vector<2x64xf32> to vector<2x32xf32>
    %c2_146 = arith.constant 2 : index
    %c0_147 = arith.constant 0 : index
    %318 = vector.load %arg23[%c2_146, %c0_147] : memref<16x64xf32, #tpu.memory_space<vmem>>, vector<2x32xf32>
    tpu.vector_store %arg23[%c2_146, %c0_147], %317 {strides = array<i32>} : memref<16x64xf32, #tpu.memory_space<vmem>>, vector<2x32xf32>,
    %319 = vector.extract_strided_slice %316 {offsets = [0, 32], sizes = [2, 32], strides = [1, 1]} : vector<2x64xf32> to vector<2x32xf32>
    %c12_148 = arith.constant 12 : index
    %c32_149 = arith.constant 32 : index
    %320 = vector.load %arg23[%c12_148, %c32_149] : memref<16x64xf32, #tpu.memory_space<vmem>>, vector<2x32xf32>
    tpu.vector_store %arg23[%c12_148, %c32_149], %319 {strides = array<i32>} : memref<16x64xf32, #tpu.memory_space<vmem>>, vector<2x32xf32>,
    %c4_150 = arith.constant 4 : index
    %c0_151 = arith.constant 0 : index
    %321 = vector.load %arg21[%c4_150, %c0_151] : memref<16x256xf32, #tpu.memory_space<vmem>>, vector<2x256xf32>
    %c10_152 = arith.constant 10 : index
    %c0_153 = arith.constant 0 : index
    %322 = vector.load %arg21[%c10_152, %c0_153] : memref<16x256xf32, #tpu.memory_space<vmem>>, vector<2x256xf32>
    %323 = arith.select %61, %321, %322 : vector<2x256xi1>, vector<2x256xf32>
    %cst_154 = arith.constant dense<0.000000e+00> : vector<2x256xf32>
    %324 = tpu.matmul %316, %270, %cst_154 {dimension_numbers = #tpu.dot_dimension_numbers<[1], [0], [0], [1], [0, 0, 1, 1], [], []>} : vector<2x64xf32>, vector<64x256xf32>, vector<2x256xf32> -> vector<2x256xf32>
    %325 = arith.addf %323, %324 : vector<2x256xf32>
    %326 = arith.negf %325 : vector<2x256xf32>
    %327 = math.exp %326 : vector<2x256xf32>
    %cst_155 = arith.constant 1.000000e+00 : f32
    %328 = vector.broadcast %cst_155 : f32 to vector<2x256xf32>
    %329 = arith.addf %328, %327 : vector<2x256xf32>
    %330 = arith.divf %328, %329 : vector<2x256xf32>
    %331 = vector.extract_strided_slice %325 {offsets = [0, 128], sizes = [2, 64], strides = [1, 1]} : vector<2x256xf32> to vector<2x64xf32>
    %332 = math.tanh %331 : vector<2x64xf32>
    %333 = vector.extract_strided_slice %330 {offsets = [0, 64], sizes = [2, 64], strides = [1, 1]} : vector<2x256xf32> to vector<2x64xf32>
    %334 = arith.mulf %333, %313 : vector<2x64xf32>
    %335 = vector.extract_strided_slice %330 {offsets = [0, 0], sizes = [2, 64], strides = [1, 1]} : vector<2x256xf32> to vector<2x64xf32>
    %336 = arith.mulf %335, %332 : vector<2x64xf32>
    %337 = arith.addf %334, %336 : vector<2x64xf32>
    %338 = vector.extract_strided_slice %330 {offsets = [0, 192], sizes = [2, 64], strides = [1, 1]} : vector<2x256xf32> to vector<2x64xf32>
    %339 = math.tanh %337 : vector<2x64xf32>
    %340 = arith.mulf %338, %339 : vector<2x64xf32>
    %341 = vector.extract_strided_slice %340 {offsets = [0, 0], sizes = [2, 32], strides = [1, 1]} : vector<2x64xf32> to vector<2x32xf32>
    %c4_156 = arith.constant 4 : index
    %c0_157 = arith.constant 0 : index
    %342 = vector.load %arg23[%c4_156, %c0_157] : memref<16x64xf32, #tpu.memory_space<vmem>>, vector<2x32xf32>
    tpu.vector_store %arg23[%c4_156, %c0_157], %341 {strides = array<i32>} : memref<16x64xf32, #tpu.memory_space<vmem>>, vector<2x32xf32>,
    %343 = vector.extract_strided_slice %340 {offsets = [0, 32], sizes = [2, 32], strides = [1, 1]} : vector<2x64xf32> to vector<2x32xf32>
    %c10_158 = arith.constant 10 : index
    %c32_159 = arith.constant 32 : index
    %344 = vector.load %arg23[%c10_158, %c32_159] : memref<16x64xf32, #tpu.memory_space<vmem>>, vector<2x32xf32>
    tpu.vector_store %arg23[%c10_158, %c32_159], %343 {strides = array<i32>} : memref<16x64xf32, #tpu.memory_space<vmem>>, vector<2x32xf32>,
    %c6_160 = arith.constant 6 : index
    %c0_161 = arith.constant 0 : index
    %345 = vector.load %arg21[%c6_160, %c0_161] : memref<16x256xf32, #tpu.memory_space<vmem>>, vector<2x256xf32>
    %c8_162 = arith.constant 8 : index
    %c0_163 = arith.constant 0 : index
    %346 = vector.load %arg21[%c8_162, %c0_163] : memref<16x256xf32, #tpu.memory_space<vmem>>, vector<2x256xf32>
    %347 = arith.select %61, %345, %346 : vector<2x256xi1>, vector<2x256xf32>
    %cst_164 = arith.constant dense<0.000000e+00> : vector<2x256xf32>
    %348 = tpu.matmul %340, %270, %cst_164 {dimension_numbers = #tpu.dot_dimension_numbers<[1], [0], [0], [1], [0, 0, 1, 1], [], []>} : vector<2x64xf32>, vector<64x256xf32>, vector<2x256xf32> -> vector<2x256xf32>
    %349 = arith.addf %347, %348 : vector<2x256xf32>
    %350 = arith.negf %349 : vector<2x256xf32>
    %351 = math.exp %350 : vector<2x256xf32>
    %cst_165 = arith.constant 1.000000e+00 : f32
    %352 = vector.broadcast %cst_165 : f32 to vector<2x256xf32>
    %353 = arith.addf %352, %351 : vector<2x256xf32>
    %354 = arith.divf %352, %353 : vector<2x256xf32>
    %355 = vector.extract_strided_slice %349 {offsets = [0, 128], sizes = [2, 64], strides = [1, 1]} : vector<2x256xf32> to vector<2x64xf32>
    %356 = math.tanh %355 : vector<2x64xf32>
    %357 = vector.extract_strided_slice %354 {offsets = [0, 64], sizes = [2, 64], strides = [1, 1]} : vector<2x256xf32> to vector<2x64xf32>
    %358 = arith.mulf %357, %337 : vector<2x64xf32>
    %359 = vector.extract_strided_slice %354 {offsets = [0, 0], sizes = [2, 64], strides = [1, 1]} : vector<2x256xf32> to vector<2x64xf32>
    %360 = arith.mulf %359, %356 : vector<2x64xf32>
    %361 = arith.addf %358, %360 : vector<2x64xf32>
    %362 = vector.extract_strided_slice %354 {offsets = [0, 192], sizes = [2, 64], strides = [1, 1]} : vector<2x256xf32> to vector<2x64xf32>
    %363 = math.tanh %361 : vector<2x64xf32>
    %364 = arith.mulf %362, %363 : vector<2x64xf32>
    %365 = vector.extract_strided_slice %364 {offsets = [0, 0], sizes = [2, 32], strides = [1, 1]} : vector<2x64xf32> to vector<2x32xf32>
    %c6_166 = arith.constant 6 : index
    %c0_167 = arith.constant 0 : index
    %366 = vector.load %arg23[%c6_166, %c0_167] : memref<16x64xf32, #tpu.memory_space<vmem>>, vector<2x32xf32>
    tpu.vector_store %arg23[%c6_166, %c0_167], %365 {strides = array<i32>} : memref<16x64xf32, #tpu.memory_space<vmem>>, vector<2x32xf32>,
    %367 = vector.extract_strided_slice %364 {offsets = [0, 32], sizes = [2, 32], strides = [1, 1]} : vector<2x64xf32> to vector<2x32xf32>
    %c8_168 = arith.constant 8 : index
    %c32_169 = arith.constant 32 : index
    %368 = vector.load %arg23[%c8_168, %c32_169] : memref<16x64xf32, #tpu.memory_space<vmem>>, vector<2x32xf32>
    tpu.vector_store %arg23[%c8_168, %c32_169], %367 {strides = array<i32>} : memref<16x64xf32, #tpu.memory_space<vmem>>, vector<2x32xf32>,
    %c8_170 = arith.constant 8 : index
    %c0_171 = arith.constant 0 : index
    %369 = vector.load %arg21[%c8_170, %c0_171] : memref<16x256xf32, #tpu.memory_space<vmem>>, vector<2x256xf32>
    %c6_172 = arith.constant 6 : index
    %c0_173 = arith.constant 0 : index
    %370 = vector.load %arg21[%c6_172, %c0_173] : memref<16x256xf32, #tpu.memory_space<vmem>>, vector<2x256xf32>
    %371 = arith.select %61, %369, %370 : vector<2x256xi1>, vector<2x256xf32>
    %cst_174 = arith.constant dense<0.000000e+00> : vector<2x256xf32>
    %372 = tpu.matmul %364, %270, %cst_174 {dimension_numbers = #tpu.dot_dimension_numbers<[1], [0], [0], [1], [0, 0, 1, 1], [], []>} : vector<2x64xf32>, vector<64x256xf32>, vector<2x256xf32> -> vector<2x256xf32>
    %373 = arith.addf %371, %372 : vector<2x256xf32>
    %374 = arith.negf %373 : vector<2x256xf32>
    %375 = math.exp %374 : vector<2x256xf32>
    %cst_175 = arith.constant 1.000000e+00 : f32
    %376 = vector.broadcast %cst_175 : f32 to vector<2x256xf32>
    %377 = arith.addf %376, %375 : vector<2x256xf32>
    %378 = arith.divf %376, %377 : vector<2x256xf32>
    %379 = vector.extract_strided_slice %373 {offsets = [0, 128], sizes = [2, 64], strides = [1, 1]} : vector<2x256xf32> to vector<2x64xf32>
    %380 = math.tanh %379 : vector<2x64xf32>
    %381 = vector.extract_strided_slice %378 {offsets = [0, 64], sizes = [2, 64], strides = [1, 1]} : vector<2x256xf32> to vector<2x64xf32>
    %382 = arith.mulf %381, %361 : vector<2x64xf32>
    %383 = vector.extract_strided_slice %378 {offsets = [0, 0], sizes = [2, 64], strides = [1, 1]} : vector<2x256xf32> to vector<2x64xf32>
    %384 = arith.mulf %383, %380 : vector<2x64xf32>
    %385 = arith.addf %382, %384 : vector<2x64xf32>
    %386 = vector.extract_strided_slice %378 {offsets = [0, 192], sizes = [2, 64], strides = [1, 1]} : vector<2x256xf32> to vector<2x64xf32>
    %387 = math.tanh %385 : vector<2x64xf32>
    %388 = arith.mulf %386, %387 : vector<2x64xf32>
    %389 = vector.extract_strided_slice %388 {offsets = [0, 0], sizes = [2, 32], strides = [1, 1]} : vector<2x64xf32> to vector<2x32xf32>
    %c8_176 = arith.constant 8 : index
    %c0_177 = arith.constant 0 : index
    %390 = vector.load %arg23[%c8_176, %c0_177] : memref<16x64xf32, #tpu.memory_space<vmem>>, vector<2x32xf32>
    tpu.vector_store %arg23[%c8_176, %c0_177], %389 {strides = array<i32>} : memref<16x64xf32, #tpu.memory_space<vmem>>, vector<2x32xf32>,
    %391 = vector.extract_strided_slice %388 {offsets = [0, 32], sizes = [2, 32], strides = [1, 1]} : vector<2x64xf32> to vector<2x32xf32>
    %c6_178 = arith.constant 6 : index
    %c32_179 = arith.constant 32 : index
    %392 = vector.load %arg23[%c6_178, %c32_179] : memref<16x64xf32, #tpu.memory_space<vmem>>, vector<2x32xf32>
    tpu.vector_store %arg23[%c6_178, %c32_179], %391 {strides = array<i32>} : memref<16x64xf32, #tpu.memory_space<vmem>>, vector<2x32xf32>,
    %c10_180 = arith.constant 10 : index
    %c0_181 = arith.constant 0 : index
    %393 = vector.load %arg21[%c10_180, %c0_181] : memref<16x256xf32, #tpu.memory_space<vmem>>, vector<2x256xf32>
    %c4_182 = arith.constant 4 : index
    %c0_183 = arith.constant 0 : index
    %394 = vector.load %arg21[%c4_182, %c0_183] : memref<16x256xf32, #tpu.memory_space<vmem>>, vector<2x256xf32>
    %395 = arith.select %61, %393, %394 : vector<2x256xi1>, vector<2x256xf32>
    %cst_184 = arith.constant dense<0.000000e+00> : vector<2x256xf32>
    %396 = tpu.matmul %388, %270, %cst_184 {dimension_numbers = #tpu.dot_dimension_numbers<[1], [0], [0], [1], [0, 0, 1, 1], [], []>} : vector<2x64xf32>, vector<64x256xf32>, vector<2x256xf32> -> vector<2x256xf32>
    %397 = arith.addf %395, %396 : vector<2x256xf32>
    %398 = arith.negf %397 : vector<2x256xf32>
    %399 = math.exp %398 : vector<2x256xf32>
    %cst_185 = arith.constant 1.000000e+00 : f32
    %400 = vector.broadcast %cst_185 : f32 to vector<2x256xf32>
    %401 = arith.addf %400, %399 : vector<2x256xf32>
    %402 = arith.divf %400, %401 : vector<2x256xf32>
    %403 = vector.extract_strided_slice %397 {offsets = [0, 128], sizes = [2, 64], strides = [1, 1]} : vector<2x256xf32> to vector<2x64xf32>
    %404 = math.tanh %403 : vector<2x64xf32>
    %405 = vector.extract_strided_slice %402 {offsets = [0, 64], sizes = [2, 64], strides = [1, 1]} : vector<2x256xf32> to vector<2x64xf32>
    %406 = arith.mulf %405, %385 : vector<2x64xf32>
    %407 = vector.extract_strided_slice %402 {offsets = [0, 0], sizes = [2, 64], strides = [1, 1]} : vector<2x256xf32> to vector<2x64xf32>
    %408 = arith.mulf %407, %404 : vector<2x64xf32>
    %409 = arith.addf %406, %408 : vector<2x64xf32>
    %410 = vector.extract_strided_slice %402 {offsets = [0, 192], sizes = [2, 64], strides = [1, 1]} : vector<2x256xf32> to vector<2x64xf32>
    %411 = math.tanh %409 : vector<2x64xf32>
    %412 = arith.mulf %410, %411 : vector<2x64xf32>
    %413 = vector.extract_strided_slice %412 {offsets = [0, 0], sizes = [2, 32], strides = [1, 1]} : vector<2x64xf32> to vector<2x32xf32>
    %c10_186 = arith.constant 10 : index
    %c0_187 = arith.constant 0 : index
    %414 = vector.load %arg23[%c10_186, %c0_187] : memref<16x64xf32, #tpu.memory_space<vmem>>, vector<2x32xf32>
    tpu.vector_store %arg23[%c10_186, %c0_187], %413 {strides = array<i32>} : memref<16x64xf32, #tpu.memory_space<vmem>>, vector<2x32xf32>,
    %415 = vector.extract_strided_slice %412 {offsets = [0, 32], sizes = [2, 32], strides = [1, 1]} : vector<2x64xf32> to vector<2x32xf32>
    %c4_188 = arith.constant 4 : index
    %c32_189 = arith.constant 32 : index
    %416 = vector.load %arg23[%c4_188, %c32_189] : memref<16x64xf32, #tpu.memory_space<vmem>>, vector<2x32xf32>
    tpu.vector_store %arg23[%c4_188, %c32_189], %415 {strides = array<i32>} : memref<16x64xf32, #tpu.memory_space<vmem>>, vector<2x32xf32>,
    %c12_190 = arith.constant 12 : index
    %c0_191 = arith.constant 0 : index
    %417 = vector.load %arg21[%c12_190, %c0_191] : memref<16x256xf32, #tpu.memory_space<vmem>>, vector<2x256xf32>
    %c2_192 = arith.constant 2 : index
    %c0_193 = arith.constant 0 : index
    %418 = vector.load %arg21[%c2_192, %c0_193] : memref<16x256xf32, #tpu.memory_space<vmem>>, vector<2x256xf32>
    %419 = arith.select %61, %417, %418 : vector<2x256xi1>, vector<2x256xf32>
    %cst_194 = arith.constant dense<0.000000e+00> : vector<2x256xf32>
    %420 = tpu.matmul %412, %270, %cst_194 {dimension_numbers = #tpu.dot_dimension_numbers<[1], [0], [0], [1], [0, 0, 1, 1], [], []>} : vector<2x64xf32>, vector<64x256xf32>, vector<2x256xf32> -> vector<2x256xf32>
    %421 = arith.addf %419, %420 : vector<2x256xf32>
    %422 = arith.negf %421 : vector<2x256xf32>
    %423 = math.exp %422 : vector<2x256xf32>
    %cst_195 = arith.constant 1.000000e+00 : f32
    %424 = vector.broadcast %cst_195 : f32 to vector<2x256xf32>
    %425 = arith.addf %424, %423 : vector<2x256xf32>
    %426 = arith.divf %424, %425 : vector<2x256xf32>
    %427 = vector.extract_strided_slice %421 {offsets = [0, 128], sizes = [2, 64], strides = [1, 1]} : vector<2x256xf32> to vector<2x64xf32>
    %428 = math.tanh %427 : vector<2x64xf32>
    %429 = vector.extract_strided_slice %426 {offsets = [0, 64], sizes = [2, 64], strides = [1, 1]} : vector<2x256xf32> to vector<2x64xf32>
    %430 = arith.mulf %429, %409 : vector<2x64xf32>
    %431 = vector.extract_strided_slice %426 {offsets = [0, 0], sizes = [2, 64], strides = [1, 1]} : vector<2x256xf32> to vector<2x64xf32>
    %432 = arith.mulf %431, %428 : vector<2x64xf32>
    %433 = arith.addf %430, %432 : vector<2x64xf32>
    %434 = vector.extract_strided_slice %426 {offsets = [0, 192], sizes = [2, 64], strides = [1, 1]} : vector<2x256xf32> to vector<2x64xf32>
    %435 = math.tanh %433 : vector<2x64xf32>
    %436 = arith.mulf %434, %435 : vector<2x64xf32>
    %437 = vector.extract_strided_slice %436 {offsets = [0, 0], sizes = [2, 32], strides = [1, 1]} : vector<2x64xf32> to vector<2x32xf32>
    %c12_196 = arith.constant 12 : index
    %c0_197 = arith.constant 0 : index
    %438 = vector.load %arg23[%c12_196, %c0_197] : memref<16x64xf32, #tpu.memory_space<vmem>>, vector<2x32xf32>
    tpu.vector_store %arg23[%c12_196, %c0_197], %437 {strides = array<i32>} : memref<16x64xf32, #tpu.memory_space<vmem>>, vector<2x32xf32>,
    %439 = vector.extract_strided_slice %436 {offsets = [0, 32], sizes = [2, 32], strides = [1, 1]} : vector<2x64xf32> to vector<2x32xf32>
    %c2_198 = arith.constant 2 : index
    %c32_199 = arith.constant 32 : index
    %440 = vector.load %arg23[%c2_198, %c32_199] : memref<16x64xf32, #tpu.memory_space<vmem>>, vector<2x32xf32>
    tpu.vector_store %arg23[%c2_198, %c32_199], %439 {strides = array<i32>} : memref<16x64xf32, #tpu.memory_space<vmem>>, vector<2x32xf32>,
    %c14_200 = arith.constant 14 : index
    %c0_201 = arith.constant 0 : index
    %441 = vector.load %arg21[%c14_200, %c0_201] : memref<16x256xf32, #tpu.memory_space<vmem>>, vector<2x256xf32>
    %c0_202 = arith.constant 0 : index
    %c0_203 = arith.constant 0 : index
    %442 = vector.load %arg21[%c0_202, %c0_203] : memref<16x256xf32, #tpu.memory_space<vmem>>, vector<2x256xf32>
    %443 = arith.select %61, %441, %442 : vector<2x256xi1>, vector<2x256xf32>
    %cst_204 = arith.constant dense<0.000000e+00> : vector<2x256xf32>
    %444 = tpu.matmul %436, %270, %cst_204 {dimension_numbers = #tpu.dot_dimension_numbers<[1], [0], [0], [1], [0, 0, 1, 1], [], []>} : vector<2x64xf32>, vector<64x256xf32>, vector<2x256xf32> -> vector<2x256xf32>
    %445 = arith.addf %443, %444 : vector<2x256xf32>
    %446 = arith.negf %445 : vector<2x256xf32>
    %447 = math.exp %446 : vector<2x256xf32>
    %cst_205 = arith.constant 1.000000e+00 : f32
    %448 = vector.broadcast %cst_205 : f32 to vector<2x256xf32>
    %449 = arith.addf %448, %447 : vector<2x256xf32>
    %450 = arith.divf %448, %449 : vector<2x256xf32>
    %451 = vector.extract_strided_slice %445 {offsets = [0, 128], sizes = [2, 64], strides = [1, 1]} : vector<2x256xf32> to vector<2x64xf32>
    %452 = math.tanh %451 : vector<2x64xf32>
    %453 = vector.extract_strided_slice %450 {offsets = [0, 64], sizes = [2, 64], strides = [1, 1]} : vector<2x256xf32> to vector<2x64xf32>
    %454 = arith.mulf %453, %433 : vector<2x64xf32>
    %455 = vector.extract_strided_slice %450 {offsets = [0, 0], sizes = [2, 64], strides = [1, 1]} : vector<2x256xf32> to vector<2x64xf32>
    %456 = arith.mulf %455, %452 : vector<2x64xf32>
    %457 = arith.addf %454, %456 : vector<2x64xf32>
    %458 = vector.extract_strided_slice %450 {offsets = [0, 192], sizes = [2, 64], strides = [1, 1]} : vector<2x256xf32> to vector<2x64xf32>
    %459 = math.tanh %457 : vector<2x64xf32>
    %460 = arith.mulf %458, %459 : vector<2x64xf32>
    %461 = vector.extract_strided_slice %460 {offsets = [0, 0], sizes = [2, 32], strides = [1, 1]} : vector<2x64xf32> to vector<2x32xf32>
    %c14_206 = arith.constant 14 : index
    %c0_207 = arith.constant 0 : index
    %462 = vector.load %arg23[%c14_206, %c0_207] : memref<16x64xf32, #tpu.memory_space<vmem>>, vector<2x32xf32>
    tpu.vector_store %arg23[%c14_206, %c0_207], %461 {strides = array<i32>} : memref<16x64xf32, #tpu.memory_space<vmem>>, vector<2x32xf32>,
    %463 = vector.extract_strided_slice %460 {offsets = [0, 32], sizes = [2, 32], strides = [1, 1]} : vector<2x64xf32> to vector<2x32xf32>
    %c0_208 = arith.constant 0 : index
    %c32_209 = arith.constant 32 : index
    %464 = vector.load %arg23[%c0_208, %c32_209] : memref<16x64xf32, #tpu.memory_space<vmem>>, vector<2x32xf32>
    tpu.vector_store %arg23[%c0_208, %c32_209], %463 {strides = array<i32>} : memref<16x64xf32, #tpu.memory_space<vmem>>, vector<2x32xf32>,
    %c0_210 = arith.constant 0 : index
    %c0_211 = arith.constant 0 : index
    %465 = vector.load %arg23[%c0_210, %c0_211] : memref<16x64xf32, #tpu.memory_space<vmem>>, vector<16x64xf32>
    %c0_212 = arith.constant 0 : index
    %c0_213 = arith.constant 0 : index
    %466 = vector.load %arg11[%c0_212, %c0_213] : memref<64x384xf32, #tpu.memory_space<vmem>>, vector<64x384xf32>
    %cst_214 = arith.constant dense<0.000000e+00> : vector<16x384xf32>
    %467 = tpu.matmul %465, %466, %cst_214 {dimension_numbers = #tpu.dot_dimension_numbers<[1], [0], [0], [1], [0, 0, 1, 1], [], []>} : vector<16x64xf32>, vector<64x384xf32>, vector<16x384xf32> -> vector<16x384xf32>
    %c0_215 = arith.constant 0 : index
    %c0_216 = arith.constant 0 : index
    %468 = vector.load %arg12[%c0_215, %c0_216] : memref<1x384xf32, #tpu.memory_space<vmem>>, vector<1x384xf32>
    %469 = vector.broadcast %468 : vector<1x384xf32> to vector<16x384xf32>
    %470 = arith.addf %467, %469 : vector<16x384xf32>
    %471 = vector.extract_strided_slice %470 {offsets = [0, 0], sizes = [16, 128], strides = [1, 1]} : vector<16x384xf32> to vector<16x128xf32>
    %472 = vector.extract_strided_slice %470 {offsets = [0, 128], sizes = [16, 128], strides = [1, 1]} : vector<16x384xf32> to vector<16x128xf32>
    %473 = vector.extract_strided_slice %470 {offsets = [0, 256], sizes = [16, 128], strides = [1, 1]} : vector<16x384xf32> to vector<16x128xf32>
    %cst_217 = arith.constant dense<0.000000e+00> : vector<16x16xf32>
    %474 = tpu.matmul %471, %472, %cst_217 {dimension_numbers = #tpu.dot_dimension_numbers<[1], [1], [0], [0], [0, 0, 1, 0], [], []>} : vector<16x128xf32>, vector<16x128xf32>, vector<16x16xf32> -> vector<16x16xf32>
    %cst_218 = arith.constant 0.0883883461 : f32
    %475 = vector.broadcast %cst_218 : f32 to vector<16x16xf32>
    %476 = arith.mulf %474, %475 : vector<16x16xf32>
    %477 = tpu.iota {dimensions = array<i32: 0>} : vector<16x16xi32>
    %c2_i32 = arith.constant 2 : i32
    %c0_i32_219 = arith.constant 0 : i32
    %478 = arith.cmpi eq, %c2_i32, %c0_i32_219 : i32
    %c1_i32_220 = arith.constant 1 : i32
    %479 = arith.select %478, %c1_i32_220, %c2_i32 : i32
    %480 = vector.broadcast %479 : i32 to vector<16x16xi32>
    %481 = arith.remsi %477, %480 : vector<16x16xi32>
    %c0_i32_221 = arith.constant 0 : i32
    %482 = vector.broadcast %c0_i32_221 : i32 to vector<16x16xi32>
    %483 = arith.cmpi ne, %481, %482 : vector<16x16xi32>
    %c0_i32_222 = arith.constant 0 : i32
    %484 = vector.broadcast %c0_i32_222 : i32 to vector<16x16xi32>
    %485 = arith.cmpi slt, %481, %484 : vector<16x16xi32>
    %c0_i32_223 = arith.constant 0 : i32
    %486 = arith.cmpi slt, %479, %c0_i32_223 : i32
    %487 = vector.broadcast %486 : i1 to vector<16x16xi1>
    %488 = vector.broadcast %487 : vector<16x16xi1> to vector<16x16xi1>
    %489 = arith.xori %485, %488 : vector<16x16xi1>
    %490 = arith.andi %489, %483 : vector<16x16xi1>
    %491 = vector.broadcast %479 : i32 to vector<16x16xi32>
    %492 = arith.addi %481, %491 : vector<16x16xi32>
    %493 = arith.select %490, %492, %481 : vector<16x16xi1>, vector<16x16xi32>
    %494 = tpu.iota {dimensions = array<i32: 1>} : vector<16x16xi32>
    %c2_i32_224 = arith.constant 2 : i32
    %c0_i32_225 = arith.constant 0 : i32
    %495 = arith.cmpi eq, %c2_i32_224, %c0_i32_225 : i32
    %c1_i32_226 = arith.constant 1 : i32
    %496 = arith.select %495, %c1_i32_226, %c2_i32_224 : i32
    %497 = vector.broadcast %496 : i32 to vector<16x16xi32>
    %498 = arith.remsi %494, %497 : vector<16x16xi32>
    %c0_i32_227 = arith.constant 0 : i32
    %499 = vector.broadcast %c0_i32_227 : i32 to vector<16x16xi32>
    %500 = arith.cmpi ne, %498, %499 : vector<16x16xi32>
    %c0_i32_228 = arith.constant 0 : i32
    %501 = vector.broadcast %c0_i32_228 : i32 to vector<16x16xi32>
    %502 = arith.cmpi slt, %498, %501 : vector<16x16xi32>
    %c0_i32_229 = arith.constant 0 : i32
    %503 = arith.cmpi slt, %496, %c0_i32_229 : i32
    %504 = vector.broadcast %503 : i1 to vector<16x16xi1>
    %505 = vector.broadcast %504 : vector<16x16xi1> to vector<16x16xi1>
    %506 = arith.xori %502, %505 : vector<16x16xi1>
    %507 = arith.andi %506, %500 : vector<16x16xi1>
    %508 = vector.broadcast %496 : i32 to vector<16x16xi32>
    %509 = arith.addi %498, %508 : vector<16x16xi32>
    %510 = arith.select %507, %509, %498 : vector<16x16xi1>, vector<16x16xi32>
    %511 = arith.cmpi eq, %493, %510 : vector<16x16xi32>
    %cst_230 = arith.constant -1.000000e+30 : f32
    %512 = vector.broadcast %cst_230 : f32 to vector<16x16xf32>
    %513 = arith.select %511, %476, %512 : vector<16x16xi1>, vector<16x16xf32>
    %cst_231 = arith.constant dense<0xFF800000> : vector<16xf32>
    %514 = vector.multi_reduction <maximumf>, %513, %cst_231 [1] : vector<16x16xf32> to vector<16xf32>
    %515 = vector.shape_cast %514 : vector<16xf32> to vector<16x1xf32>
    %516 = vector.broadcast %515 : vector<16x1xf32> to vector<16x16xf32>
    %517 = arith.subf %513, %516 : vector<16x16xf32>
    %518 = math.exp %517 : vector<16x16xf32>
    %cst_232 = arith.constant dense<0.000000e+00> : vector<16xf32>
    %519 = vector.multi_reduction <add>, %518, %cst_232 [1] : vector<16x16xf32> to vector<16xf32>
    %520 = vector.shape_cast %519 : vector<16xf32> to vector<16x1xf32>
    %521 = tpu.reciprocal %520 {approx = true} : vector<16x1xf32> -> vector<16x1xf32>
    %522 = vector.broadcast %521 : vector<16x1xf32> to vector<16x16xf32>
    %523 = arith.mulf %518, %522 : vector<16x16xf32>
    %cst_233 = arith.constant dense<0.000000e+00> : vector<16x128xf32>
    %524 = tpu.matmul %523, %473, %cst_233 {dimension_numbers = #tpu.dot_dimension_numbers<[1], [0], [0], [1], [0, 0, 1, 1], [], []>} : vector<16x16xf32>, vector<16x128xf32>, vector<16x128xf32> -> vector<16x128xf32>
    %525 = tpu.iota {dimensions = array<i32: 0>} : vector<2x16xi32>
    %526 = tpu.iota {dimensions = array<i32: 1>} : vector<2x16xi32>
    %c2_i32_234 = arith.constant 2 : i32
    %c0_i32_235 = arith.constant 0 : i32
    %527 = arith.cmpi eq, %c2_i32_234, %c0_i32_235 : i32
    %c1_i32_236 = arith.constant 1 : i32
    %528 = arith.select %527, %c1_i32_236, %c2_i32_234 : i32
    %529 = vector.broadcast %528 : i32 to vector<2x16xi32>
    %530 = arith.remsi %526, %529 : vector<2x16xi32>
    %c0_i32_237 = arith.constant 0 : i32
    %531 = vector.broadcast %c0_i32_237 : i32 to vector<2x16xi32>
    %532 = arith.cmpi ne, %530, %531 : vector<2x16xi32>
    %c0_i32_238 = arith.constant 0 : i32
    %533 = vector.broadcast %c0_i32_238 : i32 to vector<2x16xi32>
    %534 = arith.cmpi slt, %530, %533 : vector<2x16xi32>
    %c0_i32_239 = arith.constant 0 : i32
    %535 = arith.cmpi slt, %528, %c0_i32_239 : i32
    %536 = vector.broadcast %535 : i1 to vector<2x16xi1>
    %537 = vector.broadcast %536 : vector<2x16xi1> to vector<2x16xi1>
    %538 = arith.xori %534, %537 : vector<2x16xi1>
    %539 = arith.andi %538, %532 : vector<2x16xi1>
    %540 = vector.broadcast %528 : i32 to vector<2x16xi32>
    %541 = arith.addi %530, %540 : vector<2x16xi32>
    %542 = arith.select %539, %541, %530 : vector<2x16xi1>, vector<2x16xi32>
    %543 = arith.cmpi eq, %542, %525 : vector<2x16xi32>
    %cst_240 = arith.constant 1.250000e-01 : f32
    %cst_241 = arith.constant 0.000000e+00 : f32
    %544 = vector.broadcast %cst_240 : f32 to vector<2x16xf32>
    %545 = vector.broadcast %cst_241 : f32 to vector<2x16xf32>
    %546 = arith.select %543, %544, %545 : vector<2x16xi1>, vector<2x16xf32>
    %cst_242 = arith.constant dense<0.000000e+00> : vector<2x128xf32>
    %547 = tpu.matmul %546, %524, %cst_242 {dimension_numbers = #tpu.dot_dimension_numbers<[1], [0], [0], [1], [0, 0, 1, 1], [], []>} : vector<2x16xf32>, vector<16x128xf32>, vector<2x128xf32> -> vector<2x128xf32>
    %c0_243 = arith.constant 0 : index
    %c0_244 = arith.constant 0 : index
    %548 = vector.load %arg13[%c0_243, %c0_244] : memref<128x64xf32, #tpu.memory_space<vmem>>, vector<128x64xf32>
    %cst_245 = arith.constant dense<0.000000e+00> : vector<2x64xf32>
    %549 = tpu.matmul %547, %548, %cst_245 {dimension_numbers = #tpu.dot_dimension_numbers<[1], [0], [0], [1], [0, 0, 1, 1], [], []>} : vector<2x128xf32>, vector<128x64xf32>, vector<2x64xf32> -> vector<2x64xf32>
    %c0_246 = arith.constant 0 : index
    %c0_247 = arith.constant 0 : index
    %550 = vector.load %arg14[%c0_246, %c0_247] : memref<1x64xf32, #tpu.memory_space<vmem>>, vector<1x64xf32>
    %551 = vector.broadcast %550 : vector<1x64xf32> to vector<2x64xf32>
    %552 = arith.addf %549, %551 : vector<2x64xf32>
    %c0_248 = arith.constant 0 : index
    %c0_249 = arith.constant 0 : index
    %553 = vector.load %arg15[%c0_248, %c0_249] : memref<64x32xf32, #tpu.memory_space<vmem>>, vector<64x32xf32>
    %cst_250 = arith.constant dense<0.000000e+00> : vector<2x32xf32>
    %554 = tpu.matmul %552, %553, %cst_250 {dimension_numbers = #tpu.dot_dimension_numbers<[1], [0], [0], [1], [0, 0, 1, 1], [], []>} : vector<2x64xf32>, vector<64x32xf32>, vector<2x32xf32> -> vector<2x32xf32>
    %c0_251 = arith.constant 0 : index
    %c0_252 = arith.constant 0 : index
    %555 = vector.load %arg16[%c0_251, %c0_252] : memref<1x32xf32, #tpu.memory_space<vmem>>, vector<1x32xf32>
    %556 = vector.broadcast %555 : vector<1x32xf32> to vector<2x32xf32>
    %557 = arith.addf %554, %556 : vector<2x32xf32>
    %558 = vector.extract_strided_slice %557 {offsets = [0, 0], sizes = [2, 16], strides = [1, 1]} : vector<2x32xf32> to vector<2x16xf32>
    %559 = vector.extract_strided_slice %557 {offsets = [0, 16], sizes = [2, 16], strides = [1, 1]} : vector<2x32xf32> to vector<2x16xf32>
    %c0_253 = arith.constant 0 : index
    %c0_254 = arith.constant 0 : index
    %560 = vector.load %arg18[%c0_253, %c0_254] : memref<2x16xf32, #tpu.memory_space<vmem>>, vector<2x16xf32>
    tpu.vector_store %arg18[%c0_253, %c0_254], %558 {strides = array<i32>} : memref<2x16xf32, #tpu.memory_space<vmem>>, vector<2x16xf32>,
    %c0_255 = arith.constant 0 : index
    %c0_256 = arith.constant 0 : index
    %561 = vector.load %arg19[%c0_255, %c0_256] : memref<2x16xf32, #tpu.memory_space<vmem>>, vector<2x16xf32>
    tpu.vector_store %arg19[%c0_255, %c0_256], %559 {strides = array<i32>} : memref<2x16xf32, #tpu.memory_space<vmem>>, vector<2x16xf32>,
    %c0_257 = arith.constant 0 : index
    %c0_258 = arith.constant 0 : index
    %562 = vector.load %arg17[%c0_257, %c0_258] : memref<2x16xf32, #tpu.memory_space<vmem>>, vector<2x16xf32>
    %cst_259 = arith.constant 5.000000e-01 : f32
    %563 = vector.broadcast %cst_259 : f32 to vector<2x16xf32>
    %564 = arith.mulf %563, %559 : vector<2x16xf32>
    %565 = math.exp %564 : vector<2x16xf32>
    %566 = arith.mulf %562, %565 : vector<2x16xf32>
    %567 = arith.addf %558, %566 : vector<2x16xf32>
    %c0_260 = arith.constant 0 : index
    %c0_261 = arith.constant 0 : index
    %568 = vector.load %arg20[%c0_260, %c0_261] : memref<2x16xf32, #tpu.memory_space<vmem>>, vector<2x16xf32>
    tpu.vector_store %arg20[%c0_260, %c0_261], %567 {strides = array<i32>} : memref<2x16xf32, #tpu.memory_space<vmem>>, vector<2x16xf32>,
    return
  }
}

</mosaic_0001>

<llo_original>
// kernel: motion_encoder_forward.1
$region0: #{motion_encoder_forward.1}
  #allocation0 [shape = 'u32[]', space=smem, size = 0x4, offset = 0x4, fixed_abs, tag = 'smem constant byte address 0x4 - core index']
  #allocation1 [shape = 'u32[144,128]{1,0:T(1,128)}', space=vmem, size = 0x12000, scoped, tag = 'internal scratch']
  #allocation2 [shape = 'f32[16,256]{1,0:T(8,128)}', space=vmem, size = 0x4000, scoped, tag = 'scratch operand']
  #allocation3 [shape = 'f32[16,64]{1,0:T(8,128)}', space=vmem, size = 0x2000, scoped, tag = 'scratch operand']
  #allocation4 [shape = 'f32[16,64]{1,0:T(8,128)}', space=vmem, size = 0x2000, scoped, tag = 'scratch operand']
  %s0 = inlined_call_operand.vmem [shape: f32[16,6], index: 0, kind: input, shape index: {}]
  %s1 = inlined_call_operand.vmem [shape: f32[3,6,32], index: 1, kind: input, shape index: {}]
  %s2 = inlined_call_operand.vmem [shape: f32[1,32], index: 2, kind: input, shape index: {}]
  %s3 = inlined_call_operand.hbm [shape: f32[3,32,32], index: 3, kind: input, shape index: {}]
  %s4 = inlined_call_operand.hbm [shape: f32[1,32], index: 4, kind: input, shape index: {}]
  %s5 = inlined_call_operand.hbm [shape: f32[32,256], index: 5, kind: input, shape index: {}]
  %s6 = inlined_call_operand.vmem [shape: f32[64,256], index: 6, kind: input, shape index: {}]
  %s7 = inlined_call_operand.hbm [shape: f32[1,256], index: 7, kind: input, shape index: {}]
  %s8 = inlined_call_operand.hbm [shape: f32[64,256], index: 8, kind: input, shape index: {}]
  %s9 = inlined_call_operand.hbm [shape: f32[64,256], index: 9, kind: input, shape index: {}]
  %s10 = inlined_call_operand.hbm [shape: f32[1,256], index: 10, kind: input, shape index: {}]
  %s11 = inlined_call_operand.vmem [shape: f32[64,384], index: 11, kind: input, shape index: {}]
  %s12 = inlined_call_operand.vmem [shape: f32[1,384], index: 12, kind: input, shape index: {}]
  %s13 = inlined_call_operand.vmem [shape: f32[128,64], index: 13, kind: input, shape index: {}]
  %s14 = inlined_call_operand.hbm [shape: f32[1,64], index: 14, kind: input, shape index: {}]
  %s15 = inlined_call_operand.vmem [shape: f32[64,32], index: 15, kind: input, shape index: {}]
  %s16 = inlined_call_operand.hbm [shape: f32[1,32], index: 16, kind: input, shape index: {}]
  %s17 = inlined_call_operand.vmem [shape: f32[2,16], index: 17, kind: input, shape index: {}]
  %s18 = inlined_call_operand.hbm [shape: f32[2,16], index: 18, kind: output, shape index: {0}]
  %s19 = inlined_call_operand.hbm [shape: f32[2,16], index: 19, kind: output, shape index: {1}]
  %s20 = inlined_call_operand.hbm [shape: f32[2,16], index: 20, kind: output, shape index: {2}]
  %21 = xla_tuple %s18, %s19, %s20
  %s22 = sld [smem:[#allocation0]]
  $region134: #{motion_encoder_forward.1} parent=0
    _
  %s24 = ssub.s32 1, %s22
  %s25 = scalar_select 0, %s24, %s22
  $region1: #{motion_encoder_forward.1} parent=0
    #allocation5 [shape = 'u8[49152]{0}', space=vmem, size = 0xc000, scoped, tag = 'input window, operand 3, single buffered']
    #allocation6 [shape = 's32[1]{0}', space=sflag, size = 0x4, scoped, tag = 'scoped memory for motion_encoder_forward.1']
    #allocation7 [shape = 's32[1]{0}', space=sflag, size = 0x4, scoped, tag = 'scoped memory for motion_encoder_forward.1']
    #allocation8 [shape = 'u8[512]{0}', space=vmem, size = 0x400, scoped, tag = 'input window, operand 4, single buffered']
    #allocation9 [shape = 's32[1]{0}', space=sflag, size = 0x4, scoped, tag = 'scoped memory for motion_encoder_forward.1']
    #allocation10 [shape = 'u8[32768]{0}', space=vmem, size = 0x8000, scoped, tag = 'input window, operand 5, single buffered']
    #allocation11 [shape = 'u8[1024]{0}', space=vmem, size = 0x400, scoped, tag = 'input window, operand 7, single buffered']
    #allocation12 [shape = 's32[1]{0}', space=sflag, size = 0x4, scoped, tag = 'scoped memory for motion_encoder_forward.1']
    #allocation13 [shape = 'u8[65536]{0}', space=vmem, size = 0x10000, scoped, tag = 'input window, operand 8, single buffered']
    #allocation14 [shape = 'u8[65536]{0}', space=vmem, size = 0x10000, scoped, tag = 'input window, operand 9, single buffered']
    #allocation15 [shape = 's32[1]{0}', space=sflag, size = 0x4, scoped, tag = 'scoped memory for motion_encoder_forward.1']
    #allocation16 [shape = 'u8[1024]{0}', space=vmem, size = 0x400, scoped, tag = 'input window, operand 10, single buffered']
    #allocation17 [shape = 'u8[512]{0}', space=vmem, size = 0x400, scoped, tag = 'input window, operand 14, single buffered']
    #allocation18 [shape = 's32[1]{0}', space=sflag, size = 0x4, scoped, tag = 'scoped memory for motion_encoder_forward.1']
    #allocation19 [shape = 'u8[512]{0}', space=vmem, size = 0x400, scoped, tag = 'input window, operand 16, single buffered']
    #allocation20 [shape = 'u8[1024]{0}', space=vmem, size = 0x400, scoped, tag = 'output window, operand 0, single buffered']
    #allocation21 [shape = 'u8[1024]{0}', space=vmem, size = 0x400, scoped, tag = 'output window, operand 1, single buffered']
    #allocation22 [shape = 's32[1]{0}', space=sflag, size = 0x4, scoped, tag = 'scoped memory for motion_encoder_forward.1']
    #allocation23 [shape = 'u8[1024]{0}', space=vmem, size = 0x400, scoped, tag = 'output window, operand 2, single buffered']
    %26 = vsyncpa [#allocation6], 0
    %27 = vsyncpa [#allocation9], 0
    %28 = vsyncpa [#allocation12], 0
    %29 = vsyncpa [#allocation15], 0
    %30 = vsyncpa [#allocation18], 0
    %31 = vsyncpa [#allocation7], 0
    %32 = vsyncpa [#allocation22], 0
    // Predicated region
    $region2: #{motion_encoder_forward.1} parent=1 // pred_check
      _
    $region3: #{motion_encoder_forward.1} parent=1 // pred_check_branch
      %34 = sbr.rel (0) target = $region5
    $region4: #{motion_encoder_forward.1} parent=1 // pred_region
      _
    $region5: #{motion_encoder_forward.1} parent=1 // pred_fallthru
      _
    // Predicated region
    $region6: #{motion_encoder_forward.1} parent=1 // pred_check
      _
    $region7: #{motion_encoder_forward.1} parent=1 // pred_check_branch
      %36 = sbr.rel (0) target = $region9
    $region8: #{motion_encoder_forward.1} parent=1 // pred_region
      _
    $region9: #{motion_encoder_forward.1} parent=1 // pred_fallthru
      _
    // Predicated region
    $region10: #{motion_encoder_forward.1} parent=1 // pred_check
      _
    $region11: #{motion_encoder_forward.1} parent=1 // pred_check_branch
      %38 = sbr.rel (0) target = $region13
    $region12: #{motion_encoder_forward.1} parent=1 // pred_region
      _
    $region13: #{motion_encoder_forward.1} parent=1 // pred_fallthru
      _
    // Predicated region
    $region14: #{motion_encoder_forward.1} parent=1 // pred_check
      _
    $region15: #{motion_encoder_forward.1} parent=1 // pred_check_branch
      %40 = sbr.rel (0) target = $region17
    $region16: #{motion_encoder_forward.1} parent=1 // pred_region
      %s42 = ssub.s32 1536, 1536
      %43 = vsyncadd [#allocation6], %s42
      %s44 = sshll.u32 [#allocation5], 4
      %s45 = int_to_ptr.vmem [resolvable:$true] %s44
      %50 = dma.hbm_to_vmem [thread:$0]  %s3, 1536, %s45, [#allocation6], 128, 128, 8
    $region17: #{motion_encoder_forward.1} parent=1 // pred_fallthru
      _
    // Predicated region
    $region18: #{motion_encoder_forward.1} parent=1 // pred_check
      _
    $region19: #{motion_encoder_forward.1} parent=1 // pred_check_branch
      %52 = sbr.rel (0) target = $region21
    $region20: #{motion_encoder_forward.1} parent=1 // pred_region
      %s54 = ssub.s32 16, 16
      %55 = vsyncadd [#allocation9], %s54
      %s57 = sshll.u32 [#allocation8], 4
      %s58 = int_to_ptr.vmem [resolvable:$true] %s57
      %60 = dma.hbm_to_vmem [thread:$0]  %s4, 16, %s58, [#allocation9]
    $region21: #{motion_encoder_forward.1} parent=1 // pred_fallthru
      _
    // Predicated region
    $region22: #{motion_encoder_forward.1} parent=1 // pred_check
      _
    $region23: #{motion_encoder_forward.1} parent=1 // pred_check_branch
      %62 = sbr.rel (0) target = $region25
    $region24: #{motion_encoder_forward.1} parent=1 // pred_region
      %s64 = ssub.s32 1024, 1024
      %65 = vsyncadd [#allocation9], %s64
      %s66 = sshll.u32 [#allocation10], 4
      %s67 = int_to_ptr.vmem [resolvable:$true] %s66
      %72 = dma.hbm_to_vmem [thread:$0]  %s5, 1024, %s67, [#allocation9], 256, 256, 16
    $region25: #{motion_encoder_forward.1} parent=1 // pred_fallthru
      _
    // Predicated region
    $region26: #{motion_encoder_forward.1} parent=1 // pred_check
      _
    $region27: #{motion_encoder_forward.1} parent=1 // pred_check_branch
      %74 = sbr.rel (0) target = $region29
    $region28: #{motion_encoder_forward.1} parent=1 // pred_region
      _
    $region29: #{motion_encoder_forward.1} parent=1 // pred_fallthru
      _
    // Predicated region
    $region30: #{motion_encoder_forward.1} parent=1 // pred_check
      _
    $region31: #{motion_encoder_forward.1} parent=1 // pred_check_branch
      %76 = sbr.rel (0) target = $region33
    $region32: #{motion_encoder_forward.1} parent=1 // pred_region
      %s78 = ssub.s32 32, 32
      %79 = vsyncadd [#allocation12], %s78
      %s81 = sshll.u32 [#allocation11], 4
      %s82 = int_to_ptr.vmem [resolvable:$true] %s81
      %84 = dma.hbm_to_vmem [thread:$0]  %s7, 32, %s82, [#allocation12]
    $region33: #{motion_encoder_forward.1} parent=1 // pred_fallthru
      _
    // Predicated region
    $region34: #{motion_encoder_forward.1} parent=1 // pred_check
      _
    $region35: #{motion_encoder_forward.1} parent=1 // pred_check_branch
      %86 = sbr.rel (0) target = $region37
    $region36: #{motion_encoder_forward.1} parent=1 // pred_region
      %s88 = ssub.s32 2048, 2048
      %89 = vsyncadd [#allocation12], %s88
      %s90 = sshll.u32 [#allocation13], 4
      %s91 = int_to_ptr.vmem [resolvable:$true] %s90
      %96 = dma.hbm_to_vmem [thread:$0]  %s8, 2048, %s91, [#allocation12], 256, 256, 16
    $region37: #{motion_encoder_forward.1} parent=1 // pred_fallthru
      _
    // Predicated region
    $region38: #{motion_encoder_forward.1} parent=1 // pred_check
      _
    $region39: #{motion_encoder_forward.1} parent=1 // pred_check_branch
      %98 = sbr.rel (0) target = $region41
    $region40: #{motion_encoder_forward.1} parent=1 // pred_region
      %s100 = ssub.s32 2048, 2048
      %101 = vsyncadd [#allocation15], %s100
      %s102 = sshll.u32 [#allocation14], 4
      %s103 = int_to_ptr.vmem [resolvable:$true] %s102
      %108 = dma.hbm_to_vmem [thread:$0]  %s9, 2048, %s103, [#allocation15], 256, 256, 16
    $region41: #{motion_encoder_forward.1} parent=1 // pred_fallthru
      _
    // Predicated region
    $region42: #{motion_encoder_forward.1} parent=1 // pred_check
      _
    $region43: #{motion_encoder_forward.1} parent=1 // pred_check_branch
      %110 = sbr.rel (0) target = $region45
    $region44: #{motion_encoder_forward.1} parent=1 // pred_region
      %s112 = ssub.s32 32, 32
      %113 = vsyncadd [#allocation15], %s112
      %s115 = sshll.u32 [#allocation16], 4
      %s116 = int_to_ptr.vmem [resolvable:$true] %s115
      %118 = dma.hbm_to_vmem [thread:$0]  %s10, 32, %s116, [#allocation15]
    $region45: #{motion_encoder_forward.1} parent=1 // pred_fallthru
      _
    // Predicated region
    $region46: #{motion_encoder_forward.1} parent=1 // pred_check
      _
    $region47: #{motion_encoder_forward.1} parent=1 // pred_check_branch
      %120 = sbr.rel (0) target = $region49
    $region48: #{motion_encoder_forward.1} parent=1 // pred_region
      _
    $region49: #{motion_encoder_forward.1} parent=1 // pred_fallthru
      _
    // Predicated region
    $region50: #{motion_encoder_forward.1} parent=1 // pred_check
      _
    $region51: #{motion_encoder_forward.1} parent=1 // pred_check_branch
      %122 = sbr.rel (0) target = $region53
    $region52: #{motion_encoder_forward.1} parent=1 // pred_region
      _
    $region53: #{motion_encoder_forward.1} parent=1 // pred_fallthru
      _
    // Predicated region
    $region54: #{motion_encoder_forward.1} parent=1 // pred_check
      _
    $region55: #{motion_encoder_forward.1} parent=1 // pred_check_branch
      %124 = sbr.rel (0) target = $region57
    $region56: #{motion_encoder_forward.1} parent=1 // pred_region
      _
    $region57: #{motion_encoder_forward.1} parent=1 // pred_fallthru
      _
    // Predicated region
    $region58: #{motion_encoder_forward.1} parent=1 // pred_check
      _
    $region59: #{motion_encoder_forward.1} parent=1 // pred_check_branch
      %126 = sbr.rel (0) target = $region61
    $region60: #{motion_encoder_forward.1} parent=1 // pred_region
      %s128 = ssub.s32 16, 16
      %129 = vsyncadd [#allocation18], %s128
      %s131 = sshll.u32 [#allocation17], 4
      %s132 = int_to_ptr.vmem [resolvable:$true] %s131
      %134 = dma.hbm_to_vmem [thread:$0]  %s14, 16, %s132, [#allocation18]
    $region61: #{motion_encoder_forward.1} parent=1 // pred_fallthru
      _
    // Predicated region
    $region62: #{motion_encoder_forward.1} parent=1 // pred_check
      _
    $region63: #{motion_encoder_forward.1} parent=1 // pred_check_branch
      %136 = sbr.rel (0) target = $region65
    $region64: #{motion_encoder_forward.1} parent=1 // pred_region
      _
    $region65: #{motion_encoder_forward.1} parent=1 // pred_fallthru
      _
    // Predicated region
    $region66: #{motion_encoder_forward.1} parent=1 // pred_check
      _
    $region67: #{motion_encoder_forward.1} parent=1 // pred_check_branch
      %138 = sbr.rel (0) target = $region69
    $region68: #{motion_encoder_forward.1} parent=1 // pred_region
      %s140 = ssub.s32 16, 16
      %141 = vsyncadd [#allocation18], %s140
      %s143 = sshll.u32 [#allocation19], 4
      %s144 = int_to_ptr.vmem [resolvable:$true] %s143
      %146 = dma.hbm_to_vmem [thread:$0]  %s16, 16, %s144, [#allocation18]
    $region69: #{motion_encoder_forward.1} parent=1 // pred_fallthru
      _
    // Predicated region
    $region70: #{motion_encoder_forward.1} parent=1 // pred_check
      _
    $region71: #{motion_encoder_forward.1} parent=1 // pred_check_branch
      %148 = sbr.rel (0) target = $region73
    $region72: #{motion_encoder_forward.1} parent=1 // pred_region
      _
    $region73: #{motion_encoder_forward.1} parent=1 // pred_fallthru
      _
    // Predicated region
    $region74: #{motion_encoder_forward.1} parent=1 // pred_check
      _
    $region75: #{motion_encoder_forward.1} parent=1 // pred_check_branch
      %150 = sbr.rel (0) target = $region77
    $region76: #{motion_encoder_forward.1} parent=1 // pred_region
      %151 = dma.done [#allocation6], 1536
    $region77: #{motion_encoder_forward.1} parent=1 // pred_fallthru
      _
    // Predicated region
    $region78: #{motion_encoder_forward.1} parent=1 // pred_check
      _
    $region79: #{motion_encoder_forward.1} parent=1 // pred_check_branch
      %153 = sbr.rel (0) target = $region81
    $region80: #{motion_encoder_forward.1} parent=1 // pred_region
      %154 = dma.done [#allocation9], 16
    $region81: #{motion_encoder_forward.1} parent=1 // pred_fallthru
      _
    // Predicated region
    $region82: #{motion_encoder_forward.1} parent=1 // pred_check
      _
    $region83: #{motion_encoder_forward.1} parent=1 // pred_check_branch
      %156 = sbr.rel (0) target = $region85
    $region84: #{motion_encoder_forward.1} parent=1 // pred_region
      %157 = dma.done [#allocation9], 1024
    $region85: #{motion_encoder_forward.1} parent=1 // pred_fallthru
      _
    // Predicated region
    $region86: #{motion_encoder_forward.1} parent=1 // pred_check
      _
    $region87: #{motion_encoder_forward.1} parent=1 // pred_check_branch
      %159 = sbr.rel (0) target = $region89
    $region88: #{motion_encoder_forward.1} parent=1 // pred_region
      %160 = dma.done [#allocation12], 32
    $region89: #{motion_encoder_forward.1} parent=1 // pred_fallthru
      _
    // Predicated region
    $region90: #{motion_encoder_forward.1} parent=1 // pred_check
      _
    $region91: #{motion_encoder_forward.1} parent=1 // pred_check_branch
      %162 = sbr.rel (0) target = $region93
    $region92: #{motion_encoder_forward.1} parent=1 // pred_region
      %163 = dma.done [#allocation12], 2048
    $region93: #{motion_encoder_forward.1} parent=1 // pred_fallthru
      _
    // Predicated region
    $region94: #{motion_encoder_forward.1} parent=1 // pred_check
      _
    $region95: #{motion_encoder_forward.1} parent=1 // pred_check_branch
      %165 = sbr.rel (0) target = $region97
    $region96: #{motion_encoder_forward.1} parent=1 // pred_region
      %166 = dma.done [#allocation15], 2048
    $region97: #{motion_encoder_forward.1} parent=1 // pred_fallthru
      _
    // Predicated region
    $region98: #{motion_encoder_forward.1} parent=1 // pred_check
      _
    $region99: #{motion_encoder_forward.1} parent=1 // pred_check_branch
      %168 = sbr.rel (0) target = $region101
    $region100: #{motion_encoder_forward.1} parent=1 // pred_region
      %169 = dma.done [#allocation15], 32
    $region101: #{motion_encoder_forward.1} parent=1 // pred_fallthru
      _
    // Predicated region
    $region102: #{motion_encoder_forward.1} parent=1 // pred_check
      _
    $region103: #{motion_encoder_forward.1} parent=1 // pred_check_branch
      %171 = sbr.rel (0) target = $region105
    $region104: #{motion_encoder_forward.1} parent=1 // pred_region
      %172 = dma.done [#allocation18], 16
    $region105: #{motion_encoder_forward.1} parent=1 // pred_fallthru
      _
    // Predicated region
    $region106: #{motion_encoder_forward.1} parent=1 // pred_check
      _
    $region107: #{motion_encoder_forward.1} parent=1 // pred_check_branch
      %174 = sbr.rel (0) target = $region109
    $region108: #{motion_encoder_forward.1} parent=1 // pred_region
      %175 = dma.done [#allocation18], 16
    $region109: #{motion_encoder_forward.1} parent=1 // pred_fallthru
      _
    %v176 = vld [vmem:[%s0] sm:$0xff]
    %v177 = vld [vmem:[%s0 + $0x8] sm:$0xff]
    %vm180 = vcmask 1041408
    %v181 = vrot.slane %v176, 6
    %v182 = vrot.slane %v177, 6
    %v183 = vsel %vm180, %v181, %v182
    %v185 = vsel %vm180, 0.0, %v181
    %vm186 = vcmask 1045504
    %v187 = vrot.slane %v176, 2
    %v188 = vrot.slane %v177, 2
    %v189 = vsel %vm186, %v187, %v188
    %v191 = vsel %vm186, %v188, 0.0
    %v192 = vld [vmem:[%s1] sm:$0x3f]
    %s193 = scalar_lea.vmem %s1, 8
    %v194 = vld [vmem:[%s193] sm:$0x3f]
    %vm195 = vcmask 48128
    %v196 = vsel %vm195, %v176, 0
    %v198 = vsel %vm195, %v177, 0
    %v201 = vsel %vm186, %v194, 0
    %203 = vmatprep.subr.mxu0 0.0
    %204 = vmatpush1.msra.mxu0 0.0
    %205 = vmatprep.subr.mxu0 0.0
    %206 = vmatpush1.msra.mxu0 0.0
    %207 = vmatprep.subr.mxu0 0.0
    %208 = vmatpush1.msra.mxu0 0.0
    %209 = vmatprep.subr.mxu0 0.0
    %210 = vmatpush1.msra.mxu0 0.0
    %211 = vmatprep.subr.mxu0 0.0
    %212 = vmatpush1.msra.mxu0 0.0
    %213 = vmatprep.subr.mxu0 0.0
    %214 = vmatpush1.msra.mxu0 0.0
    %215 = vmatprep.subr.mxu0 0.0
    %216 = vmatpush1.msra.mxu0 0.0
    %217 = vmatprep.subr.mxu0 0.0
    %218 = vmatpush1.msra.mxu0 0.0
    %219 = vmatprep.subr.mxu0 0.0
    %220 = vmatpush1.msra.mxu0 0.0
    %221 = vmatprep.subr.mxu0 0.0
    %222 = vmatpush1.msra.mxu0 0.0
    %223 = vmatprep.subr.mxu0 0.0
    %224 = vmatpush1.msra.mxu0 0.0
    %225 = vmatprep.subr.mxu0 0.0
    %226 = vmatpush1.msra.mxu0 0.0
    %227 = vmatprep.subr.mxu0 0.0
    %228 = vmatpush1.msra.mxu0 0.0
    %229 = vmatprep.subr.mxu0 0.0
    %230 = vmatpush1.msra.mxu0 0.0
    %231 = vmatprep.subr.mxu0 0.0
    %232 = vmatpush1.msra.mxu0 0.0
    %233 = vmatprep.subr.mxu0 0.0
    %234 = vmatpush1.msra.mxu0 %v201
    %235 = vmatprep.subr.mxu0 0.0
    %236 = vmatpush2.msra.mxu0 0.0
    %237 = vmatprep.subr.mxu0 0.0
    %238 = vmatpush2.msra.mxu0 0.0
    %239 = vmatprep.subr.mxu0 0.0
    %240 = vmatpush2.msra.mxu0 0.0
    %241 = vmatprep.subr.mxu0 0.0
    %242 = vmatpush2.msra.mxu0 0.0
    %243 = vmatprep.subr.mxu0 0.0
    %244 = vmatpush2.msra.mxu0 0.0
    %245 = vmatprep.subr.mxu0 0.0
    %246 = vmatpush2.msra.mxu0 0.0
    %247 = vmatprep.subr.mxu0 0.0
    %248 = vmatpush2.msra.mxu0 0.0
    %249 = vmatprep.subr.mxu0 0.0
    %250 = vmatpush2.msra.mxu0 0.0
    %251 = vmatprep.subr.mxu0 0.0
    %252 = vmatpush2.msra.mxu0 0.0
    %253 = vmatprep.subr.mxu0 0.0
    %254 = vmatpush2.msra.mxu0 0.0
    %255 = vmatprep.subr.mxu0 0.0
    %256 = vmatpush2.msra.mxu0 0.0
    %257 = vmatprep.subr.mxu0 0.0
    %258 = vmatpush2.msra.mxu0 0.0
    %259 = vmatprep.subr.mxu0 0.0
    %260 = vmatpush2.msra.mxu0 0.0
    %261 = vmatprep.subr.mxu0 0.0
    %262 = vmatpush2.msra.mxu0 0.0
    %263 = vmatprep.subr.mxu0 0.0
    %264 = vmatpush2.msra.mxu0 0.0
    %265 = vmatprep.subr.mxu0 0.0
    %266 = vmatpush2.msra.mxu0 0.0
    %267 = vmatprep.mubr.f32.mxu0 0.0
    %268 = vmatmul.mubr.f32.gmra.mxu0 %v196
    %v269 = vpop.f32.mrf.mxu0
    %v270 = vadd.f32 0.0, %v269
    %v271 = vpop.f32.mrf.mxu0
    %272 = vmatprep.mubr.f32.mxu0 0.0
    %273 = vmatmul.mubr.f32.gmra.mxu0 %v198
    %v274 = vpop.f32.mrf.mxu0
    %v275 = vadd.f32 0.0, %v274
    %v276 = vpop.f32.mrf.mxu0
    %277 = vdwg.mxu0
    %v279 = vsel %vm195, %v185, 0
    %v281 = vsel %vm195, %v183, 0
    %v284 = vsel %vm186, %v192, 0
    %286 = vmatprep.subr.mxu0 0.0
    %287 = vmatpush1.msra.mxu0 0.0
    %288 = vmatprep.subr.mxu0 0.0
    %289 = vmatpush1.msra.mxu0 0.0
    %290 = vmatprep.subr.mxu0 0.0
    %291 = vmatpush1.msra.mxu0 0.0
    %292 = vmatprep.subr.mxu0 0.0
    %293 = vmatpush1.msra.mxu0 0.0
    %294 = vmatprep.subr.mxu0 0.0
    %295 = vmatpush1.msra.mxu0 0.0
    %296 = vmatprep.subr.mxu0 0.0
    %297 = vmatpush1.msra.mxu0 0.0
    %298 = vmatprep.subr.mxu0 0.0
    %299 = vmatpush1.msra.mxu0 0.0
    %300 = vmatprep.subr.mxu0 0.0
    %301 = vmatpush1.msra.mxu0 0.0
    %302 = vmatprep.subr.mxu0 0.0
    %303 = vmatpush1.msra.mxu0 0.0
    %304 = vmatprep.subr.mxu0 0.0
    %305 = vmatpush1.msra.mxu0 0.0
    %306 = vmatprep.subr.mxu0 0.0
    %307 = vmatpush1.msra.mxu0 0.0
    %308 = vmatprep.subr.mxu0 0.0
    %309 = vmatpush1.msra.mxu0 0.0
    %310 = vmatprep.subr.mxu0 0.0
    %311 = vmatpush1.msra.mxu0 0.0
    %312 = vmatprep.subr.mxu0 0.0
    %313 = vmatpush1.msra.mxu0 0.0
    %314 = vmatprep.subr.mxu0 0.0
    %315 = vmatpush1.msra.mxu0 0.0
    %316 = vmatprep.subr.mxu0 0.0
    %317 = vmatpush1.msra.mxu0 %v284
    %318 = vmatprep.subr.mxu0 0.0
    %319 = vmatpush2.msra.mxu0 0.0
    %320 = vmatprep.subr.mxu0 0.0
    %321 = vmatpush2.msra.mxu0 0.0
    %322 = vmatprep.subr.mxu0 0.0
    %323 = vmatpush2.msra.mxu0 0.0
    %324 = vmatprep.subr.mxu0 0.0
    %325 = vmatpush2.msra.mxu0 0.0
    %326 = vmatprep.subr.mxu0 0.0
    %327 = vmatpush2.msra.mxu0 0.0
    %328 = vmatprep.subr.mxu0 0.0
    %329 = vmatpush2.msra.mxu0 0.0
    %330 = vmatprep.subr.mxu0 0.0
    %331 = vmatpush2.msra.mxu0 0.0
    %332 = vmatprep.subr.mxu0 0.0
    %333 = vmatpush2.msra.mxu0 0.0
    %334 = vmatprep.subr.mxu0 0.0
    %335 = vmatpush2.msra.mxu0 0.0
    %336 = vmatprep.subr.mxu0 0.0
    %337 = vmatpush2.msra.mxu0 0.0
    %338 = vmatprep.subr.mxu0 0.0
    %339 = vmatpush2.msra.mxu0 0.0
    %340 = vmatprep.subr.mxu0 0.0
    %341 = vmatpush2.msra.mxu0 0.0
    %342 = vmatprep.subr.mxu0 0.0
    %343 = vmatpush2.msra.mxu0 0.0
    %344 = vmatprep.subr.mxu0 0.0
    %345 = vmatpush2.msra.mxu0 0.0
    %346 = vmatprep.subr.mxu0 0.0
    %347 = vmatpush2.msra.mxu0 0.0
    %348 = vmatprep.subr.mxu0 0.0
    %349 = vmatpush2.msra.mxu0 0.0
    %350 = vmatprep.mubr.f32.mxu0 0.0
    %351 = vmatmul.mubr.f32.gmra.mxu0 %v279
    %v352 = vpop.f32.mrf.mxu0
    %v353 = vadd.f32 %v270, %v352
    %v354 = vpop.f32.mrf.mxu0
    %355 = vmatprep.mubr.f32.mxu0 0.0
    %356 = vmatmul.mubr.f32.gmra.mxu0 %v281
    %v357 = vpop.f32.mrf.mxu0
    %v358 = vadd.f32 %v275, %v357
    %v359 = vpop.f32.mrf.mxu0
    %360 = vdwg.mxu0
    %s361 = scalar_lea.vmem %s1, 16
    %v362 = vld [vmem:[%s361] sm:$0x3f]
    %v363 = vsel %vm195, %v189, 0
    %v366 = vsel %vm195, %v191, 0
    %v369 = vsel %vm186, %v362, 0
    %371 = vmatprep.subr.mxu0 0.0
    %372 = vmatpush1.msra.mxu0 0.0
    %373 = vmatprep.subr.mxu0 0.0
    %374 = vmatpush1.msra.mxu0 0.0
    %375 = vmatprep.subr.mxu0 0.0
    %376 = vmatpush1.msra.mxu0 0.0
    %377 = vmatprep.subr.mxu0 0.0
    %378 = vmatpush1.msra.mxu0 0.0
    %379 = vmatprep.subr.mxu0 0.0
    %380 = vmatpush1.msra.mxu0 0.0
    %381 = vmatprep.subr.mxu0 0.0
    %382 = vmatpush1.msra.mxu0 0.0
    %383 = vmatprep.subr.mxu0 0.0
    %384 = vmatpush1.msra.mxu0 0.0
    %385 = vmatprep.subr.mxu0 0.0
    %386 = vmatpush1.msra.mxu0 0.0
    %387 = vmatprep.subr.mxu0 0.0
    %388 = vmatpush1.msra.mxu0 0.0
    %389 = vmatprep.subr.mxu0 0.0
    %390 = vmatpush1.msra.mxu0 0.0
    %391 = vmatprep.subr.mxu0 0.0
    %392 = vmatpush1.msra.mxu0 0.0
    %393 = vmatprep.subr.mxu0 0.0
    %394 = vmatpush1.msra.mxu0 0.0
    %395 = vmatprep.subr.mxu0 0.0
    %396 = vmatpush1.msra.mxu0 0.0
    %397 = vmatprep.subr.mxu0 0.0
    %398 = vmatpush1.msra.mxu0 0.0
    %399 = vmatprep.subr.mxu0 0.0
    %400 = vmatpush1.msra.mxu0 0.0
    %401 = vmatprep.subr.mxu0 0.0
    %402 = vmatpush1.msra.mxu0 %v369
    %403 = vmatprep.subr.mxu0 0.0
    %404 = vmatpush2.msra.mxu0 0.0
    %405 = vmatprep.subr.mxu0 0.0
    %406 = vmatpush2.msra.mxu0 0.0
    %407 = vmatprep.subr.mxu0 0.0
    %408 = vmatpush2.msra.mxu0 0.0
    %409 = vmatprep.subr.mxu0 0.0
    %410 = vmatpush2.msra.mxu0 0.0
    %411 = vmatprep.subr.mxu0 0.0
    %412 = vmatpush2.msra.mxu0 0.0
    %413 = vmatprep.subr.mxu0 0.0
    %414 = vmatpush2.msra.mxu0 0.0
    %415 = vmatprep.subr.mxu0 0.0
    %416 = vmatpush2.msra.mxu0 0.0
    %417 = vmatprep.subr.mxu0 0.0
    %418 = vmatpush2.msra.mxu0 0.0
    %419 = vmatprep.subr.mxu0 0.0
    %420 = vmatpush2.msra.mxu0 0.0
    %421 = vmatprep.subr.mxu0 0.0
    %422 = vmatpush2.msra.mxu0 0.0
    %423 = vmatprep.subr.mxu0 0.0
    %424 = vmatpush2.msra.mxu0 0.0
    %425 = vmatprep.subr.mxu0 0.0
    %426 = vmatpush2.msra.mxu0 0.0
    %427 = vmatprep.subr.mxu0 0.0
    %428 = vmatpush2.msra.mxu0 0.0
    %429 = vmatprep.subr.mxu0 0.0
    %430 = vmatpush2.msra.mxu0 0.0
    %431 = vmatprep.subr.mxu0 0.0
    %432 = vmatpush2.msra.mxu0 0.0
    %433 = vmatprep.subr.mxu0 0.0
    %434 = vmatpush2.msra.mxu0 0.0
    %435 = vmatprep.mubr.f32.mxu0 0.0
    %436 = vmatmul.mubr.f32.gmra.mxu0 %v363
    %v437 = vpop.f32.mrf.mxu0
    %v438 = vadd.f32 0.0, %v437
    %v439 = vpop.f32.mrf.mxu0
    %440 = vmatprep.mubr.f32.mxu0 0.0
    %441 = vmatmul.mubr.f32.gmra.mxu0 %v366
    %v442 = vpop.f32.mrf.mxu0
    %v443 = vadd.f32 0.0, %v442
    %v444 = vpop.f32.mrf.mxu0
    %445 = vdwg.mxu0
    %v446 = vadd.f32 %v353, %v438
    %v447 = vadd.f32 %v358, %v443
    %v448 = vld [vmem:[%s2] sm:$0x1]
    %v450 = vlaneseq
    %v451 = vshrl.u32 %v450, 7
    %v452 = vsub.s32 0, %v451
    %v453 = vrot.slane %v448, %v452
    %v455 = vadd.f32 %v446, %v453
    %v456 = vadd.f32 %v447, %v453
    %v457 = vmax.f32 %v455, 0.0
    %v458 = vmax.f32 %v456, 0.0
    %v461 = vrot.slane %v457, 6
    %v462 = vrot.slane %v458, 6
    %v463 = vsel %vm180, %v461, %v462
    %v465 = vsel %vm180, 0.0, %v461
    %v466 = vrot.slane %v457, 2
    %v467 = vrot.slane %v458, 2
    %v468 = vsel %vm186, %v466, %v467
    %v470 = vsel %vm186, %v467, 0.0
    %v471 = vld [vmem:[#allocation5] sm:$0xff]
    %v472 = vld [vmem:[#allocation5 + $0x8] sm:$0xff]
    %v473 = vld [vmem:[#allocation5 + $0x10] sm:$0xff]
    %v474 = vld [vmem:[#allocation5 + $0x18] sm:$0xff]
    %s475 = scalar_lea.vmem [#allocation5], 32
    %v476 = vld [vmem:[%s475] sm:$0xff]
    %v477 = vld [vmem:[%s475 + $0x8] sm:$0xff]
    %v478 = vld [vmem:[%s475 + $0x10] sm:$0xff]
    %v479 = vld [vmem:[%s475 + $0x18] sm:$0xff]
    %vm480 = vcmask 261120
    %v481 = vsel %vm480, %v457, 0
    %v483 = vsel %vm480, %v458, 0
    %485 = vmatprep.subr.mxu0 0.0
    %486 = vmatpush1.msra.mxu0 0.0
    %487 = vmatprep.subr.mxu0 0.0
    %488 = vmatpush1.msra.mxu0 0.0
    %489 = vmatprep.subr.mxu0 0.0
    %490 = vmatpush1.msra.mxu0 0.0
    %491 = vmatprep.subr.mxu0 0.0
    %492 = vmatpush1.msra.mxu0 0.0
    %493 = vmatprep.subr.mxu0 0.0
    %494 = vmatpush1.msra.mxu0 0.0
    %495 = vmatprep.subr.mxu0 0.0
    %496 = vmatpush1.msra.mxu0 0.0
    %497 = vmatprep.subr.mxu0 0.0
    %498 = vmatpush1.msra.mxu0 0.0
    %499 = vmatprep.subr.mxu0 0.0
    %500 = vmatpush1.msra.mxu0 0.0
    %501 = vmatprep.subr.mxu0 0.0
    %502 = vmatpush1.msra.mxu0 0.0
    %503 = vmatprep.subr.mxu0 0.0
    %504 = vmatpush1.msra.mxu0 0.0
    %505 = vmatprep.subr.mxu0 0.0
    %506 = vmatpush1.msra.mxu0 0.0
    %507 = vmatprep.subr.mxu0 0.0
    %508 = vmatpush1.msra.mxu0 0.0
    %509 = vmatprep.subr.mxu0 0.0
    %510 = vmatpush1.msra.mxu0 %v479
    %511 = vmatprep.subr.mxu0 0.0
    %512 = vmatpush1.msra.mxu0 %v478
    %513 = vmatprep.subr.mxu0 0.0
    %514 = vmatpush1.msra.mxu0 %v477
    %515 = vmatprep.subr.mxu0 0.0
    %516 = vmatpush1.msra.mxu0 %v476
    %517 = vmatprep.subr.mxu0 0.0
    %518 = vmatpush2.msra.mxu0 0.0
    %519 = vmatprep.subr.mxu0 0.0
    %520 = vmatpush2.msra.mxu0 0.0
    %521 = vmatprep.subr.mxu0 0.0
    %522 = vmatpush2.msra.mxu0 0.0
    %523 = vmatprep.subr.mxu0 0.0
    %524 = vmatpush2.msra.mxu0 0.0
    %525 = vmatprep.subr.mxu0 0.0
    %526 = vmatpush2.msra.mxu0 0.0
    %527 = vmatprep.subr.mxu0 0.0
    %528 = vmatpush2.msra.mxu0 0.0
    %529 = vmatprep.subr.mxu0 0.0
    %530 = vmatpush2.msra.mxu0 0.0
    %531 = vmatprep.subr.mxu0 0.0
    %532 = vmatpush2.msra.mxu0 0.0
    %533 = vmatprep.subr.mxu0 0.0
    %534 = vmatpush2.msra.mxu0 0.0
    %535 = vmatprep.subr.mxu0 0.0
    %536 = vmatpush2.msra.mxu0 0.0
    %537 = vmatprep.subr.mxu0 0.0
    %538 = vmatpush2.msra.mxu0 0.0
    %539 = vmatprep.subr.mxu0 0.0
    %540 = vmatpush2.msra.mxu0 0.0
    %541 = vmatprep.subr.mxu0 0.0
    %542 = vmatpush2.msra.mxu0 0.0
    %543 = vmatprep.subr.mxu0 0.0
    %544 = vmatpush2.msra.mxu0 0.0
    %545 = vmatprep.subr.mxu0 0.0
    %546 = vmatpush2.msra.mxu0 0.0
    %547 = vmatprep.subr.mxu0 0.0
    %548 = vmatpush2.msra.mxu0 0.0
    %549 = vmatprep.mubr.f32.mxu0 0.0
    %550 = vmatmul.mubr.f32.gmra.mxu0 %v481
    %v551 = vpop.f32.mrf.mxu0
    %v552 = vadd.f32 0.0, %v551
    %v553 = vpop.f32.mrf.mxu0
    %554 = vmatprep.mubr.f32.mxu0 0.0
    %555 = vmatmul.mubr.f32.gmra.mxu0 %v483
    %v556 = vpop.f32.mrf.mxu0
    %v557 = vadd.f32 0.0, %v556
    %v558 = vpop.f32.mrf.mxu0
    %559 = vdwg.mxu0
    %v561 = vsel %vm480, %v465, 0
    %v563 = vsel %vm480, %v463, 0
    %565 = vmatprep.subr.mxu0 0.0
    %566 = vmatpush1.msra.mxu0 0.0
    %567 = vmatprep.subr.mxu0 0.0
    %568 = vmatpush1.msra.mxu0 0.0
    %569 = vmatprep.subr.mxu0 0.0
    %570 = vmatpush1.msra.mxu0 0.0
    %571 = vmatprep.subr.mxu0 0.0
    %572 = vmatpush1.msra.mxu0 0.0
    %573 = vmatprep.subr.mxu0 0.0
    %574 = vmatpush1.msra.mxu0 0.0
    %575 = vmatprep.subr.mxu0 0.0
    %576 = vmatpush1.msra.mxu0 0.0
    %577 = vmatprep.subr.mxu0 0.0
    %578 = vmatpush1.msra.mxu0 0.0
    %579 = vmatprep.subr.mxu0 0.0
    %580 = vmatpush1.msra.mxu0 0.0
    %581 = vmatprep.subr.mxu0 0.0
    %582 = vmatpush1.msra.mxu0 0.0
    %583 = vmatprep.subr.mxu0 0.0
    %584 = vmatpush1.msra.mxu0 0.0
    %585 = vmatprep.subr.mxu0 0.0
    %586 = vmatpush1.msra.mxu0 0.0
    %587 = vmatprep.subr.mxu0 0.0
    %588 = vmatpush1.msra.mxu0 0.0
    %589 = vmatprep.subr.mxu0 0.0
    %590 = vmatpush1.msra.mxu0 %v474
    %591 = vmatprep.subr.mxu0 0.0
    %592 = vmatpush1.msra.mxu0 %v473
    %593 = vmatprep.subr.mxu0 0.0
    %594 = vmatpush1.msra.mxu0 %v472
    %595 = vmatprep.subr.mxu0 0.0
    %596 = vmatpush1.msra.mxu0 %v471
    %597 = vmatprep.subr.mxu0 0.0
    %598 = vmatpush2.msra.mxu0 0.0
    %599 = vmatprep.subr.mxu0 0.0
    %600 = vmatpush2.msra.mxu0 0.0
    %601 = vmatprep.subr.mxu0 0.0
    %602 = vmatpush2.msra.mxu0 0.0
    %603 = vmatprep.subr.mxu0 0.0
    %604 = vmatpush2.msra.mxu0 0.0
    %605 = vmatprep.subr.mxu0 0.0
    %606 = vmatpush2.msra.mxu0 0.0
    %607 = vmatprep.subr.mxu0 0.0
    %608 = vmatpush2.msra.mxu0 0.0
    %609 = vmatprep.subr.mxu0 0.0
    %610 = vmatpush2.msra.mxu0 0.0
    %611 = vmatprep.subr.mxu0 0.0
    %612 = vmatpush2.msra.mxu0 0.0
    %613 = vmatprep.subr.mxu0 0.0
    %614 = vmatpush2.msra.mxu0 0.0
    %615 = vmatprep.subr.mxu0 0.0
    %616 = vmatpush2.msra.mxu0 0.0
    %617 = vmatprep.subr.mxu0 0.0
    %618 = vmatpush2.msra.mxu0 0.0
    %619 = vmatprep.subr.mxu0 0.0
    %620 = vmatpush2.msra.mxu0 0.0
    %621 = vmatprep.subr.mxu0 0.0
    %622 = vmatpush2.msra.mxu0 0.0
    %623 = vmatprep.subr.mxu0 0.0
    %624 = vmatpush2.msra.mxu0 0.0
    %625 = vmatprep.subr.mxu0 0.0
    %626 = vmatpush2.msra.mxu0 0.0
    %627 = vmatprep.subr.mxu0 0.0
    %628 = vmatpush2.msra.mxu0 0.0
    %629 = vmatprep.mubr.f32.mxu0 0.0
    %630 = vmatmul.mubr.f32.gmra.mxu0 %v561
    %v631 = vpop.f32.mrf.mxu0
    %v632 = vadd.f32 %v552, %v631
    %v633 = vpop.f32.mrf.mxu0
    %634 = vmatprep.mubr.f32.mxu0 0.0
    %635 = vmatmul.mubr.f32.gmra.mxu0 %v563
    %v636 = vpop.f32.mrf.mxu0
    %v637 = vadd.f32 %v557, %v636
    %v638 = vpop.f32.mrf.mxu0
    %639 = vdwg.mxu0
    %s640 = scalar_lea.vmem [#allocation5], 64
    %v641 = vld [vmem:[%s640] sm:$0xff]
    %v642 = vld [vmem:[%s640 + $0x8] sm:$0xff]
    %v643 = vld [vmem:[%s640 + $0x10] sm:$0xff]
    %v644 = vld [vmem:[%s640 + $0x18] sm:$0xff]
    %v645 = vsel %vm480, %v468, 0
    %v648 = vsel %vm480, %v470, 0
    %650 = vmatprep.subr.mxu0 0.0
    %651 = vmatpush1.msra.mxu0 0.0
    %652 = vmatprep.subr.mxu0 0.0
    %653 = vmatpush1.msra.mxu0 0.0
    %654 = vmatprep.subr.mxu0 0.0
    %655 = vmatpush1.msra.mxu0 0.0
    %656 = vmatprep.subr.mxu0 0.0
    %657 = vmatpush1.msra.mxu0 0.0
    %658 = vmatprep.subr.mxu0 0.0
    %659 = vmatpush1.msra.mxu0 0.0
    %660 = vmatprep.subr.mxu0 0.0
    %661 = vmatpush1.msra.mxu0 0.0
    %662 = vmatprep.subr.mxu0 0.0
    %663 = vmatpush1.msra.mxu0 0.0
    %664 = vmatprep.subr.mxu0 0.0
    %665 = vmatpush1.msra.mxu0 0.0
    %666 = vmatprep.subr.mxu0 0.0
    %667 = vmatpush1.msra.mxu0 0.0
    %668 = vmatprep.subr.mxu0 0.0
    %669 = vmatpush1.msra.mxu0 0.0
    %670 = vmatprep.subr.mxu0 0.0
    %671 = vmatpush1.msra.mxu0 0.0
    %672 = vmatprep.subr.mxu0 0.0
    %673 = vmatpush1.msra.mxu0 0.0
    %674 = vmatprep.subr.mxu0 0.0
    %675 = vmatpush1.msra.mxu0 %v644
    %676 = vmatprep.subr.mxu0 0.0
    %677 = vmatpush1.msra.mxu0 %v643
    %678 = vmatprep.subr.mxu0 0.0
    %679 = vmatpush1.msra.mxu0 %v642
    %680 = vmatprep.subr.mxu0 0.0
    %681 = vmatpush1.msra.mxu0 %v641
    %682 = vmatprep.subr.mxu0 0.0
    %683 = vmatpush2.msra.mxu0 0.0
    %684 = vmatprep.subr.mxu0 0.0
    %685 = vmatpush2.msra.mxu0 0.0
    %686 = vmatprep.subr.mxu0 0.0
    %687 = vmatpush2.msra.mxu0 0.0
    %688 = vmatprep.subr.mxu0 0.0
    %689 = vmatpush2.msra.mxu0 0.0
    %690 = vmatprep.subr.mxu0 0.0
    %691 = vmatpush2.msra.mxu0 0.0
    %692 = vmatprep.subr.mxu0 0.0
    %693 = vmatpush2.msra.mxu0 0.0
    %694 = vmatprep.subr.mxu0 0.0
    %695 = vmatpush2.msra.mxu0 0.0
    %696 = vmatprep.subr.mxu0 0.0
    %697 = vmatpush2.msra.mxu0 0.0
    %698 = vmatprep.subr.mxu0 0.0
    %699 = vmatpush2.msra.mxu0 0.0
    %700 = vmatprep.subr.mxu0 0.0
    %701 = vmatpush2.msra.mxu0 0.0
    %702 = vmatprep.subr.mxu0 0.0
    %703 = vmatpush2.msra.mxu0 0.0
    %704 = vmatprep.subr.mxu0 0.0
    %705 = vmatpush2.msra.mxu0 0.0
    %706 = vmatprep.subr.mxu0 0.0
    %707 = vmatpush2.msra.mxu0 0.0
    %708 = vmatprep.subr.mxu0 0.0
    %709 = vmatpush2.msra.mxu0 0.0
    %710 = vmatprep.subr.mxu0 0.0
    %711 = vmatpush2.msra.mxu0 0.0
    %712 = vmatprep.subr.mxu0 0.0
    %713 = vmatpush2.msra.mxu0 0.0
    %714 = vmatprep.mubr.f32.mxu0 0.0
    %715 = vmatmul.mubr.f32.gmra.mxu0 %v645
    %v716 = vpop.f32.mrf.mxu0
    %v717 = vadd.f32 0.0, %v716
    %v718 = vpop.f32.mrf.mxu0
    %719 = vmatprep.mubr.f32.mxu0 0.0
    %720 = vmatmul.mubr.f32.gmra.mxu0 %v648
    %v721 = vpop.f32.mrf.mxu0
    %v722 = vadd.f32 0.0, %v721
    %v723 = vpop.f32.mrf.mxu0
    %724 = vdwg.mxu0
    %v725 = vadd.f32 %v632, %v717
    %v726 = vadd.f32 %v637, %v722
    %v727 = vld [vmem:[#allocation8] sm:$0x1]
    %v729 = vlaneseq
    %v730 = vshrl.u32 %v729, 7
    %v731 = vsub.s32 0, %v730
    %v732 = vrot.slane %v727, %v731
    %v734 = vadd.f32 %v725, %v732
    %v735 = vadd.f32 %v726, %v732
    %v736 = vmax.f32 %v734, 0.0
    %v737 = vmax.f32 %v735, 0.0
    %v738 = vlaneseq
    %v739 = vand.u32 %v738, 127
    %v740 = vadd.s32 %v739, 128
    %vm741 = vcmp.lt.s32.totalorder %v739, 0
    %v742 = vsub.s32 0, %v739
    %v743 = vsel %vm741, %v742, %v739
    %v744 = vshrl.u32 %v743, 6
    %v745 = vand.u32 %v743, 63
    %v746 = vsub.s32 0, %v745
    %v747 = vsel %vm741, %v746, %v745
    %vm748 = vcmp.lt.s32.totalorder %v740, 0
    %v749 = vsub.s32 0, %v740
    %v750 = vsel %vm748, %v749, %v740
    %v751 = vshrl.u32 %v750, 6
    %v752 = vand.u32 %v750, 63
    %v753 = vsub.s32 0, %v752
    %v754 = vsel %vm748, %v753, %v752
    %vm755 = vcmp.ne.s32.totalorder %v747, 0
    %vm756 = vcmp.ne.s32.totalorder %v754, 0
    %vm757 = vcmp.lt.s32.totalorder %v747, 0
    %vm758 = vcmp.lt.s32.totalorder %v754, 0
    %vm759 = vmand %vm757, %vm755
    %vm760 = vmand %vm758, %vm756
    %v761 = vadd.s32 %v747, 64
    %v762 = vadd.s32 %v754, 64
    %v763 = vsel %vm759, %v761, %v747
    %v764 = vsel %vm760, %v762, %v754
    %vm765 = vcmp.lt.s32.totalorder %v763, 32
    %vm766 = vcmp.lt.s32.totalorder %v764, 32
    %v767 = vld [vmem:[#allocation10] sm:$0xff]
    %v768 = vld [vmem:[#allocation10 + $0x8] sm:$0xff]
    %v769 = vld [vmem:[#allocation10 + $0x10] sm:$0xff]
    %v770 = vld [vmem:[#allocation10 + $0x18] sm:$0xff]
    %v771 = vld [vmem:[#allocation10 + $0x20] sm:$0xff]
    %v772 = vld [vmem:[#allocation10 + $0x28] sm:$0xff]
    %v773 = vld [vmem:[#allocation10 + $0x30] sm:$0xff]
    %v774 = vld [vmem:[#allocation10 + $0x38] sm:$0xff]
    %v775 = vld [vmem:[#allocation11] sm:$0x3]
    %v777 = vlaneseq
    %v778 = vshrl.u32 %v777, 7
    %v779 = vsub.s32 0, %v778
    %v780 = vrot.slane %v775, %v779
    %v781 = vlaneseq
    %v782 = vshrl.u32 %v781, 7
    %v783 = vsub.s32 1, %v782
    %v784 = vrot.slane %v775, %v783
    %v788 = vsel %vm480, %v736, 0
    %v791 = vsel %vm480, %v737, 0
    %793 = vmatprep.subr.mxu0 0.0
    %794 = vmatpush1.msra.mxu0 0.0
    %795 = vmatprep.subr.mxu0 0.0
    %796 = vmatpush1.msra.mxu0 0.0
    %797 = vmatprep.subr.mxu0 0.0
    %798 = vmatpush1.msra.mxu0 0.0
    %799 = vmatprep.subr.mxu0 0.0
    %800 = vmatpush1.msra.mxu0 0.0
    %801 = vmatprep.subr.mxu0 0.0
    %802 = vmatpush1.msra.mxu0 0.0
    %803 = vmatprep.subr.mxu0 0.0
    %804 = vmatpush1.msra.mxu0 0.0
    %805 = vmatprep.subr.mxu0 0.0
    %806 = vmatpush1.msra.mxu0 0.0
    %807 = vmatprep.subr.mxu0 0.0
    %808 = vmatpush1.msra.mxu0 0.0
    %809 = vmatprep.subr.mxu0 0.0
    %810 = vmatpush1.msra.mxu0 0.0
    %811 = vmatprep.subr.mxu0 0.0
    %812 = vmatpush1.msra.mxu0 0.0
    %813 = vmatprep.subr.mxu0 0.0
    %814 = vmatpush1.msra.mxu0 0.0
    %815 = vmatprep.subr.mxu0 0.0
    %816 = vmatpush1.msra.mxu0 0.0
    %817 = vmatprep.subr.mxu0 %v774
    %818 = vmatpush1.msra.mxu0 %v773
    %819 = vmatprep.subr.mxu0 %v772
    %820 = vmatpush1.msra.mxu0 %v771
    %821 = vmatprep.subr.mxu0 %v770
    %822 = vmatpush1.msra.mxu0 %v769
    %823 = vmatprep.subr.mxu0 %v768
    %824 = vmatpush1.msra.mxu0 %v767
    %825 = vmatprep.subr.mxu0 0.0
    %826 = vmatpush2.msra.mxu0 0.0
    %827 = vmatprep.subr.mxu0 0.0
    %828 = vmatpush2.msra.mxu0 0.0
    %829 = vmatprep.subr.mxu0 0.0
    %830 = vmatpush2.msra.mxu0 0.0
    %831 = vmatprep.subr.mxu0 0.0
    %832 = vmatpush2.msra.mxu0 0.0
    %833 = vmatprep.subr.mxu0 0.0
    %834 = vmatpush2.msra.mxu0 0.0
    %835 = vmatprep.subr.mxu0 0.0
    %836 = vmatpush2.msra.mxu0 0.0
    %837 = vmatprep.subr.mxu0 0.0
    %838 = vmatpush2.msra.mxu0 0.0
    %839 = vmatprep.subr.mxu0 0.0
    %840 = vmatpush2.msra.mxu0 0.0
    %841 = vmatprep.subr.mxu0 0.0
    %842 = vmatpush2.msra.mxu0 0.0
    %843 = vmatprep.subr.mxu0 0.0
    %844 = vmatpush2.msra.mxu0 0.0
    %845 = vmatprep.subr.mxu0 0.0
    %846 = vmatpush2.msra.mxu0 0.0
    %847 = vmatprep.subr.mxu0 0.0
    %848 = vmatpush2.msra.mxu0 0.0
    %849 = vmatprep.subr.mxu0 0.0
    %850 = vmatpush2.msra.mxu0 0.0
    %851 = vmatprep.subr.mxu0 0.0
    %852 = vmatpush2.msra.mxu0 0.0
    %853 = vmatprep.subr.mxu0 0.0
    %854 = vmatpush2.msra.mxu0 0.0
    %855 = vmatprep.subr.mxu0 0.0
    %856 = vmatpush2.msra.mxu0 0.0
    %857 = vmatprep.mubr.f32.mxu0 0.0
    %858 = vmatmul.mubr.f32.gmra.mxu0 %v788
    %v859 = vpop.f32.mrf.mxu0
    %v860 = vadd.f32 %v780, %v859
    %v861 = vpop.f32.mrf.mxu0
    %v862 = vadd.f32 %v784, %v861
    %863 = vmatprep.mubr.f32.mxu0 0.0
    %864 = vmatmul.mubr.f32.gmra.mxu0 %v791
    %v865 = vpop.f32.mrf.mxu0
    %v866 = vadd.f32 %v780, %v865
    %v867 = vpop.f32.mrf.mxu0
    %v868 = vadd.f32 %v784, %v867
    %869 = vdwg.mxu0
    %870 = vst [vmem:[#allocation2] sm:$0xff] %v860
    %871 = vst [vmem:[#allocation2 + $0x8] sm:$0xff] %v862
    %872 = vst [vmem:[#allocation2 + $0x10] sm:$0xff] %v866
    %873 = vst [vmem:[#allocation2 + $0x18] sm:$0xff] %v868
    %v874 = vld [vmem:[%s6] sm:$0xff]
    %v875 = vld [vmem:[%s6 + $0x8] sm:$0xff]
    %v876 = vld [vmem:[%s6 + $0x10] sm:$0xff]
    %v877 = vld [vmem:[%s6 + $0x18] sm:$0xff]
    %v878 = vld [vmem:[%s6 + $0x20] sm:$0xff]
    %v879 = vld [vmem:[%s6 + $0x28] sm:$0xff]
    %v880 = vld [vmem:[%s6 + $0x30] sm:$0xff]
    %v881 = vld [vmem:[%s6 + $0x38] sm:$0xff]
    %v882 = vld [vmem:[%s6 + $0x40] sm:$0xff]
    %v883 = vld [vmem:[%s6 + $0x48] sm:$0xff]
    %v884 = vld [vmem:[%s6 + $0x50] sm:$0xff]
    %v885 = vld [vmem:[%s6 + $0x58] sm:$0xff]
    %v886 = vld [vmem:[%s6 + $0x60] sm:$0xff]
    %v887 = vld [vmem:[%s6 + $0x68] sm:$0xff]
    %v888 = vld [vmem:[%s6 + $0x70] sm:$0xff]
    %v889 = vld [vmem:[%s6 + $0x78] sm:$0xff]
    %v890 = vld [vmem:[#allocation2] sm:$0x3]
    %v891 = vld [vmem:[#allocation2 + $0x8] sm:$0x3]
    %v892 = vld [vmem:[#allocation2 + $0x10] sm:$0xc0]
    %v893 = vld [vmem:[#allocation2 + $0x18] sm:$0xc0]
    %v896 = vrot.slane %v892, 6
    %v897 = vrot.slane %v893, 6
    %v900 = vsel %vm765, %v890, %v896
    %v901 = vsel %vm766, %v891, %v897
    %vm902 = vcmask 523264
    %v904 = vsel %vm902, 0.0, 0
    %906 = vmatprep.subr.mxu0 0.0
    %907 = vmatpush1.msra.mxu0 0.0
    %908 = vmatprep.subr.mxu0 0.0
    %909 = vmatpush1.msra.mxu0 0.0
    %910 = vmatprep.subr.mxu0 0.0
    %911 = vmatpush1.msra.mxu0 0.0
    %912 = vmatprep.subr.mxu0 0.0
    %913 = vmatpush1.msra.mxu0 0.0
    %914 = vmatprep.subr.mxu0 0.0
    %915 = vmatpush1.msra.mxu0 0.0
    %916 = vmatprep.subr.mxu0 0.0
    %917 = vmatpush1.msra.mxu0 0.0
    %918 = vmatprep.subr.mxu0 0.0
    %919 = vmatpush1.msra.mxu0 0.0
    %920 = vmatprep.subr.mxu0 0.0
    %921 = vmatpush1.msra.mxu0 0.0
    %922 = vmatprep.subr.mxu0 %v889
    %923 = vmatpush1.msra.mxu0 %v888
    %924 = vmatprep.subr.mxu0 %v887
    %925 = vmatpush1.msra.mxu0 %v886
    %926 = vmatprep.subr.mxu0 %v885
    %927 = vmatpush1.msra.mxu0 %v884
    %928 = vmatprep.subr.mxu0 %v883
    %929 = vmatpush1.msra.mxu0 %v882
    %930 = vmatprep.subr.mxu0 %v881
    %931 = vmatpush1.msra.mxu0 %v880
    %932 = vmatprep.subr.mxu0 %v879
    %933 = vmatpush1.msra.mxu0 %v878
    %934 = vmatprep.subr.mxu0 %v877
    %935 = vmatpush1.msra.mxu0 %v876
    %936 = vmatprep.subr.mxu0 %v875
    %937 = vmatpush1.msra.mxu0 %v874
    %938 = vmatprep.subr.mxu0 0.0
    %939 = vmatpush2.msra.mxu0 0.0
    %940 = vmatprep.subr.mxu0 0.0
    %941 = vmatpush2.msra.mxu0 0.0
    %942 = vmatprep.subr.mxu0 0.0
    %943 = vmatpush2.msra.mxu0 0.0
    %944 = vmatprep.subr.mxu0 0.0
    %945 = vmatpush2.msra.mxu0 0.0
    %946 = vmatprep.subr.mxu0 0.0
    %947 = vmatpush2.msra.mxu0 0.0
    %948 = vmatprep.subr.mxu0 0.0
    %949 = vmatpush2.msra.mxu0 0.0
    %950 = vmatprep.subr.mxu0 0.0
    %951 = vmatpush2.msra.mxu0 0.0
    %952 = vmatprep.subr.mxu0 0.0
    %953 = vmatpush2.msra.mxu0 0.0
    %954 = vmatprep.subr.mxu0 0.0
    %955 = vmatpush2.msra.mxu0 0.0
    %956 = vmatprep.subr.mxu0 0.0
    %957 = vmatpush2.msra.mxu0 0.0
    %958 = vmatprep.subr.mxu0 0.0
    %959 = vmatpush2.msra.mxu0 0.0
    %960 = vmatprep.subr.mxu0 0.0
    %961 = vmatpush2.msra.mxu0 0.0
    %962 = vmatprep.subr.mxu0 0.0
    %963 = vmatpush2.msra.mxu0 0.0
    %964 = vmatprep.subr.mxu0 0.0
    %965 = vmatpush2.msra.mxu0 0.0
    %966 = vmatprep.subr.mxu0 0.0
    %967 = vmatpush2.msra.mxu0 0.0
    %968 = vmatprep.subr.mxu0 0.0
    %969 = vmatpush2.msra.mxu0 0.0
    %970 = vmatprep.mubr.f32.mxu0 0.0
    %971 = vmatmul.mubr.f32.gmra.mxu0 %v904
    %v972 = vpop.f32.mrf.mxu0
    %v973 = vadd.f32 0.0, %v972
    %v974 = vpop.f32.mrf.mxu0
    %v975 = vadd.f32 0.0, %v974
    %976 = vdwg.mxu0
    %v977 = vadd.f32 %v900, %v973
    %v978 = vadd.f32 %v901, %v975
    %v979 = vxor.u32 %v977, 2147483648
    %v980 = vxor.u32 %v978, 2147483648
    %v981 = vmul.f32 %v979, 1.442695
    %v982 = vpow.pop %v981
    %v983 = vmul.f32 %v980, 1.442695
    %v984 = vpow.pop %v983
    %v985 = vadd.f32 %v982, 1.0
    %v986 = vadd.f32 %v984, 1.0
    %v987 = vrcp.pop %v985
    %v988 = vmul.f32 1.0, %v987
    %v989 = vrcp.pop %v986
    %v990 = vmul.f32 1.0, %v989
    %v991 = vtanh.pop %v978
    %v992 = vmul.f32 %v988, 0.0
    %v993 = vmul.f32 %v988, %v991
    %995 = vrot.lane.b32.xlu0 %v993, 64
    %v996 = vpop.permute.xlu0 %995
    %v998 = vadd.f32 %v992, %v996
    %v999 = vtanh.pop %v998
    %v1000 = vmul.f32 %v990, %v999
    %1002 = vrot.lane.b32.xlu0 %v1000, 64
    %v1003 = vpop.permute.xlu0 %1002
    %vm1005 = vcmask 254976
    %1006 = vst.msk [vmem:[#allocation3] sm:$0x3] %vm1005, %v1003
    %vm1007 = vcmask 517376
    %1008 = vst.msk [vmem:[#allocation3 + $0xe] sm:$0x3] %vm1007, %v1003
    %v1009 = vld [vmem:[#allocation2] sm:$0xc]
    %v1010 = vld [vmem:[#allocation2 + $0x8] sm:$0xc]
    %v1011 = vld [vmem:[#allocation2 + $0x10] sm:$0x30]
    %v1012 = vld [vmem:[#allocation2 + $0x18] sm:$0x30]
    %v1015 = vrot.slane %v1011, 2
    %v1016 = vrot.slane %v1012, 2
    %v1019 = vsel %vm765, %v1009, %v1015
    %v1020 = vsel %vm766, %v1010, %v1016
    %v1021 = vsel %vm902, %v1003, 0
    %1023 = vmatprep.subr.mxu0 0.0
    %1024 = vmatpush1.msra.mxu0 0.0
    %1025 = vmatprep.subr.mxu0 0.0
    %1026 = vmatpush1.msra.mxu0 0.0
    %1027 = vmatprep.subr.mxu0 0.0
    %1028 = vmatpush1.msra.mxu0 0.0
    %1029 = vmatprep.subr.mxu0 0.0
    %1030 = vmatpush1.msra.mxu0 0.0
    %1031 = vmatprep.subr.mxu0 0.0
    %1032 = vmatpush1.msra.mxu0 0.0
    %1033 = vmatprep.subr.mxu0 0.0
    %1034 = vmatpush1.msra.mxu0 0.0
    %1035 = vmatprep.subr.mxu0 0.0
    %1036 = vmatpush1.msra.mxu0 0.0
    %1037 = vmatprep.subr.mxu0 0.0
    %1038 = vmatpush1.msra.mxu0 0.0
    %1039 = vmatprep.subr.mxu0 %v889
    %1040 = vmatpush1.msra.mxu0 %v888
    %1041 = vmatprep.subr.mxu0 %v887
    %1042 = vmatpush1.msra.mxu0 %v886
    %1043 = vmatprep.subr.mxu0 %v885
    %1044 = vmatpush1.msra.mxu0 %v884
    %1045 = vmatprep.subr.mxu0 %v883
    %1046 = vmatpush1.msra.mxu0 %v882
    %1047 = vmatprep.subr.mxu0 %v881
    %1048 = vmatpush1.msra.mxu0 %v880
    %1049 = vmatprep.subr.mxu0 %v879
    %1050 = vmatpush1.msra.mxu0 %v878
    %1051 = vmatprep.subr.mxu0 %v877
    %1052 = vmatpush1.msra.mxu0 %v876
    %1053 = vmatprep.subr.mxu0 %v875
    %1054 = vmatpush1.msra.mxu0 %v874
    %1055 = vmatprep.subr.mxu0 0.0
    %1056 = vmatpush2.msra.mxu0 0.0
    %1057 = vmatprep.subr.mxu0 0.0
    %1058 = vmatpush2.msra.mxu0 0.0
    %1059 = vmatprep.subr.mxu0 0.0
    %1060 = vmatpush2.msra.mxu0 0.0
    %1061 = vmatprep.subr.mxu0 0.0
    %1062 = vmatpush2.msra.mxu0 0.0
    %1063 = vmatprep.subr.mxu0 0.0
    %1064 = vmatpush2.msra.mxu0 0.0
    %1065 = vmatprep.subr.mxu0 0.0
    %1066 = vmatpush2.msra.mxu0 0.0
    %1067 = vmatprep.subr.mxu0 0.0
    %1068 = vmatpush2.msra.mxu0 0.0
    %1069 = vmatprep.subr.mxu0 0.0
    %1070 = vmatpush2.msra.mxu0 0.0
    %1071 = vmatprep.subr.mxu0 0.0
    %1072 = vmatpush2.msra.mxu0 0.0
    %1073 = vmatprep.subr.mxu0 0.0
    %1074 = vmatpush2.msra.mxu0 0.0
    %1075 = vmatprep.subr.mxu0 0.0
    %1076 = vmatpush2.msra.mxu0 0.0
    %1077 = vmatprep.subr.mxu0 0.0
    %1078 = vmatpush2.msra.mxu0 0.0
    %1079 = vmatprep.subr.mxu0 0.0
    %1080 = vmatpush2.msra.mxu0 0.0
    %1081 = vmatprep.subr.mxu0 0.0
    %1082 = vmatpush2.msra.mxu0 0.0
    %1083 = vmatprep.subr.mxu0 0.0
    %1084 = vmatpush2.msra.mxu0 0.0
    %1085 = vmatprep.subr.mxu0 0.0
    %1086 = vmatpush2.msra.mxu0 0.0
    %1087 = vmatprep.mubr.f32.mxu0 0.0
    %1088 = vmatmul.mubr.f32.gmra.mxu0 %v1021
    %v1089 = vpop.f32.mrf.mxu0
    %v1090 = vadd.f32 0.0, %v1089
    %v1091 = vpop.f32.mrf.mxu0
    %v1092 = vadd.f32 0.0, %v1091
    %1093 = vdwg.mxu0
    %v1096 = vrot.slane %v1090, 6
    %v1097 = vrot.slane %v1092, 6
    %v1100 = vadd.f32 %v1019, %v1096
    %v1101 = vadd.f32 %v1020, %v1097
    %v1102 = vxor.u32 %v1100, 2147483648
    %v1103 = vxor.u32 %v1101, 2147483648
    %v1104 = vmul.f32 %v1102, 1.442695
    %v1105 = vpow.pop %v1104
    %v1106 = vmul.f32 %v1103, 1.442695
    %v1107 = vpow.pop %v1106
    %v1108 = vadd.f32 %v1105, 1.0
    %v1109 = vadd.f32 %v1107, 1.0
    %v1110 = vrcp.pop %v1108
    %v1111 = vmul.f32 1.0, %v1110
    %v1112 = vrcp.pop %v1109
    %v1113 = vmul.f32 1.0, %v1112
    %v1114 = vtanh.pop %v1101
    %v1116 = vrot.slane %v998, 6
    %v1118 = vmul.f32 %v1111, %v1116
    %v1119 = vmul.f32 %v1111, %v1114
    %1121 = vrot.lane.b32.xlu0 %v1119, 64
    %v1122 = vpop.permute.xlu0 %1121
    %v1124 = vadd.f32 %v1118, %v1122
    %v1125 = vtanh.pop %v1124
    %v1126 = vmul.f32 %v1113, %v1125
    %1128 = vrot.lane.b32.xlu0 %v1126, 64
    %v1129 = vpop.permute.xlu0 %1128
    %vm1131 = vcmask 257026
    %1132 = vst.msk [vmem:[#allocation3] sm:$0xc] %vm1131, %v1129
    %vm1133 = vcmask 519426
    %1134 = vst.msk [vmem:[#allocation3 + $0xa] sm:$0xc] %vm1133, %v1129
    %v1135 = vld [vmem:[#allocation2] sm:$0x30]
    %v1136 = vld [vmem:[#allocation2 + $0x8] sm:$0x30]
    %v1137 = vld [vmem:[#allocation2 + $0x10] sm:$0xc]
    %v1138 = vld [vmem:[#allocation2 + $0x18] sm:$0xc]
    %v1141 = vrot.slane %v1137, 6
    %v1142 = vrot.slane %v1138, 6
    %v1145 = vsel %vm765, %v1135, %v1141
    %v1146 = vsel %vm766, %v1136, %v1142
    %v1147 = vrot.slane %v1126, 2
    %1148 = vrot.lane.b32.xlu0 %v1147, 64
    %v1149 = vpop.permute.xlu0 %1148
    %v1150 = vsel %vm902, %v1149, 0
    %1152 = vmatprep.subr.mxu0 0.0
    %1153 = vmatpush1.msra.mxu0 0.0
    %1154 = vmatprep.subr.mxu0 0.0
    %1155 = vmatpush1.msra.mxu0 0.0
    %1156 = vmatprep.subr.mxu0 0.0
    %1157 = vmatpush1.msra.mxu0 0.0
    %1158 = vmatprep.subr.mxu0 0.0
    %1159 = vmatpush1.msra.mxu0 0.0
    %1160 = vmatprep.subr.mxu0 0.0
    %1161 = vmatpush1.msra.mxu0 0.0
    %1162 = vmatprep.subr.mxu0 0.0
    %1163 = vmatpush1.msra.mxu0 0.0
    %1164 = vmatprep.subr.mxu0 0.0
    %1165 = vmatpush1.msra.mxu0 0.0
    %1166 = vmatprep.subr.mxu0 0.0
    %1167 = vmatpush1.msra.mxu0 0.0
    %1168 = vmatprep.subr.mxu0 %v889
    %1169 = vmatpush1.msra.mxu0 %v888
    %1170 = vmatprep.subr.mxu0 %v887
    %1171 = vmatpush1.msra.mxu0 %v886
    %1172 = vmatprep.subr.mxu0 %v885
    %1173 = vmatpush1.msra.mxu0 %v884
    %1174 = vmatprep.subr.mxu0 %v883
    %1175 = vmatpush1.msra.mxu0 %v882
    %1176 = vmatprep.subr.mxu0 %v881
    %1177 = vmatpush1.msra.mxu0 %v880
    %1178 = vmatprep.subr.mxu0 %v879
    %1179 = vmatpush1.msra.mxu0 %v878
    %1180 = vmatprep.subr.mxu0 %v877
    %1181 = vmatpush1.msra.mxu0 %v876
    %1182 = vmatprep.subr.mxu0 %v875
    %1183 = vmatpush1.msra.mxu0 %v874
    %1184 = vmatprep.subr.mxu0 0.0
    %1185 = vmatpush2.msra.mxu0 0.0
    %1186 = vmatprep.subr.mxu0 0.0
    %1187 = vmatpush2.msra.mxu0 0.0
    %1188 = vmatprep.subr.mxu0 0.0
    %1189 = vmatpush2.msra.mxu0 0.0
    %1190 = vmatprep.subr.mxu0 0.0
    %1191 = vmatpush2.msra.mxu0 0.0
    %1192 = vmatprep.subr.mxu0 0.0
    %1193 = vmatpush2.msra.mxu0 0.0
    %1194 = vmatprep.subr.mxu0 0.0
    %1195 = vmatpush2.msra.mxu0 0.0
    %1196 = vmatprep.subr.mxu0 0.0
    %1197 = vmatpush2.msra.mxu0 0.0
    %1198 = vmatprep.subr.mxu0 0.0
    %1199 = vmatpush2.msra.mxu0 0.0
    %1200 = vmatprep.subr.mxu0 0.0
    %1201 = vmatpush2.msra.mxu0 0.0
    %1202 = vmatprep.subr.mxu0 0.0
    %1203 = vmatpush2.msra.mxu0 0.0
    %1204 = vmatprep.subr.mxu0 0.0
    %1205 = vmatpush2.msra.mxu0 0.0
    %1206 = vmatprep.subr.mxu0 0.0
    %1207 = vmatpush2.msra.mxu0 0.0
    %1208 = vmatprep.subr.mxu0 0.0
    %1209 = vmatpush2.msra.mxu0 0.0
    %1210 = vmatprep.subr.mxu0 0.0
    %1211 = vmatpush2.msra.mxu0 0.0
    %1212 = vmatprep.subr.mxu0 0.0
    %1213 = vmatpush2.msra.mxu0 0.0
    %1214 = vmatprep.subr.mxu0 0.0
    %1215 = vmatpush2.msra.mxu0 0.0
    %1216 = vmatprep.mubr.f32.mxu0 0.0
    %1217 = vmatmul.mubr.f32.gmra.mxu0 %v1150
    %v1218 = vpop.f32.mrf.mxu0
    %v1219 = vadd.f32 0.0, %v1218
    %v1220 = vpop.f32.mrf.mxu0
    %v1221 = vadd.f32 0.0, %v1220
    %1222 = vdwg.mxu0
    %v1225 = vrot.slane %v1219, 4
    %v1226 = vrot.slane %v1221, 4
    %v1229 = vadd.f32 %v1145, %v1225
    %v1230 = vadd.f32 %v1146, %v1226
    %v1231 = vxor.u32 %v1229, 2147483648
    %v1232 = vxor.u32 %v1230, 2147483648
    %v1233 = vmul.f32 %v1231, 1.442695
    %v1234 = vpow.pop %v1233
    %v1235 = vmul.f32 %v1232, 1.442695
    %v1236 = vpow.pop %v1235
    %v1237 = vadd.f32 %v1234, 1.0
    %v1238 = vadd.f32 %v1236, 1.0
    %v1239 = vrcp.pop %v1237
    %v1240 = vmul.f32 1.0, %v1239
    %v1241 = vrcp.pop %v1238
    %v1242 = vmul.f32 1.0, %v1241
    %v1243 = vtanh.pop %v1230
    %v1245 = vrot.slane %v1124, 6
    %v1247 = vmul.f32 %v1240, %v1245
    %v1248 = vmul.f32 %v1240, %v1243
    %1250 = vrot.lane.b32.xlu0 %v1248, 64
    %v1251 = vpop.permute.xlu0 %1250
    %v1253 = vadd.f32 %v1247, %v1251
    %v1254 = vtanh.pop %v1253
    %v1255 = vmul.f32 %v1242, %v1254
    %1257 = vrot.lane.b32.xlu0 %v1255, 64
    %v1258 = vpop.permute.xlu0 %1257
    %vm1260 = vcmask 259076
    %1261 = vst.msk [vmem:[#allocation3] sm:$0x30] %vm1260, %v1258
    %vm1262 = vcmask 521476
    %1263 = vst.msk [vmem:[#allocation3 + $0x6] sm:$0x30] %vm1262, %v1258
    %v1264 = vld [vmem:[#allocation2] sm:$0xc0]
    %v1265 = vld [vmem:[#allocation2 + $0x8] sm:$0xc0]
    %v1266 = vld [vmem:[#allocation2 + $0x10] sm:$0x3]
    %v1267 = vld [vmem:[#allocation2 + $0x18] sm:$0x3]
    %v1270 = vrot.slane %v1266, 2
    %v1271 = vrot.slane %v1267, 2
    %v1274 = vsel %vm765, %v1264, %v1270
    %v1275 = vsel %vm766, %v1265, %v1271
    %v1276 = vrot.slane %v1255, 4
    %1277 = vrot.lane.b32.xlu0 %v1276, 64
    %v1278 = vpop.permute.xlu0 %1277
    %v1279 = vsel %vm902, %v1278, 0
    %1281 = vmatprep.subr.mxu0 0.0
    %1282 = vmatpush1.msra.mxu0 0.0
    %1283 = vmatprep.subr.mxu0 0.0
    %1284 = vmatpush1.msra.mxu0 0.0
    %1285 = vmatprep.subr.mxu0 0.0
    %1286 = vmatpush1.msra.mxu0 0.0
    %1287 = vmatprep.subr.mxu0 0.0
    %1288 = vmatpush1.msra.mxu0 0.0
    %1289 = vmatprep.subr.mxu0 0.0
    %1290 = vmatpush1.msra.mxu0 0.0
    %1291 = vmatprep.subr.mxu0 0.0
    %1292 = vmatpush1.msra.mxu0 0.0
    %1293 = vmatprep.subr.mxu0 0.0
    %1294 = vmatpush1.msra.mxu0 0.0
    %1295 = vmatprep.subr.mxu0 0.0
    %1296 = vmatpush1.msra.mxu0 0.0
    %1297 = vmatprep.subr.mxu0 %v889
    %1298 = vmatpush1.msra.mxu0 %v888
    %1299 = vmatprep.subr.mxu0 %v887
    %1300 = vmatpush1.msra.mxu0 %v886
    %1301 = vmatprep.subr.mxu0 %v885
    %1302 = vmatpush1.msra.mxu0 %v884
    %1303 = vmatprep.subr.mxu0 %v883
    %1304 = vmatpush1.msra.mxu0 %v882
    %1305 = vmatprep.subr.mxu0 %v881
    %1306 = vmatpush1.msra.mxu0 %v880
    %1307 = vmatprep.subr.mxu0 %v879
    %1308 = vmatpush1.msra.mxu0 %v878
    %1309 = vmatprep.subr.mxu0 %v877
    %1310 = vmatpush1.msra.mxu0 %v876
    %1311 = vmatprep.subr.mxu0 %v875
    %1312 = vmatpush1.msra.mxu0 %v874
    %1313 = vmatprep.subr.mxu0 0.0
    %1314 = vmatpush2.msra.mxu0 0.0
    %1315 = vmatprep.subr.mxu0 0.0
    %1316 = vmatpush2.msra.mxu0 0.0
    %1317 = vmatprep.subr.mxu0 0.0
    %1318 = vmatpush2.msra.mxu0 0.0
    %1319 = vmatprep.subr.mxu0 0.0
    %1320 = vmatpush2.msra.mxu0 0.0
    %1321 = vmatprep.subr.mxu0 0.0
    %1322 = vmatpush2.msra.mxu0 0.0
    %1323 = vmatprep.subr.mxu0 0.0
    %1324 = vmatpush2.msra.mxu0 0.0
    %1325 = vmatprep.subr.mxu0 0.0
    %1326 = vmatpush2.msra.mxu0 0.0
    %1327 = vmatprep.subr.mxu0 0.0
    %1328 = vmatpush2.msra.mxu0 0.0
    %1329 = vmatprep.subr.mxu0 0.0
    %1330 = vmatpush2.msra.mxu0 0.0
    %1331 = vmatprep.subr.mxu0 0.0
    %1332 = vmatpush2.msra.mxu0 0.0
    %1333 = vmatprep.subr.mxu0 0.0
    %1334 = vmatpush2.msra.mxu0 0.0
    %1335 = vmatprep.subr.mxu0 0.0
    %1336 = vmatpush2.msra.mxu0 0.0
    %1337 = vmatprep.subr.mxu0 0.0
    %1338 = vmatpush2.msra.mxu0 0.0
    %1339 = vmatprep.subr.mxu0 0.0
    %1340 = vmatpush2.msra.mxu0 0.0
    %1341 = vmatprep.subr.mxu0 0.0
    %1342 = vmatpush2.msra.mxu0 0.0
    %1343 = vmatprep.subr.mxu0 0.0
    %1344 = vmatpush2.msra.mxu0 0.0
    %1345 = vmatprep.mubr.f32.mxu0 0.0
    %1346 = vmatmul.mubr.f32.gmra.mxu0 %v1279
    %v1347 = vpop.f32.mrf.mxu0
    %v1348 = vadd.f32 0.0, %v1347
    %v1349 = vpop.f32.mrf.mxu0
    %v1350 = vadd.f32 0.0, %v1349
    %1351 = vdwg.mxu0
    %v1354 = vrot.slane %v1348, 2
    %v1355 = vrot.slane %v1350, 2
    %v1358 = vadd.f32 %v1274, %v1354
    %v1359 = vadd.f32 %v1275, %v1355
    %v1360 = vxor.u32 %v1358, 2147483648
    %v1361 = vxor.u32 %v1359, 2147483648
    %v1362 = vmul.f32 %v1360, 1.442695
    %v1363 = vpow.pop %v1362
    %v1364 = vmul.f32 %v1361, 1.442695
    %v1365 = vpow.pop %v1364
    %v1366 = vadd.f32 %v1363, 1.0
    %v1367 = vadd.f32 %v1365, 1.0
    %v1368 = vrcp.pop %v1366
    %v1369 = vmul.f32 1.0, %v1368
    %v1370 = vrcp.pop %v1367
    %v1371 = vmul.f32 1.0, %v1370
    %v1372 = vtanh.pop %v1359
    %v1374 = vrot.slane %v1253, 6
    %v1376 = vmul.f32 %v1369, %v1374
    %v1377 = vmul.f32 %v1369, %v1372
    %1379 = vrot.lane.b32.xlu0 %v1377, 64
    %v1380 = vpop.permute.xlu0 %1379
    %v1382 = vadd.f32 %v1376, %v1380
    %v1383 = vtanh.pop %v1382
    %v1384 = vmul.f32 %v1371, %v1383
    %1386 = vrot.lane.b32.xlu0 %v1384, 64
    %v1387 = vpop.permute.xlu0 %1386
    %vm1389 = vcmask 261126
    %1390 = vst.msk [vmem:[#allocation3] sm:$0xc0] %vm1389, %v1387
    %vm1391 = vcmask 523526
    %1392 = vst.msk [vmem:[#allocation3 + $0x2] sm:$0xc0] %vm1391, %v1387
    %v1393 = vld [vmem:[#allocation2 + $0x10] sm:$0x3]
    %v1394 = vld [vmem:[#allocation2 + $0x18] sm:$0x3]
    %v1395 = vld [vmem:[#allocation2] sm:$0xc0]
    %v1396 = vld [vmem:[#allocation2 + $0x8] sm:$0xc0]
    %v1399 = vrot.slane %v1395, 6
    %v1400 = vrot.slane %v1396, 6
    %v1403 = vsel %vm765, %v1393, %v1399
    %v1404 = vsel %vm766, %v1394, %v1400
    %v1405 = vrot.slane %v1384, 6
    %1406 = vrot.lane.b32.xlu0 %v1405, 64
    %v1407 = vpop.permute.xlu0 %1406
    %v1408 = vsel %vm902, %v1407, 0
    %1410 = vmatprep.subr.mxu0 0.0
    %1411 = vmatpush1.msra.mxu0 0.0
    %1412 = vmatprep.subr.mxu0 0.0
    %1413 = vmatpush1.msra.mxu0 0.0
    %1414 = vmatprep.subr.mxu0 0.0
    %1415 = vmatpush1.msra.mxu0 0.0
    %1416 = vmatprep.subr.mxu0 0.0
    %1417 = vmatpush1.msra.mxu0 0.0
    %1418 = vmatprep.subr.mxu0 0.0
    %1419 = vmatpush1.msra.mxu0 0.0
    %1420 = vmatprep.subr.mxu0 0.0
    %1421 = vmatpush1.msra.mxu0 0.0
    %1422 = vmatprep.subr.mxu0 0.0
    %1423 = vmatpush1.msra.mxu0 0.0
    %1424 = vmatprep.subr.mxu0 0.0
    %1425 = vmatpush1.msra.mxu0 0.0
    %1426 = vmatprep.subr.mxu0 %v889
    %1427 = vmatpush1.msra.mxu0 %v888
    %1428 = vmatprep.subr.mxu0 %v887
    %1429 = vmatpush1.msra.mxu0 %v886
    %1430 = vmatprep.subr.mxu0 %v885
    %1431 = vmatpush1.msra.mxu0 %v884
    %1432 = vmatprep.subr.mxu0 %v883
    %1433 = vmatpush1.msra.mxu0 %v882
    %1434 = vmatprep.subr.mxu0 %v881
    %1435 = vmatpush1.msra.mxu0 %v880
    %1436 = vmatprep.subr.mxu0 %v879
    %1437 = vmatpush1.msra.mxu0 %v878
    %1438 = vmatprep.subr.mxu0 %v877
    %1439 = vmatpush1.msra.mxu0 %v876
    %1440 = vmatprep.subr.mxu0 %v875
    %1441 = vmatpush1.msra.mxu0 %v874
    %1442 = vmatprep.subr.mxu0 0.0
    %1443 = vmatpush2.msra.mxu0 0.0
    %1444 = vmatprep.subr.mxu0 0.0
    %1445 = vmatpush2.msra.mxu0 0.0
    %1446 = vmatprep.subr.mxu0 0.0
    %1447 = vmatpush2.msra.mxu0 0.0
    %1448 = vmatprep.subr.mxu0 0.0
    %1449 = vmatpush2.msra.mxu0 0.0
    %1450 = vmatprep.subr.mxu0 0.0
    %1451 = vmatpush2.msra.mxu0 0.0
    %1452 = vmatprep.subr.mxu0 0.0
    %1453 = vmatpush2.msra.mxu0 0.0
    %1454 = vmatprep.subr.mxu0 0.0
    %1455 = vmatpush2.msra.mxu0 0.0
    %1456 = vmatprep.subr.mxu0 0.0
    %1457 = vmatpush2.msra.mxu0 0.0
    %1458 = vmatprep.subr.mxu0 0.0
    %1459 = vmatpush2.msra.mxu0 0.0
    %1460 = vmatprep.subr.mxu0 0.0
    %1461 = vmatpush2.msra.mxu0 0.0
    %1462 = vmatprep.subr.mxu0 0.0
    %1463 = vmatpush2.msra.mxu0 0.0
    %1464 = vmatprep.subr.mxu0 0.0
    %1465 = vmatpush2.msra.mxu0 0.0
    %1466 = vmatprep.subr.mxu0 0.0
    %1467 = vmatpush2.msra.mxu0 0.0
    %1468 = vmatprep.subr.mxu0 0.0
    %1469 = vmatpush2.msra.mxu0 0.0
    %1470 = vmatprep.subr.mxu0 0.0
    %1471 = vmatpush2.msra.mxu0 0.0
    %1472 = vmatprep.subr.mxu0 0.0
    %1473 = vmatpush2.msra.mxu0 0.0
    %1474 = vmatprep.mubr.f32.mxu0 0.0
    %1475 = vmatmul.mubr.f32.gmra.mxu0 %v1408
    %v1476 = vpop.f32.mrf.mxu0
    %v1477 = vadd.f32 0.0, %v1476
    %v1478 = vpop.f32.mrf.mxu0
    %v1479 = vadd.f32 0.0, %v1478
    %1480 = vdwg.mxu0
    %v1481 = vadd.f32 %v1403, %v1477
    %v1482 = vadd.f32 %v1404, %v1479
    %v1483 = vxor.u32 %v1481, 2147483648
    %v1484 = vxor.u32 %v1482, 2147483648
    %v1485 = vmul.f32 %v1483, 1.442695
    %v1486 = vpow.pop %v1485
    %v1487 = vmul.f32 %v1484, 1.442695
    %v1488 = vpow.pop %v1487
    %v1489 = vadd.f32 %v1486, 1.0
    %v1490 = vadd.f32 %v1488, 1.0
    %v1491 = vrcp.pop %v1489
    %v1492 = vmul.f32 1.0, %v1491
    %v1493 = vrcp.pop %v1490
    %v1494 = vmul.f32 1.0, %v1493
    %v1495 = vtanh.pop %v1482
    %v1497 = vrot.slane %v1382, 6
    %v1499 = vmul.f32 %v1492, %v1497
    %v1500 = vmul.f32 %v1492, %v1495
    %1502 = vrot.lane.b32.xlu0 %v1500, 64
    %v1503 = vpop.permute.xlu0 %1502
    %v1505 = vadd.f32 %v1499, %v1503
    %v1506 = vtanh.pop %v1505
    %v1507 = vmul.f32 %v1494, %v1506
    %1509 = vrot.lane.b32.xlu0 %v1507, 64
    %v1510 = vpop.permute.xlu0 %1509
    %1512 = vst.msk [vmem:[#allocation3 + $0x8] sm:$0x3] %vm1005, %v1510
    %1513 = vst.msk [vmem:[#allocation3 + $0x6] sm:$0x3] %vm1007, %v1510
    %v1514 = vld [vmem:[#allocation2 + $0x10] sm:$0xc]
    %v1515 = vld [vmem:[#allocation2 + $0x18] sm:$0xc]
    %v1516 = vld [vmem:[#allocation2] sm:$0x30]
    %v1517 = vld [vmem:[#allocation2 + $0x8] sm:$0x30]
    %v1520 = vrot.slane %v1516, 2
    %v1521 = vrot.slane %v1517, 2
    %v1524 = vsel %vm765, %v1514, %v1520
    %v1525 = vsel %vm766, %v1515, %v1521
    %v1526 = vsel %vm902, %v1510, 0
    %1528 = vmatprep.subr.mxu0 0.0
    %1529 = vmatpush1.msra.mxu0 0.0
    %1530 = vmatprep.subr.mxu0 0.0
    %1531 = vmatpush1.msra.mxu0 0.0
    %1532 = vmatprep.subr.mxu0 0.0
    %1533 = vmatpush1.msra.mxu0 0.0
    %1534 = vmatprep.subr.mxu0 0.0
    %1535 = vmatpush1.msra.mxu0 0.0
    %1536 = vmatprep.subr.mxu0 0.0
    %1537 = vmatpush1.msra.mxu0 0.0
    %1538 = vmatprep.subr.mxu0 0.0
    %1539 = vmatpush1.msra.mxu0 0.0
    %1540 = vmatprep.subr.mxu0 0.0
    %1541 = vmatpush1.msra.mxu0 0.0
    %1542 = vmatprep.subr.mxu0 0.0
    %1543 = vmatpush1.msra.mxu0 0.0
    %1544 = vmatprep.subr.mxu0 %v889
    %1545 = vmatpush1.msra.mxu0 %v888
    %1546 = vmatprep.subr.mxu0 %v887
    %1547 = vmatpush1.msra.mxu0 %v886
    %1548 = vmatprep.subr.mxu0 %v885
    %1549 = vmatpush1.msra.mxu0 %v884
    %1550 = vmatprep.subr.mxu0 %v883
    %1551 = vmatpush1.msra.mxu0 %v882
    %1552 = vmatprep.subr.mxu0 %v881
    %1553 = vmatpush1.msra.mxu0 %v880
    %1554 = vmatprep.subr.mxu0 %v879
    %1555 = vmatpush1.msra.mxu0 %v878
    %1556 = vmatprep.subr.mxu0 %v877
    %1557 = vmatpush1.msra.mxu0 %v876
    %1558 = vmatprep.subr.mxu0 %v875
    %1559 = vmatpush1.msra.mxu0 %v874
    %1560 = vmatprep.subr.mxu0 0.0
    %1561 = vmatpush2.msra.mxu0 0.0
    %1562 = vmatprep.subr.mxu0 0.0
    %1563 = vmatpush2.msra.mxu0 0.0
    %1564 = vmatprep.subr.mxu0 0.0
    %1565 = vmatpush2.msra.mxu0 0.0
    %1566 = vmatprep.subr.mxu0 0.0
    %1567 = vmatpush2.msra.mxu0 0.0
    %1568 = vmatprep.subr.mxu0 0.0
    %1569 = vmatpush2.msra.mxu0 0.0
    %1570 = vmatprep.subr.mxu0 0.0
    %1571 = vmatpush2.msra.mxu0 0.0
    %1572 = vmatprep.subr.mxu0 0.0
    %1573 = vmatpush2.msra.mxu0 0.0
    %1574 = vmatprep.subr.mxu0 0.0
    %1575 = vmatpush2.msra.mxu0 0.0
    %1576 = vmatprep.subr.mxu0 0.0
    %1577 = vmatpush2.msra.mxu0 0.0
    %1578 = vmatprep.subr.mxu0 0.0
    %1579 = vmatpush2.msra.mxu0 0.0
    %1580 = vmatprep.subr.mxu0 0.0
    %1581 = vmatpush2.msra.mxu0 0.0
    %1582 = vmatprep.subr.mxu0 0.0
    %1583 = vmatpush2.msra.mxu0 0.0
    %1584 = vmatprep.subr.mxu0 0.0
    %1585 = vmatpush2.msra.mxu0 0.0
    %1586 = vmatprep.subr.mxu0 0.0
    %1587 = vmatpush2.msra.mxu0 0.0
    %1588 = vmatprep.subr.mxu0 0.0
    %1589 = vmatpush2.msra.mxu0 0.0
    %1590 = vmatprep.subr.mxu0 0.0
    %1591 = vmatpush2.msra.mxu0 0.0
    %1592 = vmatprep.mubr.f32.mxu0 0.0
    %1593 = vmatmul.mubr.f32.gmra.mxu0 %v1526
    %v1594 = vpop.f32.mrf.mxu0
    %v1595 = vadd.f32 0.0, %v1594
    %v1596 = vpop.f32.mrf.mxu0
    %v1597 = vadd.f32 0.0, %v1596
    %1598 = vdwg.mxu0
    %v1601 = vrot.slane %v1595, 6
    %v1602 = vrot.slane %v1597, 6
    %v1605 = vadd.f32 %v1524, %v1601
    %v1606 = vadd.f32 %v1525, %v1602
    %v1607 = vxor.u32 %v1605, 2147483648
    %v1608 = vxor.u32 %v1606, 2147483648
    %v1609 = vmul.f32 %v1607, 1.442695
    %v1610 = vpow.pop %v1609
    %v1611 = vmul.f32 %v1608, 1.442695
    %v1612 = vpow.pop %v1611
    %v1613 = vadd.f32 %v1610, 1.0
    %v1614 = vadd.f32 %v1612, 1.0
    %v1615 = vrcp.pop %v1613
    %v1616 = vmul.f32 1.0, %v1615
    %v1617 = vrcp.pop %v1614
    %v1618 = vmul.f32 1.0, %v1617
    %v1619 = vtanh.pop %v1606
    %v1621 = vrot.slane %v1505, 6
    %v1623 = vmul.f32 %v1616, %v1621
    %v1624 = vmul.f32 %v1616, %v1619
    %1626 = vrot.lane.b32.xlu0 %v1624, 64
    %v1627 = vpop.permute.xlu0 %1626
    %v1629 = vadd.f32 %v1623, %v1627
    %v1630 = vtanh.pop %v1629
    %v1631 = vmul.f32 %v1618, %v1630
    %1633 = vrot.lane.b32.xlu0 %v1631, 64
    %v1634 = vpop.permute.xlu0 %1633
    %1636 = vst.msk [vmem:[#allocation3 + $0x8] sm:$0xc] %vm1131, %v1634
    %1637 = vst.msk [vmem:[#allocation3 + $0x2] sm:$0xc] %vm1133, %v1634
    %v1638 = vld [vmem:[#allocation2 + $0x10] sm:$0x30]
    %v1639 = vld [vmem:[#allocation2 + $0x18] sm:$0x30]
    %v1640 = vld [vmem:[#allocation2] sm:$0xc]
    %v1641 = vld [vmem:[#allocation2 + $0x8] sm:$0xc]
    %v1644 = vrot.slane %v1640, 6
    %v1645 = vrot.slane %v1641, 6
    %v1648 = vsel %vm765, %v1638, %v1644
    %v1649 = vsel %vm766, %v1639, %v1645
    %v1650 = vrot.slane %v1631, 2
    %1651 = vrot.lane.b32.xlu0 %v1650, 64
    %v1652 = vpop.permute.xlu0 %1651
    %v1653 = vsel %vm902, %v1652, 0
    %1655 = vmatprep.subr.mxu0 0.0
    %1656 = vmatpush1.msra.mxu0 0.0
    %1657 = vmatprep.subr.mxu0 0.0
    %1658 = vmatpush1.msra.mxu0 0.0
    %1659 = vmatprep.subr.mxu0 0.0
    %1660 = vmatpush1.msra.mxu0 0.0
    %1661 = vmatprep.subr.mxu0 0.0
    %1662 = vmatpush1.msra.mxu0 0.0
    %1663 = vmatprep.subr.mxu0 0.0
    %1664 = vmatpush1.msra.mxu0 0.0
    %1665 = vmatprep.subr.mxu0 0.0
    %1666 = vmatpush1.msra.mxu0 0.0
    %1667 = vmatprep.subr.mxu0 0.0
    %1668 = vmatpush1.msra.mxu0 0.0
    %1669 = vmatprep.subr.mxu0 0.0
    %1670 = vmatpush1.msra.mxu0 0.0
    %1671 = vmatprep.subr.mxu0 %v889
    %1672 = vmatpush1.msra.mxu0 %v888
    %1673 = vmatprep.subr.mxu0 %v887
    %1674 = vmatpush1.msra.mxu0 %v886
    %1675 = vmatprep.subr.mxu0 %v885
    %1676 = vmatpush1.msra.mxu0 %v884
    %1677 = vmatprep.subr.mxu0 %v883
    %1678 = vmatpush1.msra.mxu0 %v882
    %1679 = vmatprep.subr.mxu0 %v881
    %1680 = vmatpush1.msra.mxu0 %v880
    %1681 = vmatprep.subr.mxu0 %v879
    %1682 = vmatpush1.msra.mxu0 %v878
    %1683 = vmatprep.subr.mxu0 %v877
    %1684 = vmatpush1.msra.mxu0 %v876
    %1685 = vmatprep.subr.mxu0 %v875
    %1686 = vmatpush1.msra.mxu0 %v874
    %1687 = vmatprep.subr.mxu0 0.0
    %1688 = vmatpush2.msra.mxu0 0.0
    %1689 = vmatprep.subr.mxu0 0.0
    %1690 = vmatpush2.msra.mxu0 0.0
    %1691 = vmatprep.subr.mxu0 0.0
    %1692 = vmatpush2.msra.mxu0 0.0
    %1693 = vmatprep.subr.mxu0 0.0
    %1694 = vmatpush2.msra.mxu0 0.0
    %1695 = vmatprep.subr.mxu0 0.0
    %1696 = vmatpush2.msra.mxu0 0.0
    %1697 = vmatprep.subr.mxu0 0.0
    %1698 = vmatpush2.msra.mxu0 0.0
    %1699 = vmatprep.subr.mxu0 0.0
    %1700 = vmatpush2.msra.mxu0 0.0
    %1701 = vmatprep.subr.mxu0 0.0
    %1702 = vmatpush2.msra.mxu0 0.0
    %1703 = vmatprep.subr.mxu0 0.0
    %1704 = vmatpush2.msra.mxu0 0.0
    %1705 = vmatprep.subr.mxu0 0.0
    %1706 = vmatpush2.msra.mxu0 0.0
    %1707 = vmatprep.subr.mxu0 0.0
    %1708 = vmatpush2.msra.mxu0 0.0
    %1709 = vmatprep.subr.mxu0 0.0
    %1710 = vmatpush2.msra.mxu0 0.0
    %1711 = vmatprep.subr.mxu0 0.0
    %1712 = vmatpush2.msra.mxu0 0.0
    %1713 = vmatprep.subr.mxu0 0.0
    %1714 = vmatpush2.msra.mxu0 0.0
    %1715 = vmatprep.subr.mxu0 0.0
    %1716 = vmatpush2.msra.mxu0 0.0
    %1717 = vmatprep.subr.mxu0 0.0
    %1718 = vmatpush2.msra.mxu0 0.0
    %1719 = vmatprep.mubr.f32.mxu0 0.0
    %1720 = vmatmul.mubr.f32.gmra.mxu0 %v1653
    %v1721 = vpop.f32.mrf.mxu0
    %v1722 = vadd.f32 0.0, %v1721
    %v1723 = vpop.f32.mrf.mxu0
    %v1724 = vadd.f32 0.0, %v1723
    %1725 = vdwg.mxu0
    %v1728 = vrot.slane %v1722, 4
    %v1729 = vrot.slane %v1724, 4
    %v1732 = vadd.f32 %v1648, %v1728
    %v1733 = vadd.f32 %v1649, %v1729
    %v1734 = vxor.u32 %v1732, 2147483648
    %v1735 = vxor.u32 %v1733, 2147483648
    %v1736 = vmul.f32 %v1734, 1.442695
    %v1737 = vpow.pop %v1736
    %v1738 = vmul.f32 %v1735, 1.442695
    %v1739 = vpow.pop %v1738
    %v1740 = vadd.f32 %v1737, 1.0
    %v1741 = vadd.f32 %v1739, 1.0
    %v1742 = vrcp.pop %v1740
    %v1743 = vmul.f32 1.0, %v1742
    %v1744 = vrcp.pop %v1741
    %v1745 = vmul.f32 1.0, %v1744
    %v1746 = vtanh.pop %v1733
    %v1748 = vrot.slane %v1629, 6
    %v1750 = vmul.f32 %v1743, %v1748
    %v1751 = vmul.f32 %v1743, %v1746
    %1753 = vrot.lane.b32.xlu0 %v1751, 64
    %v1754 = vpop.permute.xlu0 %1753
    %v1756 = vadd.f32 %v1750, %v1754
    %v1757 = vtanh.pop %v1756
    %v1758 = vmul.f32 %v1745, %v1757
    %1760 = vrot.lane.b32.xlu0 %v1758, 64
    %v1761 = vpop.permute.xlu0 %1760
    %1763 = vst.msk [vmem:[#allocation3 + $0x8] sm:$0x30] %vm1260, %v1761
    %1764 = vst.msk [vmem:[#allocation3 - $0x2] sm:$0x30] %vm1262, %v1761
    %v1765 = vld [vmem:[#allocation2 + $0x10] sm:$0xc0]
    %v1766 = vld [vmem:[#allocation2 + $0x18] sm:$0xc0]
    %v1767 = vld [vmem:[#allocation2] sm:$0x3]
    %v1768 = vld [vmem:[#allocation2 + $0x8] sm:$0x3]
    %v1771 = vrot.slane %v1767, 2
    %v1772 = vrot.slane %v1768, 2
    %v1775 = vsel %vm765, %v1765, %v1771
    %v1776 = vsel %vm766, %v1766, %v1772
    %v1777 = vrot.slane %v1758, 4
    %1778 = vrot.lane.b32.xlu0 %v1777, 64
    %v1779 = vpop.permute.xlu0 %1778
    %v1780 = vsel %vm902, %v1779, 0
    %1782 = vmatprep.subr.mxu0 0.0
    %1783 = vmatpush1.msra.mxu0 0.0
    %1784 = vmatprep.subr.mxu0 0.0
    %1785 = vmatpush1.msra.mxu0 0.0
    %1786 = vmatprep.subr.mxu0 0.0
    %1787 = vmatpush1.msra.mxu0 0.0
    %1788 = vmatprep.subr.mxu0 0.0
    %1789 = vmatpush1.msra.mxu0 0.0
    %1790 = vmatprep.subr.mxu0 0.0
    %1791 = vmatpush1.msra.mxu0 0.0
    %1792 = vmatprep.subr.mxu0 0.0
    %1793 = vmatpush1.msra.mxu0 0.0
    %1794 = vmatprep.subr.mxu0 0.0
    %1795 = vmatpush1.msra.mxu0 0.0
    %1796 = vmatprep.subr.mxu0 0.0
    %1797 = vmatpush1.msra.mxu0 0.0
    %1798 = vmatprep.subr.mxu0 %v889
    %1799 = vmatpush1.msra.mxu0 %v888
    %1800 = vmatprep.subr.mxu0 %v887
    %1801 = vmatpush1.msra.mxu0 %v886
    %1802 = vmatprep.subr.mxu0 %v885
    %1803 = vmatpush1.msra.mxu0 %v884
    %1804 = vmatprep.subr.mxu0 %v883
    %1805 = vmatpush1.msra.mxu0 %v882
    %1806 = vmatprep.subr.mxu0 %v881
    %1807 = vmatpush1.msra.mxu0 %v880
    %1808 = vmatprep.subr.mxu0 %v879
    %1809 = vmatpush1.msra.mxu0 %v878
    %1810 = vmatprep.subr.mxu0 %v877
    %1811 = vmatpush1.msra.mxu0 %v876
    %1812 = vmatprep.subr.mxu0 %v875
    %1813 = vmatpush1.msra.mxu0 %v874
    %1814 = vmatprep.subr.mxu0 0.0
    %1815 = vmatpush2.msra.mxu0 0.0
    %1816 = vmatprep.subr.mxu0 0.0
    %1817 = vmatpush2.msra.mxu0 0.0
    %1818 = vmatprep.subr.mxu0 0.0
    %1819 = vmatpush2.msra.mxu0 0.0
    %1820 = vmatprep.subr.mxu0 0.0
    %1821 = vmatpush2.msra.mxu0 0.0
    %1822 = vmatprep.subr.mxu0 0.0
    %1823 = vmatpush2.msra.mxu0 0.0
    %1824 = vmatprep.subr.mxu0 0.0
    %1825 = vmatpush2.msra.mxu0 0.0
    %1826 = vmatprep.subr.mxu0 0.0
    %1827 = vmatpush2.msra.mxu0 0.0
    %1828 = vmatprep.subr.mxu0 0.0
    %1829 = vmatpush2.msra.mxu0 0.0
    %1830 = vmatprep.subr.mxu0 0.0
    %1831 = vmatpush2.msra.mxu0 0.0
    %1832 = vmatprep.subr.mxu0 0.0
    %1833 = vmatpush2.msra.mxu0 0.0
    %1834 = vmatprep.subr.mxu0 0.0
    %1835 = vmatpush2.msra.mxu0 0.0
    %1836 = vmatprep.subr.mxu0 0.0
    %1837 = vmatpush2.msra.mxu0 0.0
    %1838 = vmatprep.subr.mxu0 0.0
    %1839 = vmatpush2.msra.mxu0 0.0
    %1840 = vmatprep.subr.mxu0 0.0
    %1841 = vmatpush2.msra.mxu0 0.0
    %1842 = vmatprep.subr.mxu0 0.0
    %1843 = vmatpush2.msra.mxu0 0.0
    %1844 = vmatprep.subr.mxu0 0.0
    %1845 = vmatpush2.msra.mxu0 0.0
    %1846 = vmatprep.mubr.f32.mxu0 0.0
    %1847 = vmatmul.mubr.f32.gmra.mxu0 %v1780
    %v1848 = vpop.f32.mrf.mxu0
    %v1849 = vadd.f32 0.0, %v1848
    %v1850 = vpop.f32.mrf.mxu0
    %v1851 = vadd.f32 0.0, %v1850
    %1852 = vdwg.mxu0
    %v1855 = vrot.slane %v1849, 2
    %v1856 = vrot.slane %v1851, 2
    %v1859 = vadd.f32 %v1775, %v1855
    %v1860 = vadd.f32 %v1776, %v1856
    %v1861 = vxor.u32 %v1859, 2147483648
    %v1862 = vxor.u32 %v1860, 2147483648
    %v1863 = vmul.f32 %v1861, 1.442695
    %v1864 = vpow.pop %v1863
    %v1865 = vmul.f32 %v1862, 1.442695
    %v1866 = vpow.pop %v1865
    %v1867 = vadd.f32 %v1864, 1.0
    %v1868 = vadd.f32 %v1866, 1.0
    %v1869 = vrcp.pop %v1867
    %v1870 = vmul.f32 1.0, %v1869
    %v1871 = vrcp.pop %v1868
    %v1872 = vmul.f32 1.0, %v1871
    %v1873 = vtanh.pop %v1860
    %v1875 = vrot.slane %v1756, 6
    %v1877 = vmul.f32 %v1870, %v1875
    %v1878 = vmul.f32 %v1870, %v1873
    %1880 = vrot.lane.b32.xlu0 %v1878, 64
    %v1881 = vpop.permute.xlu0 %1880
    %v1883 = vadd.f32 %v1877, %v1881
    %v1884 = vtanh.pop %v1883
    %v1885 = vmul.f32 %v1872, %v1884
    %1887 = vrot.lane.b32.xlu0 %v1885, 64
    %v1888 = vpop.permute.xlu0 %1887
    %1890 = vst.msk [vmem:[#allocation3 + $0x8] sm:$0xc0] %vm1389, %v1888
    %1891 = vst.msk [vmem:[#allocation3 - $0x6] sm:$0xc0] %vm1391, %v1888
    %v1892 = vld [vmem:[#allocation3] sm:$0xff]
    %v1893 = vld [vmem:[#allocation3 + $0x8] sm:$0xff]
    %v1894 = vld [vmem:[#allocation13] sm:$0xff]
    %v1895 = vld [vmem:[#allocation13 + $0x8] sm:$0xff]
    %v1896 = vld [vmem:[#allocation13 + $0x10] sm:$0xff]
    %v1897 = vld [vmem:[#allocation13 + $0x18] sm:$0xff]
    %v1898 = vld [vmem:[#allocation13 + $0x20] sm:$0xff]
    %v1899 = vld [vmem:[#allocation13 + $0x28] sm:$0xff]
    %v1900 = vld [vmem:[#allocation13 + $0x30] sm:$0xff]
    %v1901 = vld [vmem:[#allocation13 + $0x38] sm:$0xff]
    %v1902 = vld [vmem:[#allocation13 + $0x40] sm:$0xff]
    %v1903 = vld [vmem:[#allocation13 + $0x48] sm:$0xff]
    %v1904 = vld [vmem:[#allocation13 + $0x50] sm:$0xff]
    %v1905 = vld [vmem:[#allocation13 + $0x58] sm:$0xff]
    %v1906 = vld [vmem:[#allocation13 + $0x60] sm:$0xff]
    %v1907 = vld [vmem:[#allocation13 + $0x68] sm:$0xff]
    %v1908 = vld [vmem:[#allocation13 + $0x70] sm:$0xff]
    %v1909 = vld [vmem:[#allocation13 + $0x78] sm:$0xff]
    %v1910 = vld [vmem:[#allocation16] sm:$0x3]
    %v1912 = vlaneseq
    %v1913 = vshrl.u32 %v1912, 7
    %v1914 = vsub.s32 0, %v1913
    %v1915 = vrot.slane %v1910, %v1914
    %v1916 = vlaneseq
    %v1917 = vshrl.u32 %v1916, 7
    %v1918 = vsub.s32 1, %v1917
    %v1919 = vrot.slane %v1910, %v1918
    %v1923 = vsel %vm902, %v1892, 0
    %v1926 = vsel %vm902, %v1893, 0
    %1928 = vmatprep.subr.mxu0 0.0
    %1929 = vmatpush1.msra.mxu0 0.0
    %1930 = vmatprep.subr.mxu0 0.0
    %1931 = vmatpush1.msra.mxu0 0.0
    %1932 = vmatprep.subr.mxu0 0.0
    %1933 = vmatpush1.msra.mxu0 0.0
    %1934 = vmatprep.subr.mxu0 0.0
    %1935 = vmatpush1.msra.mxu0 0.0
    %1936 = vmatprep.subr.mxu0 0.0
    %1937 = vmatpush1.msra.mxu0 0.0
    %1938 = vmatprep.subr.mxu0 0.0
    %1939 = vmatpush1.msra.mxu0 0.0
    %1940 = vmatprep.subr.mxu0 0.0
    %1941 = vmatpush1.msra.mxu0 0.0
    %1942 = vmatprep.subr.mxu0 0.0
    %1943 = vmatpush1.msra.mxu0 0.0
    %1944 = vmatprep.subr.mxu0 %v1909
    %1945 = vmatpush1.msra.mxu0 %v1908
    %1946 = vmatprep.subr.mxu0 %v1907
    %1947 = vmatpush1.msra.mxu0 %v1906
    %1948 = vmatprep.subr.mxu0 %v1905
    %1949 = vmatpush1.msra.mxu0 %v1904
    %1950 = vmatprep.subr.mxu0 %v1903
    %1951 = vmatpush1.msra.mxu0 %v1902
    %1952 = vmatprep.subr.mxu0 %v1901
    %1953 = vmatpush1.msra.mxu0 %v1900
    %1954 = vmatprep.subr.mxu0 %v1899
    %1955 = vmatpush1.msra.mxu0 %v1898
    %1956 = vmatprep.subr.mxu0 %v1897
    %1957 = vmatpush1.msra.mxu0 %v1896
    %1958 = vmatprep.subr.mxu0 %v1895
    %1959 = vmatpush1.msra.mxu0 %v1894
    %1960 = vmatprep.subr.mxu0 0.0
    %1961 = vmatpush2.msra.mxu0 0.0
    %1962 = vmatprep.subr.mxu0 0.0
    %1963 = vmatpush2.msra.mxu0 0.0
    %1964 = vmatprep.subr.mxu0 0.0
    %1965 = vmatpush2.msra.mxu0 0.0
    %1966 = vmatprep.subr.mxu0 0.0
    %1967 = vmatpush2.msra.mxu0 0.0
    %1968 = vmatprep.subr.mxu0 0.0
    %1969 = vmatpush2.msra.mxu0 0.0
    %1970 = vmatprep.subr.mxu0 0.0
    %1971 = vmatpush2.msra.mxu0 0.0
    %1972 = vmatprep.subr.mxu0 0.0
    %1973 = vmatpush2.msra.mxu0 0.0
    %1974 = vmatprep.subr.mxu0 0.0
    %1975 = vmatpush2.msra.mxu0 0.0
    %1976 = vmatprep.subr.mxu0 0.0
    %1977 = vmatpush2.msra.mxu0 0.0
    %1978 = vmatprep.subr.mxu0 0.0
    %1979 = vmatpush2.msra.mxu0 0.0
    %1980 = vmatprep.subr.mxu0 0.0
    %1981 = vmatpush2.msra.mxu0 0.0
    %1982 = vmatprep.subr.mxu0 0.0
    %1983 = vmatpush2.msra.mxu0 0.0
    %1984 = vmatprep.subr.mxu0 0.0
    %1985 = vmatpush2.msra.mxu0 0.0
    %1986 = vmatprep.subr.mxu0 0.0
    %1987 = vmatpush2.msra.mxu0 0.0
    %1988 = vmatprep.subr.mxu0 0.0
    %1989 = vmatpush2.msra.mxu0 0.0
    %1990 = vmatprep.subr.mxu0 0.0
    %1991 = vmatpush2.msra.mxu0 0.0
    %1992 = vmatprep.mubr.f32.mxu0 0.0
    %1993 = vmatmul.mubr.f32.gmra.mxu0 %v1923
    %v1994 = vpop.f32.mrf.mxu0
    %v1995 = vadd.f32 %v1915, %v1994
    %v1996 = vpop.f32.mrf.mxu0
    %v1997 = vadd.f32 %v1919, %v1996
    %1998 = vmatprep.mubr.f32.mxu0 0.0
    %1999 = vmatmul.mubr.f32.gmra.mxu0 %v1926
    %v2000 = vpop.f32.mrf.mxu0
    %v2001 = vadd.f32 %v1915, %v2000
    %v2002 = vpop.f32.mrf.mxu0
    %v2003 = vadd.f32 %v1919, %v2002
    %2004 = vdwg.mxu0
    %2005 = vst [vmem:[#allocation2] sm:$0xff] %v1995
    %2006 = vst [vmem:[#allocation2 + $0x8] sm:$0xff] %v1997
    %2007 = vst [vmem:[#allocation2 + $0x10] sm:$0xff] %v2001
    %2008 = vst [vmem:[#allocation2 + $0x18] sm:$0xff] %v2003
    %v2009 = vld [vmem:[#allocation14] sm:$0xff]
    %v2010 = vld [vmem:[#allocation14 + $0x8] sm:$0xff]
    %v2011 = vld [vmem:[#allocation14 + $0x10] sm:$0xff]
    %v2012 = vld [vmem:[#allocation14 + $0x18] sm:$0xff]
    %v2013 = vld [vmem:[#allocation14 + $0x20] sm:$0xff]
    %v2014 = vld [vmem:[#allocation14 + $0x28] sm:$0xff]
    %v2015 = vld [vmem:[#allocation14 + $0x30] sm:$0xff]
    %v2016 = vld [vmem:[#allocation14 + $0x38] sm:$0xff]
    %v2017 = vld [vmem:[#allocation14 + $0x40] sm:$0xff]
    %v2018 = vld [vmem:[#allocation14 + $0x48] sm:$0xff]
    %v2019 = vld [vmem:[#allocation14 + $0x50] sm:$0xff]
    %v2020 = vld [vmem:[#allocation14 + $0x58] sm:$0xff]
    %v2021 = vld [vmem:[#allocation14 + $0x60] sm:$0xff]
    %v2022 = vld [vmem:[#allocation14 + $0x68] sm:$0xff]
    %v2023 = vld [vmem:[#allocation14 + $0x70] sm:$0xff]
    %v2024 = vld [vmem:[#allocation14 + $0x78] sm:$0xff]
    %v2025 = vld [vmem:[#allocation2] sm:$0x3]
    %v2026 = vld [vmem:[#allocation2 + $0x8] sm:$0x3]
    %v2027 = vld [vmem:[#allocation2 + $0x10] sm:$0xc0]
    %v2028 = vld [vmem:[#allocation2 + $0x18] sm:$0xc0]
    %v2031 = vrot.slane %v2027, 6
    %v2032 = vrot.slane %v2028, 6
    %v2035 = vsel %vm765, %v2025, %v2031
    %v2036 = vsel %vm766, %v2026, %v2032
    %2037 = vmatprep.subr.mxu0 0.0
    %2038 = vmatpush1.msra.mxu0 0.0
    %2039 = vmatprep.subr.mxu0 0.0
    %2040 = vmatpush1.msra.mxu0 0.0
    %2041 = vmatprep.subr.mxu0 0.0
    %2042 = vmatpush1.msra.mxu0 0.0
    %2043 = vmatprep.subr.mxu0 0.0
    %2044 = vmatpush1.msra.mxu0 0.0
    %2045 = vmatprep.subr.mxu0 0.0
    %2046 = vmatpush1.msra.mxu0 0.0
    %2047 = vmatprep.subr.mxu0 0.0
    %2048 = vmatpush1.msra.mxu0 0.0
    %2049 = vmatprep.subr.mxu0 0.0
    %2050 = vmatpush1.msra.mxu0 0.0
    %2051 = vmatprep.subr.mxu0 0.0
    %2052 = vmatpush1.msra.mxu0 0.0
    %2053 = vmatprep.subr.mxu0 %v2024
    %2054 = vmatpush1.msra.mxu0 %v2023
    %2055 = vmatprep.subr.mxu0 %v2022
    %2056 = vmatpush1.msra.mxu0 %v2021
    %2057 = vmatprep.subr.mxu0 %v2020
    %2058 = vmatpush1.msra.mxu0 %v2019
    %2059 = vmatprep.subr.mxu0 %v2018
    %2060 = vmatpush1.msra.mxu0 %v2017
    %2061 = vmatprep.subr.mxu0 %v2016
    %2062 = vmatpush1.msra.mxu0 %v2015
    %2063 = vmatprep.subr.mxu0 %v2014
    %2064 = vmatpush1.msra.mxu0 %v2013
    %2065 = vmatprep.subr.mxu0 %v2012
    %2066 = vmatpush1.msra.mxu0 %v2011
    %2067 = vmatprep.subr.mxu0 %v2010
    %2068 = vmatpush1.msra.mxu0 %v2009
    %2069 = vmatprep.subr.mxu0 0.0
    %2070 = vmatpush2.msra.mxu0 0.0
    %2071 = vmatprep.subr.mxu0 0.0
    %2072 = vmatpush2.msra.mxu0 0.0
    %2073 = vmatprep.subr.mxu0 0.0
    %2074 = vmatpush2.msra.mxu0 0.0
    %2075 = vmatprep.subr.mxu0 0.0
    %2076 = vmatpush2.msra.mxu0 0.0
    %2077 = vmatprep.subr.mxu0 0.0
    %2078 = vmatpush2.msra.mxu0 0.0
    %2079 = vmatprep.subr.mxu0 0.0
    %2080 = vmatpush2.msra.mxu0 0.0
    %2081 = vmatprep.subr.mxu0 0.0
    %2082 = vmatpush2.msra.mxu0 0.0
    %2083 = vmatprep.subr.mxu0 0.0
    %2084 = vmatpush2.msra.mxu0 0.0
    %2085 = vmatprep.subr.mxu0 0.0
    %2086 = vmatpush2.msra.mxu0 0.0
    %2087 = vmatprep.subr.mxu0 0.0
    %2088 = vmatpush2.msra.mxu0 0.0
    %2089 = vmatprep.subr.mxu0 0.0
    %2090 = vmatpush2.msra.mxu0 0.0
    %2091 = vmatprep.subr.mxu0 0.0
    %2092 = vmatpush2.msra.mxu0 0.0
    %2093 = vmatprep.subr.mxu0 0.0
    %2094 = vmatpush2.msra.mxu0 0.0
    %2095 = vmatprep.subr.mxu0 0.0
    %2096 = vmatpush2.msra.mxu0 0.0
    %2097 = vmatprep.subr.mxu0 0.0
    %2098 = vmatpush2.msra.mxu0 0.0
    %2099 = vmatprep.subr.mxu0 0.0
    %2100 = vmatpush2.msra.mxu0 0.0
    %2101 = vmatprep.mubr.f32.mxu0 0.0
    %2102 = vmatmul.mubr.f32.gmra.mxu0 %v904
    %v2103 = vpop.f32.mrf.mxu0
    %v2104 = vadd.f32 0.0, %v2103
    %v2105 = vpop.f32.mrf.mxu0
    %v2106 = vadd.f32 0.0, %v2105
    %2107 = vdwg.mxu0
    %v2108 = vadd.f32 %v2035, %v2104
    %v2109 = vadd.f32 %v2036, %v2106
    %v2110 = vxor.u32 %v2108, 2147483648
    %v2111 = vxor.u32 %v2109, 2147483648
    %v2112 = vmul.f32 %v2110, 1.442695
    %v2113 = vpow.pop %v2112
    %v2114 = vmul.f32 %v2111, 1.442695
    %v2115 = vpow.pop %v2114
    %v2116 = vadd.f32 %v2113, 1.0
    %v2117 = vadd.f32 %v2115, 1.0
    %v2118 = vrcp.pop %v2116
    %v2119 = vmul.f32 1.0, %v2118
    %v2120 = vrcp.pop %v2117
    %v2121 = vmul.f32 1.0, %v2120
    %v2122 = vtanh.pop %v2109
    %v2123 = vmul.f32 %v2119, 0.0
    %v2124 = vmul.f32 %v2119, %v2122
    %2126 = vrot.lane.b32.xlu0 %v2124, 64
    %v2127 = vpop.permute.xlu0 %2126
    %v2129 = vadd.f32 %v2123, %v2127
    %v2130 = vtanh.pop %v2129
    %v2131 = vmul.f32 %v2121, %v2130
    %2133 = vrot.lane.b32.xlu0 %v2131, 64
    %v2134 = vpop.permute.xlu0 %2133
    %2136 = vst.msk [vmem:[#allocation4] sm:$0x3] %vm1005, %v2134
    %2137 = vst.msk [vmem:[#allocation4 + $0xe] sm:$0x3] %vm1007, %v2134
    %v2138 = vld [vmem:[#allocation2] sm:$0xc]
    %v2139 = vld [vmem:[#allocation2 + $0x8] sm:$0xc]
    %v2140 = vld [vmem:[#allocation2 + $0x10] sm:$0x30]
    %v2141 = vld [vmem:[#allocation2 + $0x18] sm:$0x30]
    %v2144 = vrot.slane %v2140, 2
    %v2145 = vrot.slane %v2141, 2
    %v2148 = vsel %vm765, %v2138, %v2144
    %v2149 = vsel %vm766, %v2139, %v2145
    %v2150 = vsel %vm902, %v2134, 0
    %2152 = vmatprep.subr.mxu0 0.0
    %2153 = vmatpush1.msra.mxu0 0.0
    %2154 = vmatprep.subr.mxu0 0.0
    %2155 = vmatpush1.msra.mxu0 0.0
    %2156 = vmatprep.subr.mxu0 0.0
    %2157 = vmatpush1.msra.mxu0 0.0
    %2158 = vmatprep.subr.mxu0 0.0
    %2159 = vmatpush1.msra.mxu0 0.0
    %2160 = vmatprep.subr.mxu0 0.0
    %2161 = vmatpush1.msra.mxu0 0.0
    %2162 = vmatprep.subr.mxu0 0.0
    %2163 = vmatpush1.msra.mxu0 0.0
    %2164 = vmatprep.subr.mxu0 0.0
    %2165 = vmatpush1.msra.mxu0 0.0
    %2166 = vmatprep.subr.mxu0 0.0
    %2167 = vmatpush1.msra.mxu0 0.0
    %2168 = vmatprep.subr.mxu0 %v2024
    %2169 = vmatpush1.msra.mxu0 %v2023
    %2170 = vmatprep.subr.mxu0 %v2022
    %2171 = vmatpush1.msra.mxu0 %v2021
    %2172 = vmatprep.subr.mxu0 %v2020
    %2173 = vmatpush1.msra.mxu0 %v2019
    %2174 = vmatprep.subr.mxu0 %v2018
    %2175 = vmatpush1.msra.mxu0 %v2017
    %2176 = vmatprep.subr.mxu0 %v2016
    %2177 = vmatpush1.msra.mxu0 %v2015
    %2178 = vmatprep.subr.mxu0 %v2014
    %2179 = vmatpush1.msra.mxu0 %v2013
    %2180 = vmatprep.subr.mxu0 %v2012
    %2181 = vmatpush1.msra.mxu0 %v2011
    %2182 = vmatprep.subr.mxu0 %v2010
    %2183 = vmatpush1.msra.mxu0 %v2009
    %2184 = vmatprep.subr.mxu0 0.0
    %2185 = vmatpush2.msra.mxu0 0.0
    %2186 = vmatprep.subr.mxu0 0.0
    %2187 = vmatpush2.msra.mxu0 0.0
    %2188 = vmatprep.subr.mxu0 0.0
    %2189 = vmatpush2.msra.mxu0 0.0
    %2190 = vmatprep.subr.mxu0 0.0
    %2191 = vmatpush2.msra.mxu0 0.0
    %2192 = vmatprep.subr.mxu0 0.0
    %2193 = vmatpush2.msra.mxu0 0.0
    %2194 = vmatprep.subr.mxu0 0.0
    %2195 = vmatpush2.msra.mxu0 0.0
    %2196 = vmatprep.subr.mxu0 0.0
    %2197 = vmatpush2.msra.mxu0 0.0
    %2198 = vmatprep.subr.mxu0 0.0
    %2199 = vmatpush2.msra.mxu0 0.0
    %2200 = vmatprep.subr.mxu0 0.0
    %2201 = vmatpush2.msra.mxu0 0.0
    %2202 = vmatprep.subr.mxu0 0.0
    %2203 = vmatpush2.msra.mxu0 0.0
    %2204 = vmatprep.subr.mxu0 0.0
    %2205 = vmatpush2.msra.mxu0 0.0
    %2206 = vmatprep.subr.mxu0 0.0
    %2207 = vmatpush2.msra.mxu0 0.0
    %2208 = vmatprep.subr.mxu0 0.0
    %2209 = vmatpush2.msra.mxu0 0.0
    %2210 = vmatprep.subr.mxu0 0.0
    %2211 = vmatpush2.msra.mxu0 0.0
    %2212 = vmatprep.subr.mxu0 0.0
    %2213 = vmatpush2.msra.mxu0 0.0
    %2214 = vmatprep.subr.mxu0 0.0
    %2215 = vmatpush2.msra.mxu0 0.0
    %2216 = vmatprep.mubr.f32.mxu0 0.0
    %2217 = vmatmul.mubr.f32.gmra.mxu0 %v2150
    %v2218 = vpop.f32.mrf.mxu0
    %v2219 = vadd.f32 0.0, %v2218
    %v2220 = vpop.f32.mrf.mxu0
    %v2221 = vadd.f32 0.0, %v2220
    %2222 = vdwg.mxu0
    %v2225 = vrot.slane %v2219, 6
    %v2226 = vrot.slane %v2221, 6
    %v2229 = vadd.f32 %v2148, %v2225
    %v2230 = vadd.f32 %v2149, %v2226
    %v2231 = vxor.u32 %v2229, 2147483648
    %v2232 = vxor.u32 %v2230, 2147483648
    %v2233 = vmul.f32 %v2231, 1.442695
    %v2234 = vpow.pop %v2233
    %v2235 = vmul.f32 %v2232, 1.442695
    %v2236 = vpow.pop %v2235
    %v2237 = vadd.f32 %v2234, 1.0
    %v2238 = vadd.f32 %v2236, 1.0
    %v2239 = vrcp.pop %v2237
    %v2240 = vmul.f32 1.0, %v2239
    %v2241 = vrcp.pop %v2238
    %v2242 = vmul.f32 1.0, %v2241
    %v2243 = vtanh.pop %v2230
    %v2245 = vrot.slane %v2129, 6
    %v2247 = vmul.f32 %v2240, %v2245
    %v2248 = vmul.f32 %v2240, %v2243
    %2250 = vrot.lane.b32.xlu0 %v2248, 64
    %v2251 = vpop.permute.xlu0 %2250
    %v2253 = vadd.f32 %v2247, %v2251
    %v2254 = vtanh.pop %v2253
    %v2255 = vmul.f32 %v2242, %v2254
    %2257 = vrot.lane.b32.xlu0 %v2255, 64
    %v2258 = vpop.permute.xlu0 %2257
    %2260 = vst.msk [vmem:[#allocation4] sm:$0xc] %vm1131, %v2258
    %2261 = vst.msk [vmem:[#allocation4 + $0xa] sm:$0xc] %vm1133, %v2258
    %v2262 = vld [vmem:[#allocation2] sm:$0x30]
    %v2263 = vld [vmem:[#allocation2 + $0x8] sm:$0x30]
    %v2264 = vld [vmem:[#allocation2 + $0x10] sm:$0xc]
    %v2265 = vld [vmem:[#allocation2 + $0x18] sm:$0xc]
    %v2268 = vrot.slane %v2264, 6
    %v2269 = vrot.slane %v2265, 6
    %v2272 = vsel %vm765, %v2262, %v2268
    %v2273 = vsel %vm766, %v2263, %v2269
    %v2274 = vrot.slane %v2255, 2
    %2275 = vrot.lane.b32.xlu0 %v2274, 64
    %v2276 = vpop.permute.xlu0 %2275
    %v2277 = vsel %vm902, %v2276, 0
    %2279 = vmatprep.subr.mxu0 0.0
    %2280 = vmatpush1.msra.mxu0 0.0
    %2281 = vmatprep.subr.mxu0 0.0
    %2282 = vmatpush1.msra.mxu0 0.0
    %2283 = vmatprep.subr.mxu0 0.0
    %2284 = vmatpush1.msra.mxu0 0.0
    %2285 = vmatprep.subr.mxu0 0.0
    %2286 = vmatpush1.msra.mxu0 0.0
    %2287 = vmatprep.subr.mxu0 0.0
    %2288 = vmatpush1.msra.mxu0 0.0
    %2289 = vmatprep.subr.mxu0 0.0
    %2290 = vmatpush1.msra.mxu0 0.0
    %2291 = vmatprep.subr.mxu0 0.0
    %2292 = vmatpush1.msra.mxu0 0.0
    %2293 = vmatprep.subr.mxu0 0.0
    %2294 = vmatpush1.msra.mxu0 0.0
    %2295 = vmatprep.subr.mxu0 %v2024
    %2296 = vmatpush1.msra.mxu0 %v2023
    %2297 = vmatprep.subr.mxu0 %v2022
    %2298 = vmatpush1.msra.mxu0 %v2021
    %2299 = vmatprep.subr.mxu0 %v2020
    %2300 = vmatpush1.msra.mxu0 %v2019
    %2301 = vmatprep.subr.mxu0 %v2018
    %2302 = vmatpush1.msra.mxu0 %v2017
    %2303 = vmatprep.subr.mxu0 %v2016
    %2304 = vmatpush1.msra.mxu0 %v2015
    %2305 = vmatprep.subr.mxu0 %v2014
    %2306 = vmatpush1.msra.mxu0 %v2013
    %2307 = vmatprep.subr.mxu0 %v2012
    %2308 = vmatpush1.msra.mxu0 %v2011
    %2309 = vmatprep.subr.mxu0 %v2010
    %2310 = vmatpush1.msra.mxu0 %v2009
    %2311 = vmatprep.subr.mxu0 0.0
    %2312 = vmatpush2.msra.mxu0 0.0
    %2313 = vmatprep.subr.mxu0 0.0
    %2314 = vmatpush2.msra.mxu0 0.0
    %2315 = vmatprep.subr.mxu0 0.0
    %2316 = vmatpush2.msra.mxu0 0.0
    %2317 = vmatprep.subr.mxu0 0.0
    %2318 = vmatpush2.msra.mxu0 0.0
    %2319 = vmatprep.subr.mxu0 0.0
    %2320 = vmatpush2.msra.mxu0 0.0
    %2321 = vmatprep.subr.mxu0 0.0
    %2322 = vmatpush2.msra.mxu0 0.0
    %2323 = vmatprep.subr.mxu0 0.0
    %2324 = vmatpush2.msra.mxu0 0.0
    %2325 = vmatprep.subr.mxu0 0.0
    %2326 = vmatpush2.msra.mxu0 0.0
    %2327 = vmatprep.subr.mxu0 0.0
    %2328 = vmatpush2.msra.mxu0 0.0
    %2329 = vmatprep.subr.mxu0 0.0
    %2330 = vmatpush2.msra.mxu0 0.0
    %2331 = vmatprep.subr.mxu0 0.0
    %2332 = vmatpush2.msra.mxu0 0.0
    %2333 = vmatprep.subr.mxu0 0.0
    %2334 = vmatpush2.msra.mxu0 0.0
    %2335 = vmatprep.subr.mxu0 0.0
    %2336 = vmatpush2.msra.mxu0 0.0
    %2337 = vmatprep.subr.mxu0 0.0
    %2338 = vmatpush2.msra.mxu0 0.0
    %2339 = vmatprep.subr.mxu0 0.0
    %2340 = vmatpush2.msra.mxu0 0.0
    %2341 = vmatprep.subr.mxu0 0.0
    %2342 = vmatpush2.msra.mxu0 0.0
    %2343 = vmatprep.mubr.f32.mxu0 0.0
    %2344 = vmatmul.mubr.f32.gmra.mxu0 %v2277
    %v2345 = vpop.f32.mrf.mxu0
    %v2346 = vadd.f32 0.0, %v2345
    %v2347 = vpop.f32.mrf.mxu0
    %v2348 = vadd.f32 0.0, %v2347
    %2349 = vdwg.mxu0
    %v2352 = vrot.slane %v2346, 4
    %v2353 = vrot.slane %v2348, 4
    %v2356 = vadd.f32 %v2272, %v2352
    %v2357 = vadd.f32 %v2273, %v2353
    %v2358 = vxor.u32 %v2356, 2147483648
    %v2359 = vxor.u32 %v2357, 2147483648
    %v2360 = vmul.f32 %v2358, 1.442695
    %v2361 = vpow.pop %v2360
    %v2362 = vmul.f32 %v2359, 1.442695
    %v2363 = vpow.pop %v2362
    %v2364 = vadd.f32 %v2361, 1.0
    %v2365 = vadd.f32 %v2363, 1.0
    %v2366 = vrcp.pop %v2364
    %v2367 = vmul.f32 1.0, %v2366
    %v2368 = vrcp.pop %v2365
    %v2369 = vmul.f32 1.0, %v2368
    %v2370 = vtanh.pop %v2357
    %v2372 = vrot.slane %v2253, 6
    %v2374 = vmul.f32 %v2367, %v2372
    %v2375 = vmul.f32 %v2367, %v2370
    %2377 = vrot.lane.b32.xlu0 %v2375, 64
    %v2378 = vpop.permute.xlu0 %2377
    %v2380 = vadd.f32 %v2374, %v2378
    %v2381 = vtanh.pop %v2380
    %v2382 = vmul.f32 %v2369, %v2381
    %2384 = vrot.lane.b32.xlu0 %v2382, 64
    %v2385 = vpop.permute.xlu0 %2384
    %2387 = vst.msk [vmem:[#allocation4] sm:$0x30] %vm1260, %v2385
    %2388 = vst.msk [vmem:[#allocation4 + $0x6] sm:$0x30] %vm1262, %v2385
    %v2389 = vld [vmem:[#allocation2] sm:$0xc0]
    %v2390 = vld [vmem:[#allocation2 + $0x8] sm:$0xc0]
    %v2391 = vld [vmem:[#allocation2 + $0x10] sm:$0x3]
    %v2392 = vld [vmem:[#allocation2 + $0x18] sm:$0x3]
    %v2395 = vrot.slane %v2391, 2
    %v2396 = vrot.slane %v2392, 2
    %v2399 = vsel %vm765, %v2389, %v2395
    %v2400 = vsel %vm766, %v2390, %v2396
    %v2401 = vrot.slane %v2382, 4
    %2402 = vrot.lane.b32.xlu0 %v2401, 64
    %v2403 = vpop.permute.xlu0 %2402
    %v2404 = vsel %vm902, %v2403, 0
    %2406 = vmatprep.subr.mxu0 0.0
    %2407 = vmatpush1.msra.mxu0 0.0
    %2408 = vmatprep.subr.mxu0 0.0
    %2409 = vmatpush1.msra.mxu0 0.0
    %2410 = vmatprep.subr.mxu0 0.0
    %2411 = vmatpush1.msra.mxu0 0.0
    %2412 = vmatprep.subr.mxu0 0.0
    %2413 = vmatpush1.msra.mxu0 0.0
    %2414 = vmatprep.subr.mxu0 0.0
    %2415 = vmatpush1.msra.mxu0 0.0
    %2416 = vmatprep.subr.mxu0 0.0
    %2417 = vmatpush1.msra.mxu0 0.0
    %2418 = vmatprep.subr.mxu0 0.0
    %2419 = vmatpush1.msra.mxu0 0.0
    %2420 = vmatprep.subr.mxu0 0.0
    %2421 = vmatpush1.msra.mxu0 0.0
    %2422 = vmatprep.subr.mxu0 %v2024
    %2423 = vmatpush1.msra.mxu0 %v2023
    %2424 = vmatprep.subr.mxu0 %v2022
    %2425 = vmatpush1.msra.mxu0 %v2021
    %2426 = vmatprep.subr.mxu0 %v2020
    %2427 = vmatpush1.msra.mxu0 %v2019
    %2428 = vmatprep.subr.mxu0 %v2018
    %2429 = vmatpush1.msra.mxu0 %v2017
    %2430 = vmatprep.subr.mxu0 %v2016
    %2431 = vmatpush1.msra.mxu0 %v2015
    %2432 = vmatprep.subr.mxu0 %v2014
    %2433 = vmatpush1.msra.mxu0 %v2013
    %2434 = vmatprep.subr.mxu0 %v2012
    %2435 = vmatpush1.msra.mxu0 %v2011
    %2436 = vmatprep.subr.mxu0 %v2010
    %2437 = vmatpush1.msra.mxu0 %v2009
    %2438 = vmatprep.subr.mxu0 0.0
    %2439 = vmatpush2.msra.mxu0 0.0
    %2440 = vmatprep.subr.mxu0 0.0
    %2441 = vmatpush2.msra.mxu0 0.0
    %2442 = vmatprep.subr.mxu0 0.0
    %2443 = vmatpush2.msra.mxu0 0.0
    %2444 = vmatprep.subr.mxu0 0.0
    %2445 = vmatpush2.msra.mxu0 0.0
    %2446 = vmatprep.subr.mxu0 0.0
    %2447 = vmatpush2.msra.mxu0 0.0
    %2448 = vmatprep.subr.mxu0 0.0
    %2449 = vmatpush2.msra.mxu0 0.0
    %2450 = vmatprep.subr.mxu0 0.0
    %2451 = vmatpush2.msra.mxu0 0.0
    %2452 = vmatprep.subr.mxu0 0.0
    %2453 = vmatpush2.msra.mxu0 0.0
    %2454 = vmatprep.subr.mxu0 0.0
    %2455 = vmatpush2.msra.mxu0 0.0
    %2456 = vmatprep.subr.mxu0 0.0
    %2457 = vmatpush2.msra.mxu0 0.0
    %2458 = vmatprep.subr.mxu0 0.0
    %2459 = vmatpush2.msra.mxu0 0.0
    %2460 = vmatprep.subr.mxu0 0.0
    %2461 = vmatpush2.msra.mxu0 0.0
    %2462 = vmatprep.subr.mxu0 0.0
    %2463 = vmatpush2.msra.mxu0 0.0
    %2464 = vmatprep.subr.mxu0 0.0
    %2465 = vmatpush2.msra.mxu0 0.0
    %2466 = vmatprep.subr.mxu0 0.0
    %2467 = vmatpush2.msra.mxu0 0.0
    %2468 = vmatprep.subr.mxu0 0.0
    %2469 = vmatpush2.msra.mxu0 0.0
    %2470 = vmatprep.mubr.f32.mxu0 0.0
    %2471 = vmatmul.mubr.f32.gmra.mxu0 %v2404
    %v2472 = vpop.f32.mrf.mxu0
    %v2473 = vadd.f32 0.0, %v2472
    %v2474 = vpop.f32.mrf.mxu0
    %v2475 = vadd.f32 0.0, %v2474
    %2476 = vdwg.mxu0
    %v2479 = vrot.slane %v2473, 2
    %v2480 = vrot.slane %v2475, 2
    %v2483 = vadd.f32 %v2399, %v2479
    %v2484 = vadd.f32 %v2400, %v2480
    %v2485 = vxor.u32 %v2483, 2147483648
    %v2486 = vxor.u32 %v2484, 2147483648
    %v2487 = vmul.f32 %v2485, 1.442695
    %v2488 = vpow.pop %v2487
    %v2489 = vmul.f32 %v2486, 1.442695
    %v2490 = vpow.pop %v2489
    %v2491 = vadd.f32 %v2488, 1.0
    %v2492 = vadd.f32 %v2490, 1.0
    %v2493 = vrcp.pop %v2491
    %v2494 = vmul.f32 1.0, %v2493
    %v2495 = vrcp.pop %v2492
    %v2496 = vmul.f32 1.0, %v2495
    %v2497 = vtanh.pop %v2484
    %v2499 = vrot.slane %v2380, 6
    %v2501 = vmul.f32 %v2494, %v2499
    %v2502 = vmul.f32 %v2494, %v2497
    %2504 = vrot.lane.b32.xlu0 %v2502, 64
    %v2505 = vpop.permute.xlu0 %2504
    %v2507 = vadd.f32 %v2501, %v2505
    %v2508 = vtanh.pop %v2507
    %v2509 = vmul.f32 %v2496, %v2508
    %2511 = vrot.lane.b32.xlu0 %v2509, 64
    %v2512 = vpop.permute.xlu0 %2511
    %2514 = vst.msk [vmem:[#allocation4] sm:$0xc0] %vm1389, %v2512
    %2515 = vst.msk [vmem:[#allocation4 + $0x2] sm:$0xc0] %vm1391, %v2512
    %v2516 = vld [vmem:[#allocation2 + $0x10] sm:$0x3]
    %v2517 = vld [vmem:[#allocation2 + $0x18] sm:$0x3]
    %v2518 = vld [vmem:[#allocation2] sm:$0xc0]
    %v2519 = vld [vmem:[#allocation2 + $0x8] sm:$0xc0]
    %v2522 = vrot.slane %v2518, 6
    %v2523 = vrot.slane %v2519, 6
    %v2526 = vsel %vm765, %v2516, %v2522
    %v2527 = vsel %vm766, %v2517, %v2523
    %v2528 = vrot.slane %v2509, 6
    %2529 = vrot.lane.b32.xlu0 %v2528, 64
    %v2530 = vpop.permute.xlu0 %2529
    %v2531 = vsel %vm902, %v2530, 0
    %2533 = vmatprep.subr.mxu0 0.0
    %2534 = vmatpush1.msra.mxu0 0.0
    %2535 = vmatprep.subr.mxu0 0.0
    %2536 = vmatpush1.msra.mxu0 0.0
    %2537 = vmatprep.subr.mxu0 0.0
    %2538 = vmatpush1.msra.mxu0 0.0
    %2539 = vmatprep.subr.mxu0 0.0
    %2540 = vmatpush1.msra.mxu0 0.0
    %2541 = vmatprep.subr.mxu0 0.0
    %2542 = vmatpush1.msra.mxu0 0.0
    %2543 = vmatprep.subr.mxu0 0.0
    %2544 = vmatpush1.msra.mxu0 0.0
    %2545 = vmatprep.subr.mxu0 0.0
    %2546 = vmatpush1.msra.mxu0 0.0
    %2547 = vmatprep.subr.mxu0 0.0
    %2548 = vmatpush1.msra.mxu0 0.0
    %2549 = vmatprep.subr.mxu0 %v2024
    %2550 = vmatpush1.msra.mxu0 %v2023
    %2551 = vmatprep.subr.mxu0 %v2022
    %2552 = vmatpush1.msra.mxu0 %v2021
    %2553 = vmatprep.subr.mxu0 %v2020
    %2554 = vmatpush1.msra.mxu0 %v2019
    %2555 = vmatprep.subr.mxu0 %v2018
    %2556 = vmatpush1.msra.mxu0 %v2017
    %2557 = vmatprep.subr.mxu0 %v2016
    %2558 = vmatpush1.msra.mxu0 %v2015
    %2559 = vmatprep.subr.mxu0 %v2014
    %2560 = vmatpush1.msra.mxu0 %v2013
    %2561 = vmatprep.subr.mxu0 %v2012
    %2562 = vmatpush1.msra.mxu0 %v2011
    %2563 = vmatprep.subr.mxu0 %v2010
    %2564 = vmatpush1.msra.mxu0 %v2009
    %2565 = vmatprep.subr.mxu0 0.0
    %2566 = vmatpush2.msra.mxu0 0.0
    %2567 = vmatprep.subr.mxu0 0.0
    %2568 = vmatpush2.msra.mxu0 0.0
    %2569 = vmatprep.subr.mxu0 0.0
    %2570 = vmatpush2.msra.mxu0 0.0
    %2571 = vmatprep.subr.mxu0 0.0
    %2572 = vmatpush2.msra.mxu0 0.0
    %2573 = vmatprep.subr.mxu0 0.0
    %2574 = vmatpush2.msra.mxu0 0.0
    %2575 = vmatprep.subr.mxu0 0.0
    %2576 = vmatpush2.msra.mxu0 0.0
    %2577 = vmatprep.subr.mxu0 0.0
    %2578 = vmatpush2.msra.mxu0 0.0
    %2579 = vmatprep.subr.mxu0 0.0
    %2580 = vmatpush2.msra.mxu0 0.0
    %2581 = vmatprep.subr.mxu0 0.0
    %2582 = vmatpush2.msra.mxu0 0.0
    %2583 = vmatprep.subr.mxu0 0.0
    %2584 = vmatpush2.msra.mxu0 0.0
    %2585 = vmatprep.subr.mxu0 0.0
    %2586 = vmatpush2.msra.mxu0 0.0
    %2587 = vmatprep.subr.mxu0 0.0
    %2588 = vmatpush2.msra.mxu0 0.0
    %2589 = vmatprep.subr.mxu0 0.0
    %2590 = vmatpush2.msra.mxu0 0.0
    %2591 = vmatprep.subr.mxu0 0.0
    %2592 = vmatpush2.msra.mxu0 0.0
    %2593 = vmatprep.subr.mxu0 0.0
    %2594 = vmatpush2.msra.mxu0 0.0
    %2595 = vmatprep.subr.mxu0 0.0
    %2596 = vmatpush2.msra.mxu0 0.0
    %2597 = vmatprep.mubr.f32.mxu0 0.0
    %2598 = vmatmul.mubr.f32.gmra.mxu0 %v2531
    %v2599 = vpop.f32.mrf.mxu0
    %v2600 = vadd.f32 0.0, %v2599
    %v2601 = vpop.f32.mrf.mxu0
    %v2602 = vadd.f32 0.0, %v2601
    %2603 = vdwg.mxu0
    %v2604 = vadd.f32 %v2526, %v2600
    %v2605 = vadd.f32 %v2527, %v2602
    %v2606 = vxor.u32 %v2604, 2147483648
    %v2607 = vxor.u32 %v2605, 2147483648
    %v2608 = vmul.f32 %v2606, 1.442695
    %v2609 = vpow.pop %v2608
    %v2610 = vmul.f32 %v2607, 1.442695
    %v2611 = vpow.pop %v2610
    %v2612 = vadd.f32 %v2609, 1.0
    %v2613 = vadd.f32 %v2611, 1.0
    %v2614 = vrcp.pop %v2612
    %v2615 = vmul.f32 1.0, %v2614
    %v2616 = vrcp.pop %v2613
    %v2617 = vmul.f32 1.0, %v2616
    %v2618 = vtanh.pop %v2605
    %v2620 = vrot.slane %v2507, 6
    %v2622 = vmul.f32 %v2615, %v2620
    %v2623 = vmul.f32 %v2615, %v2618
    %2625 = vrot.lane.b32.xlu0 %v2623, 64
    %v2626 = vpop.permute.xlu0 %2625
    %v2628 = vadd.f32 %v2622, %v2626
    %v2629 = vtanh.pop %v2628
    %v2630 = vmul.f32 %v2617, %v2629
    %2632 = vrot.lane.b32.xlu0 %v2630, 64
    %v2633 = vpop.permute.xlu0 %2632
    %2635 = vst.msk [vmem:[#allocation4 + $0x8] sm:$0x3] %vm1005, %v2633
    %2636 = vst.msk [vmem:[#allocation4 + $0x6] sm:$0x3] %vm1007, %v2633
    %v2637 = vld [vmem:[#allocation2 + $0x10] sm:$0xc]
    %v2638 = vld [vmem:[#allocation2 + $0x18] sm:$0xc]
    %v2639 = vld [vmem:[#allocation2] sm:$0x30]
    %v2640 = vld [vmem:[#allocation2 + $0x8] sm:$0x30]
    %v2643 = vrot.slane %v2639, 2
    %v2644 = vrot.slane %v2640, 2
    %v2647 = vsel %vm765, %v2637, %v2643
    %v2648 = vsel %vm766, %v2638, %v2644
    %v2649 = vsel %vm902, %v2633, 0
    %2651 = vmatprep.subr.mxu0 0.0
    %2652 = vmatpush1.msra.mxu0 0.0
    %2653 = vmatprep.subr.mxu0 0.0
    %2654 = vmatpush1.msra.mxu0 0.0
    %2655 = vmatprep.subr.mxu0 0.0
    %2656 = vmatpush1.msra.mxu0 0.0
    %2657 = vmatprep.subr.mxu0 0.0
    %2658 = vmatpush1.msra.mxu0 0.0
    %2659 = vmatprep.subr.mxu0 0.0
    %2660 = vmatpush1.msra.mxu0 0.0
    %2661 = vmatprep.subr.mxu0 0.0
    %2662 = vmatpush1.msra.mxu0 0.0
    %2663 = vmatprep.subr.mxu0 0.0
    %2664 = vmatpush1.msra.mxu0 0.0
    %2665 = vmatprep.subr.mxu0 0.0
    %2666 = vmatpush1.msra.mxu0 0.0
    %2667 = vmatprep.subr.mxu0 %v2024
    %2668 = vmatpush1.msra.mxu0 %v2023
    %2669 = vmatprep.subr.mxu0 %v2022
    %2670 = vmatpush1.msra.mxu0 %v2021
    %2671 = vmatprep.subr.mxu0 %v2020
    %2672 = vmatpush1.msra.mxu0 %v2019
    %2673 = vmatprep.subr.mxu0 %v2018
    %2674 = vmatpush1.msra.mxu0 %v2017
    %2675 = vmatprep.subr.mxu0 %v2016
    %2676 = vmatpush1.msra.mxu0 %v2015
    %2677 = vmatprep.subr.mxu0 %v2014
    %2678 = vmatpush1.msra.mxu0 %v2013
    %2679 = vmatprep.subr.mxu0 %v2012
    %2680 = vmatpush1.msra.mxu0 %v2011
    %2681 = vmatprep.subr.mxu0 %v2010
    %2682 = vmatpush1.msra.mxu0 %v2009
    %2683 = vmatprep.subr.mxu0 0.0
    %2684 = vmatpush2.msra.mxu0 0.0
    %2685 = vmatprep.subr.mxu0 0.0
    %2686 = vmatpush2.msra.mxu0 0.0
    %2687 = vmatprep.subr.mxu0 0.0
    %2688 = vmatpush2.msra.mxu0 0.0
    %2689 = vmatprep.subr.mxu0 0.0
    %2690 = vmatpush2.msra.mxu0 0.0
    %2691 = vmatprep.subr.mxu0 0.0
    %2692 = vmatpush2.msra.mxu0 0.0
    %2693 = vmatprep.subr.mxu0 0.0
    %2694 = vmatpush2.msra.mxu0 0.0
    %2695 = vmatprep.subr.mxu0 0.0
    %2696 = vmatpush2.msra.mxu0 0.0
    %2697 = vmatprep.subr.mxu0 0.0
    %2698 = vmatpush2.msra.mxu0 0.0
    %2699 = vmatprep.subr.mxu0 0.0
    %2700 = vmatpush2.msra.mxu0 0.0
    %2701 = vmatprep.subr.mxu0 0.0
    %2702 = vmatpush2.msra.mxu0 0.0
    %2703 = vmatprep.subr.mxu0 0.0
    %2704 = vmatpush2.msra.mxu0 0.0
    %2705 = vmatprep.subr.mxu0 0.0
    %2706 = vmatpush2.msra.mxu0 0.0
    %2707 = vmatprep.subr.mxu0 0.0
    %2708 = vmatpush2.msra.mxu0 0.0
    %2709 = vmatprep.subr.mxu0 0.0
    %2710 = vmatpush2.msra.mxu0 0.0
    %2711 = vmatprep.subr.mxu0 0.0
    %2712 = vmatpush2.msra.mxu0 0.0
    %2713 = vmatprep.subr.mxu0 0.0
    %2714 = vmatpush2.msra.mxu0 0.0
    %2715 = vmatprep.mubr.f32.mxu0 0.0
    %2716 = vmatmul.mubr.f32.gmra.mxu0 %v2649
    %v2717 = vpop.f32.mrf.mxu0
    %v2718 = vadd.f32 0.0, %v2717
    %v2719 = vpop.f32.mrf.mxu0
    %v2720 = vadd.f32 0.0, %v2719
    %2721 = vdwg.mxu0
    %v2724 = vrot.slane %v2718, 6
    %v2725 = vrot.slane %v2720, 6
    %v2728 = vadd.f32 %v2647, %v2724
    %v2729 = vadd.f32 %v2648, %v2725
    %v2730 = vxor.u32 %v2728, 2147483648
    %v2731 = vxor.u32 %v2729, 2147483648
    %v2732 = vmul.f32 %v2730, 1.442695
    %v2733 = vpow.pop %v2732
    %v2734 = vmul.f32 %v2731, 1.442695
    %v2735 = vpow.pop %v2734
    %v2736 = vadd.f32 %v2733, 1.0
    %v2737 = vadd.f32 %v2735, 1.0
    %v2738 = vrcp.pop %v2736
    %v2739 = vmul.f32 1.0, %v2738
    %v2740 = vrcp.pop %v2737
    %v2741 = vmul.f32 1.0, %v2740
    %v2742 = vtanh.pop %v2729
    %v2744 = vrot.slane %v2628, 6
    %v2746 = vmul.f32 %v2739, %v2744
    %v2747 = vmul.f32 %v2739, %v2742
    %2749 = vrot.lane.b32.xlu0 %v2747, 64
    %v2750 = vpop.permute.xlu0 %2749
    %v2752 = vadd.f32 %v2746, %v2750
    %v2753 = vtanh.pop %v2752
    %v2754 = vmul.f32 %v2741, %v2753
    %2756 = vrot.lane.b32.xlu0 %v2754, 64
    %v2757 = vpop.permute.xlu0 %2756
    %2759 = vst.msk [vmem:[#allocation4 + $0x8] sm:$0xc] %vm1131, %v2757
    %2760 = vst.msk [vmem:[#allocation4 + $0x2] sm:$0xc] %vm1133, %v2757
    %v2761 = vld [vmem:[#allocation2 + $0x10] sm:$0x30]
    %v2762 = vld [vmem:[#allocation2 + $0x18] sm:$0x30]
    %v2763 = vld [vmem:[#allocation2] sm:$0xc]
    %v2764 = vld [vmem:[#allocation2 + $0x8] sm:$0xc]
    %v2767 = vrot.slane %v2763, 6
    %v2768 = vrot.slane %v2764, 6
    %v2771 = vsel %vm765, %v2761, %v2767
    %v2772 = vsel %vm766, %v2762, %v2768
    %v2773 = vrot.slane %v2754, 2
    %2774 = vrot.lane.b32.xlu0 %v2773, 64
    %v2775 = vpop.permute.xlu0 %2774
    %v2776 = vsel %vm902, %v2775, 0
    %2778 = vmatprep.subr.mxu0 0.0
    %2779 = vmatpush1.msra.mxu0 0.0
    %2780 = vmatprep.subr.mxu0 0.0
    %2781 = vmatpush1.msra.mxu0 0.0
    %2782 = vmatprep.subr.mxu0 0.0
    %2783 = vmatpush1.msra.mxu0 0.0
    %2784 = vmatprep.subr.mxu0 0.0
    %2785 = vmatpush1.msra.mxu0 0.0
    %2786 = vmatprep.subr.mxu0 0.0
    %2787 = vmatpush1.msra.mxu0 0.0
    %2788 = vmatprep.subr.mxu0 0.0
    %2789 = vmatpush1.msra.mxu0 0.0
    %2790 = vmatprep.subr.mxu0 0.0
    %2791 = vmatpush1.msra.mxu0 0.0
    %2792 = vmatprep.subr.mxu0 0.0
    %2793 = vmatpush1.msra.mxu0 0.0
    %2794 = vmatprep.subr.mxu0 %v2024
    %2795 = vmatpush1.msra.mxu0 %v2023
    %2796 = vmatprep.subr.mxu0 %v2022
    %2797 = vmatpush1.msra.mxu0 %v2021
    %2798 = vmatprep.subr.mxu0 %v2020
    %2799 = vmatpush1.msra.mxu0 %v2019
    %2800 = vmatprep.subr.mxu0 %v2018
    %2801 = vmatpush1.msra.mxu0 %v2017
    %2802 = vmatprep.subr.mxu0 %v2016
    %2803 = vmatpush1.msra.mxu0 %v2015
    %2804 = vmatprep.subr.mxu0 %v2014
    %2805 = vmatpush1.msra.mxu0 %v2013
    %2806 = vmatprep.subr.mxu0 %v2012
    %2807 = vmatpush1.msra.mxu0 %v2011
    %2808 = vmatprep.subr.mxu0 %v2010
    %2809 = vmatpush1.msra.mxu0 %v2009
    %2810 = vmatprep.subr.mxu0 0.0
    %2811 = vmatpush2.msra.mxu0 0.0
    %2812 = vmatprep.subr.mxu0 0.0
    %2813 = vmatpush2.msra.mxu0 0.0
    %2814 = vmatprep.subr.mxu0 0.0
    %2815 = vmatpush2.msra.mxu0 0.0
    %2816 = vmatprep.subr.mxu0 0.0
    %2817 = vmatpush2.msra.mxu0 0.0
    %2818 = vmatprep.subr.mxu0 0.0
    %2819 = vmatpush2.msra.mxu0 0.0
    %2820 = vmatprep.subr.mxu0 0.0
    %2821 = vmatpush2.msra.mxu0 0.0
    %2822 = vmatprep.subr.mxu0 0.0
    %2823 = vmatpush2.msra.mxu0 0.0
    %2824 = vmatprep.subr.mxu0 0.0
    %2825 = vmatpush2.msra.mxu0 0.0
    %2826 = vmatprep.subr.mxu0 0.0
    %2827 = vmatpush2.msra.mxu0 0.0
    %2828 = vmatprep.subr.mxu0 0.0
    %2829 = vmatpush2.msra.mxu0 0.0
    %2830 = vmatprep.subr.mxu0 0.0
    %2831 = vmatpush2.msra.mxu0 0.0
    %2832 = vmatprep.subr.mxu0 0.0
    %2833 = vmatpush2.msra.mxu0 0.0
    %2834 = vmatprep.subr.mxu0 0.0
    %2835 = vmatpush2.msra.mxu0 0.0
    %2836 = vmatprep.subr.mxu0 0.0
    %2837 = vmatpush2.msra.mxu0 0.0
    %2838 = vmatprep.subr.mxu0 0.0
    %2839 = vmatpush2.msra.mxu0 0.0
    %2840 = vmatprep.subr.mxu0 0.0
    %2841 = vmatpush2.msra.mxu0 0.0
    %2842 = vmatprep.mubr.f32.mxu0 0.0
    %2843 = vmatmul.mubr.f32.gmra.mxu0 %v2776
    %v2844 = vpop.f32.mrf.mxu0
    %v2845 = vadd.f32 0.0, %v2844
    %v2846 = vpop.f32.mrf.mxu0
    %v2847 = vadd.f32 0.0, %v2846
    %2848 = vdwg.mxu0
    %v2851 = vrot.slane %v2845, 4
    %v2852 = vrot.slane %v2847, 4
    %v2855 = vadd.f32 %v2771, %v2851
    %v2856 = vadd.f32 %v2772, %v2852
    %v2857 = vxor.u32 %v2855, 2147483648
    %v2858 = vxor.u32 %v2856, 2147483648
    %v2859 = vmul.f32 %v2857, 1.442695
    %v2860 = vpow.pop %v2859
    %v2861 = vmul.f32 %v2858, 1.442695
    %v2862 = vpow.pop %v2861
    %v2863 = vadd.f32 %v2860, 1.0
    %v2864 = vadd.f32 %v2862, 1.0
    %v2865 = vrcp.pop %v2863
    %v2866 = vmul.f32 1.0, %v2865
    %v2867 = vrcp.pop %v2864
    %v2868 = vmul.f32 1.0, %v2867
    %v2869 = vtanh.pop %v2856
    %v2871 = vrot.slane %v2752, 6
    %v2873 = vmul.f32 %v2866, %v2871
    %v2874 = vmul.f32 %v2866, %v2869
    %2876 = vrot.lane.b32.xlu0 %v2874, 64
    %v2877 = vpop.permute.xlu0 %2876
    %v2879 = vadd.f32 %v2873, %v2877
    %v2880 = vtanh.pop %v2879
    %v2881 = vmul.f32 %v2868, %v2880
    %2883 = vrot.lane.b32.xlu0 %v2881, 64
    %v2884 = vpop.permute.xlu0 %2883
    %2886 = vst.msk [vmem:[#allocation4 + $0x8] sm:$0x30] %vm1260, %v2884
    %2887 = vst.msk [vmem:[#allocation4 - $0x2] sm:$0x30] %vm1262, %v2884
    %v2888 = vld [vmem:[#allocation2 + $0x10] sm:$0xc0]
    %v2889 = vld [vmem:[#allocation2 + $0x18] sm:$0xc0]
    %v2890 = vld [vmem:[#allocation2] sm:$0x3]
    %v2891 = vld [vmem:[#allocation2 + $0x8] sm:$0x3]
    %v2894 = vrot.slane %v2890, 2
    %v2895 = vrot.slane %v2891, 2
    %v2898 = vsel %vm765, %v2888, %v2894
    %v2899 = vsel %vm766, %v2889, %v2895
    %v2900 = vrot.slane %v2881, 4
    %2901 = vrot.lane.b32.xlu0 %v2900, 64
    %v2902 = vpop.permute.xlu0 %2901
    %v2903 = vsel %vm902, %v2902, 0
    %2905 = vmatprep.subr.mxu0 0.0
    %2906 = vmatpush1.msra.mxu0 0.0
    %2907 = vmatprep.subr.mxu0 0.0
    %2908 = vmatpush1.msra.mxu0 0.0
    %2909 = vmatprep.subr.mxu0 0.0
    %2910 = vmatpush1.msra.mxu0 0.0
    %2911 = vmatprep.subr.mxu0 0.0
    %2912 = vmatpush1.msra.mxu0 0.0
    %2913 = vmatprep.subr.mxu0 0.0
    %2914 = vmatpush1.msra.mxu0 0.0
    %2915 = vmatprep.subr.mxu0 0.0
    %2916 = vmatpush1.msra.mxu0 0.0
    %2917 = vmatprep.subr.mxu0 0.0
    %2918 = vmatpush1.msra.mxu0 0.0
    %2919 = vmatprep.subr.mxu0 0.0
    %2920 = vmatpush1.msra.mxu0 0.0
    %2921 = vmatprep.subr.mxu0 %v2024
    %2922 = vmatpush1.msra.mxu0 %v2023
    %2923 = vmatprep.subr.mxu0 %v2022
    %2924 = vmatpush1.msra.mxu0 %v2021
    %2925 = vmatprep.subr.mxu0 %v2020
    %2926 = vmatpush1.msra.mxu0 %v2019
    %2927 = vmatprep.subr.mxu0 %v2018
    %2928 = vmatpush1.msra.mxu0 %v2017
    %2929 = vmatprep.subr.mxu0 %v2016
    %2930 = vmatpush1.msra.mxu0 %v2015
    %2931 = vmatprep.subr.mxu0 %v2014
    %2932 = vmatpush1.msra.mxu0 %v2013
    %2933 = vmatprep.subr.mxu0 %v2012
    %2934 = vmatpush1.msra.mxu0 %v2011
    %2935 = vmatprep.subr.mxu0 %v2010
    %2936 = vmatpush1.msra.mxu0 %v2009
    %2937 = vmatprep.subr.mxu0 0.0
    %2938 = vmatpush2.msra.mxu0 0.0
    %2939 = vmatprep.subr.mxu0 0.0
    %2940 = vmatpush2.msra.mxu0 0.0
    %2941 = vmatprep.subr.mxu0 0.0
    %2942 = vmatpush2.msra.mxu0 0.0
    %2943 = vmatprep.subr.mxu0 0.0
    %2944 = vmatpush2.msra.mxu0 0.0
    %2945 = vmatprep.subr.mxu0 0.0
    %2946 = vmatpush2.msra.mxu0 0.0
    %2947 = vmatprep.subr.mxu0 0.0
    %2948 = vmatpush2.msra.mxu0 0.0
    %2949 = vmatprep.subr.mxu0 0.0
    %2950 = vmatpush2.msra.mxu0 0.0
    %2951 = vmatprep.subr.mxu0 0.0
    %2952 = vmatpush2.msra.mxu0 0.0
    %2953 = vmatprep.subr.mxu0 0.0
    %2954 = vmatpush2.msra.mxu0 0.0
    %2955 = vmatprep.subr.mxu0 0.0
    %2956 = vmatpush2.msra.mxu0 0.0
    %2957 = vmatprep.subr.mxu0 0.0
    %2958 = vmatpush2.msra.mxu0 0.0
    %2959 = vmatprep.subr.mxu0 0.0
    %2960 = vmatpush2.msra.mxu0 0.0
    %2961 = vmatprep.subr.mxu0 0.0
    %2962 = vmatpush2.msra.mxu0 0.0
    %2963 = vmatprep.subr.mxu0 0.0
    %2964 = vmatpush2.msra.mxu0 0.0
    %2965 = vmatprep.subr.mxu0 0.0
    %2966 = vmatpush2.msra.mxu0 0.0
    %2967 = vmatprep.subr.mxu0 0.0
    %2968 = vmatpush2.msra.mxu0 0.0
    %2969 = vmatprep.mubr.f32.mxu0 0.0
    %2970 = vmatmul.mubr.f32.gmra.mxu0 %v2903
    %v2971 = vpop.f32.mrf.mxu0
    %v2972 = vadd.f32 0.0, %v2971
    %v2973 = vpop.f32.mrf.mxu0
    %v2974 = vadd.f32 0.0, %v2973
    %2975 = vdwg.mxu0
    %v2978 = vrot.slane %v2972, 2
    %v2979 = vrot.slane %v2974, 2
    %v2982 = vadd.f32 %v2898, %v2978
    %v2983 = vadd.f32 %v2899, %v2979
    %v2984 = vxor.u32 %v2982, 2147483648
    %v2985 = vxor.u32 %v2983, 2147483648
    %v2986 = vmul.f32 %v2984, 1.442695
    %v2987 = vpow.pop %v2986
    %v2988 = vmul.f32 %v2985, 1.442695
    %v2989 = vpow.pop %v2988
    %v2990 = vadd.f32 %v2987, 1.0
    %v2991 = vadd.f32 %v2989, 1.0
    %v2992 = vrcp.pop %v2990
    %v2993 = vmul.f32 1.0, %v2992
    %v2994 = vrcp.pop %v2991
    %v2995 = vmul.f32 1.0, %v2994
    %v2996 = vtanh.pop %v2983
    %v2998 = vrot.slane %v2879, 6
    %v3000 = vmul.f32 %v2993, %v2998
    %v3001 = vmul.f32 %v2993, %v2996
    %3003 = vrot.lane.b32.xlu0 %v3001, 64
    %v3004 = vpop.permute.xlu0 %3003
    %v3006 = vadd.f32 %v3000, %v3004
    %v3007 = vtanh.pop %v3006
    %v3008 = vmul.f32 %v2995, %v3007
    %3010 = vrot.lane.b32.xlu0 %v3008, 64
    %v3011 = vpop.permute.xlu0 %3010
    %3013 = vst.msk [vmem:[#allocation4 + $0x8] sm:$0xc0] %vm1389, %v3011
    %3014 = vst.msk [vmem:[#allocation4 - $0x6] sm:$0xc0] %vm1391, %v3011
    %v3015 = vld [vmem:[#allocation4] sm:$0xff]
    %v3016 = vld [vmem:[#allocation4 + $0x8] sm:$0xff]
    %v3017 = vld [vmem:[%s11] sm:$0xff]
    %v3018 = vld [vmem:[%s11 + $0x8] sm:$0xff]
    %v3019 = vld [vmem:[%s11 + $0x10] sm:$0xff]
    %v3020 = vld [vmem:[%s11 + $0x18] sm:$0xff]
    %v3021 = vld [vmem:[%s11 + $0x20] sm:$0xff]
    %v3022 = vld [vmem:[%s11 + $0x28] sm:$0xff]
    %v3023 = vld [vmem:[%s11 + $0x30] sm:$0xff]
    %v3024 = vld [vmem:[%s11 + $0x38] sm:$0xff]
    %v3025 = vld [vmem:[%s11 + $0x40] sm:$0xff]
    %v3026 = vld [vmem:[%s11 + $0x48] sm:$0xff]
    %v3027 = vld [vmem:[%s11 + $0x50] sm:$0xff]
    %v3028 = vld [vmem:[%s11 + $0x58] sm:$0xff]
    %v3029 = vld [vmem:[%s11 + $0x60] sm:$0xff]
    %v3030 = vld [vmem:[%s11 + $0x68] sm:$0xff]
    %v3031 = vld [vmem:[%s11 + $0x70] sm:$0xff]
    %v3032 = vld [vmem:[%s11 + $0x78] sm:$0xff]
    %v3033 = vld [vmem:[%s11 + $0x80] sm:$0xff]
    %v3034 = vld [vmem:[%s11 + $0x88] sm:$0xff]
    %v3035 = vld [vmem:[%s11 + $0x90] sm:$0xff]
    %v3036 = vld [vmem:[%s11 + $0x98] sm:$0xff]
    %v3037 = vld [vmem:[%s11 + $0xa0] sm:$0xff]
    %v3038 = vld [vmem:[%s11 + $0xa8] sm:$0xff]
    %v3039 = vld [vmem:[%s11 + $0xb0] sm:$0xff]
    %v3040 = vld [vmem:[%s11 + $0xb8] sm:$0xff]
    %v3041 = vld [vmem:[%s12] sm:$0x7]
    %v3043 = vlaneseq
    %v3044 = vshrl.u32 %v3043, 7
    %v3045 = vsub.s32 0, %v3044
    %v3046 = vrot.slane %v3041, %v3045
    %v3047 = vlaneseq
    %v3048 = vshrl.u32 %v3047, 7
    %v3049 = vsub.s32 1, %v3048
    %v3050 = vrot.slane %v3041, %v3049
    %v3051 = vlaneseq
    %v3052 = vshrl.u32 %v3051, 7
    %v3053 = vsub.s32 2, %v3052
    %v3054 = vrot.slane %v3041, %v3053
    %v3059 = vsel %vm902, %v3015, 0
    %v3062 = vsel %vm902, %v3016, 0
    %3064 = vmatprep.subr.mxu0 0.0
    %3065 = vmatpush1.msra.mxu0 0.0
    %3066 = vmatprep.subr.mxu0 0.0
    %3067 = vmatpush1.msra.mxu0 0.0
    %3068 = vmatprep.subr.mxu0 0.0
    %3069 = vmatpush1.msra.mxu0 0.0
    %3070 = vmatprep.subr.mxu0 0.0
    %3071 = vmatpush1.msra.mxu0 0.0
    %3072 = vmatprep.subr.mxu0 0.0
    %3073 = vmatpush1.msra.mxu0 0.0
    %3074 = vmatprep.subr.mxu0 0.0
    %3075 = vmatpush1.msra.mxu0 0.0
    %3076 = vmatprep.subr.mxu0 0.0
    %3077 = vmatpush1.msra.mxu0 0.0
    %3078 = vmatprep.subr.mxu0 0.0
    %3079 = vmatpush1.msra.mxu0 0.0
    %3080 = vmatprep.subr.mxu0 %v3039
    %3081 = vmatpush1.msra.mxu0 %v3038
    %3082 = vmatprep.subr.mxu0 %v3036
    %3083 = vmatpush1.msra.mxu0 %v3035
    %3084 = vmatprep.subr.mxu0 %v3033
    %3085 = vmatpush1.msra.mxu0 %v3032
    %3086 = vmatprep.subr.mxu0 %v3030
    %3087 = vmatpush1.msra.mxu0 %v3029
    %3088 = vmatprep.subr.mxu0 %v3027
    %3089 = vmatpush1.msra.mxu0 %v3026
    %3090 = vmatprep.subr.mxu0 %v3024
    %3091 = vmatpush1.msra.mxu0 %v3023
    %3092 = vmatprep.subr.mxu0 %v3021
    %3093 = vmatpush1.msra.mxu0 %v3020
    %3094 = vmatprep.subr.mxu0 %v3018
    %3095 = vmatpush1.msra.mxu0 %v3017
    %3096 = vmatprep.subr.mxu0 0.0
    %3097 = vmatpush2.msra.mxu0 0.0
    %3098 = vmatprep.subr.mxu0 0.0
    %3099 = vmatpush2.msra.mxu0 0.0
    %3100 = vmatprep.subr.mxu0 0.0
    %3101 = vmatpush2.msra.mxu0 0.0
    %3102 = vmatprep.subr.mxu0 0.0
    %3103 = vmatpush2.msra.mxu0 0.0
    %3104 = vmatprep.subr.mxu0 0.0
    %3105 = vmatpush2.msra.mxu0 0.0
    %3106 = vmatprep.subr.mxu0 0.0
    %3107 = vmatpush2.msra.mxu0 0.0
    %3108 = vmatprep.subr.mxu0 0.0
    %3109 = vmatpush2.msra.mxu0 0.0
    %3110 = vmatprep.subr.mxu0 0.0
    %3111 = vmatpush2.msra.mxu0 0.0
    %3112 = vmatprep.subr.mxu0 0.0
    %3113 = vmatpush2.msra.mxu0 0.0
    %3114 = vmatprep.subr.mxu0 0.0
    %3115 = vmatpush2.msra.mxu0 0.0
    %3116 = vmatprep.subr.mxu0 0.0
    %3117 = vmatpush2.msra.mxu0 0.0
    %3118 = vmatprep.subr.mxu0 0.0
    %3119 = vmatpush2.msra.mxu0 0.0
    %3120 = vmatprep.subr.mxu0 0.0
    %3121 = vmatpush2.msra.mxu0 0.0
    %3122 = vmatprep.subr.mxu0 0.0
    %3123 = vmatpush2.msra.mxu0 0.0
    %3124 = vmatprep.subr.mxu0 0.0
    %3125 = vmatpush2.msra.mxu0 0.0
    %3126 = vmatprep.subr.mxu0 0.0
    %3127 = vmatpush2.msra.mxu0 0.0
    %3128 = vmatprep.mubr.f32.mxu0 0.0
    %3129 = vmatmul.mubr.f32.gmra.mxu0 %v3059
    %v3130 = vpop.f32.mrf.mxu0
    %v3131 = vadd.f32 %v3046, %v3130
    %v3132 = vpop.f32.mrf.mxu0
    %v3133 = vadd.f32 %v3050, %v3132
    %3134 = vmatprep.mubr.f32.mxu0 0.0
    %3135 = vmatmul.mubr.f32.gmra.mxu0 %v3062
    %v3136 = vpop.f32.mrf.mxu0
    %v3137 = vadd.f32 %v3046, %v3136
    %v3138 = vpop.f32.mrf.mxu0
    %v3139 = vadd.f32 %v3050, %v3138
    %3140 = vdwg.mxu0
    %3141 = vmatprep.subr.mxu0 0.0
    %3142 = vmatpush1.msra.mxu0 0.0
    %3143 = vmatprep.subr.mxu0 0.0
    %3144 = vmatpush1.msra.mxu0 0.0
    %3145 = vmatprep.subr.mxu0 0.0
    %3146 = vmatpush1.msra.mxu0 0.0
    %3147 = vmatprep.subr.mxu0 0.0
    %3148 = vmatpush1.msra.mxu0 0.0
    %3149 = vmatprep.subr.mxu0 0.0
    %3150 = vmatpush1.msra.mxu0 0.0
    %3151 = vmatprep.subr.mxu0 0.0
    %3152 = vmatpush1.msra.mxu0 0.0
    %3153 = vmatprep.subr.mxu0 0.0
    %3154 = vmatpush1.msra.mxu0 0.0
    %3155 = vmatprep.subr.mxu0 0.0
    %3156 = vmatpush1.msra.mxu0 0.0
    %3157 = vmatprep.subr.mxu0 0.0
    %3158 = vmatpush1.msra.mxu0 %v3040
    %3159 = vmatprep.subr.mxu0 0.0
    %3160 = vmatpush1.msra.mxu0 %v3037
    %3161 = vmatprep.subr.mxu0 0.0
    %3162 = vmatpush1.msra.mxu0 %v3034
    %3163 = vmatprep.subr.mxu0 0.0
    %3164 = vmatpush1.msra.mxu0 %v3031
    %3165 = vmatprep.subr.mxu0 0.0
    %3166 = vmatpush1.msra.mxu0 %v3028
    %3167 = vmatprep.subr.mxu0 0.0
    %3168 = vmatpush1.msra.mxu0 %v3025
    %3169 = vmatprep.subr.mxu0 0.0
    %3170 = vmatpush1.msra.mxu0 %v3022
    %3171 = vmatprep.subr.mxu0 0.0
    %3172 = vmatpush1.msra.mxu0 %v3019
    %3173 = vmatprep.subr.mxu0 0.0
    %3174 = vmatpush2.msra.mxu0 0.0
    %3175 = vmatprep.subr.mxu0 0.0
    %3176 = vmatpush2.msra.mxu0 0.0
    %3177 = vmatprep.subr.mxu0 0.0
    %3178 = vmatpush2.msra.mxu0 0.0
    %3179 = vmatprep.subr.mxu0 0.0
    %3180 = vmatpush2.msra.mxu0 0.0
    %3181 = vmatprep.subr.mxu0 0.0
    %3182 = vmatpush2.msra.mxu0 0.0
    %3183 = vmatprep.subr.mxu0 0.0
    %3184 = vmatpush2.msra.mxu0 0.0
    %3185 = vmatprep.subr.mxu0 0.0
    %3186 = vmatpush2.msra.mxu0 0.0
    %3187 = vmatprep.subr.mxu0 0.0
    %3188 = vmatpush2.msra.mxu0 0.0
    %3189 = vmatprep.subr.mxu0 0.0
    %3190 = vmatpush2.msra.mxu0 0.0
    %3191 = vmatprep.subr.mxu0 0.0
    %3192 = vmatpush2.msra.mxu0 0.0
    %3193 = vmatprep.subr.mxu0 0.0
    %3194 = vmatpush2.msra.mxu0 0.0
    %3195 = vmatprep.subr.mxu0 0.0
    %3196 = vmatpush2.msra.mxu0 0.0
    %3197 = vmatprep.subr.mxu0 0.0
    %3198 = vmatpush2.msra.mxu0 0.0
    %3199 = vmatprep.subr.mxu0 0.0
    %3200 = vmatpush2.msra.mxu0 0.0
    %3201 = vmatprep.subr.mxu0 0.0
    %3202 = vmatpush2.msra.mxu0 0.0
    %3203 = vmatprep.subr.mxu0 0.0
    %3204 = vmatpush2.msra.mxu0 0.0
    %3205 = vmatprep.mubr.f32.mxu0 0.0
    %3206 = vmatmul.mubr.f32.gmra.mxu0 %v3059
    %v3207 = vpop.f32.mrf.mxu0
    %v3208 = vadd.f32 %v3054, %v3207
    %v3209 = vpop.f32.mrf.mxu0
    %3210 = vmatprep.mubr.f32.mxu0 0.0
    %3211 = vmatmul.mubr.f32.gmra.mxu0 %v3062
    %v3212 = vpop.f32.mrf.mxu0
    %v3213 = vadd.f32 %v3054, %v3212
    %v3214 = vpop.f32.mrf.mxu0
    %3215 = vdwg.mxu0
    %3216 = vmatprep.subr.mxu0 0.0
    %3217 = vmatpush1.xpose.msra.mxu0 0.0
    %3218 = vmatprep.subr.mxu0 0.0
    %3219 = vmatpush1.xpose.msra.mxu0 0.0
    %3220 = vmatprep.subr.mxu0 0.0
    %3221 = vmatpush1.xpose.msra.mxu0 0.0
    %3222 = vmatprep.subr.mxu0 0.0
    %3223 = vmatpush1.xpose.msra.mxu0 0.0
    %3224 = vmatprep.subr.mxu0 0.0
    %3225 = vmatpush1.xpose.msra.mxu0 0.0
    %3226 = vmatprep.subr.mxu0 0.0
    %3227 = vmatpush1.xpose.msra.mxu0 0.0
    %3228 = vmatprep.subr.mxu0 0.0
    %3229 = vmatpush1.xpose.msra.mxu0 0.0
    %3230 = vmatprep.subr.mxu0 0.0
    %3231 = vmatpush1.xpose.msra.mxu0 0.0
    %3232 = vmatprep.subr.mxu0 0.0
    %3233 = vmatpush1.xpose.msra.mxu0 0.0
    %3234 = vmatprep.subr.mxu0 0.0
    %3235 = vmatpush1.xpose.msra.mxu0 0.0
    %3236 = vmatprep.subr.mxu0 0.0
    %3237 = vmatpush1.xpose.msra.mxu0 0.0
    %3238 = vmatprep.subr.mxu0 0.0
    %3239 = vmatpush1.xpose.msra.mxu0 0.0
    %3240 = vmatprep.subr.mxu0 0.0
    %3241 = vmatpush1.xpose.msra.mxu0 0.0
    %3242 = vmatprep.subr.mxu0 0.0
    %3243 = vmatpush1.xpose.msra.mxu0 0.0
    %3244 = vmatprep.subr.mxu0 0.0
    %3245 = vmatpush1.xpose.msra.mxu0 %v3139
    %3246 = vmatprep.subr.mxu0 0.0
    %3247 = vmatpush1.xpose.msra.mxu0 %v3133
    %3248 = vmatprep.subr.mxu0 0.0
    %3249 = vmatpush2.xpose.msra.mxu0 0.0
    %3250 = vmatprep.subr.mxu0 0.0
    %3251 = vmatpush2.xpose.msra.mxu0 0.0
    %3252 = vmatprep.subr.mxu0 0.0
    %3253 = vmatpush2.xpose.msra.mxu0 0.0
    %3254 = vmatprep.subr.mxu0 0.0
    %3255 = vmatpush2.xpose.msra.mxu0 0.0
    %3256 = vmatprep.subr.mxu0 0.0
    %3257 = vmatpush2.xpose.msra.mxu0 0.0
    %3258 = vmatprep.subr.mxu0 0.0
    %3259 = vmatpush2.xpose.msra.mxu0 0.0
    %3260 = vmatprep.subr.mxu0 0.0
    %3261 = vmatpush2.xpose.msra.mxu0 0.0
    %3262 = vmatprep.subr.mxu0 0.0
    %3263 = vmatpush2.xpose.msra.mxu0 0.0
    %3264 = vmatprep.subr.mxu0 0.0
    %3265 = vmatpush2.xpose.msra.mxu0 0.0
    %3266 = vmatprep.subr.mxu0 0.0
    %3267 = vmatpush2.xpose.msra.mxu0 0.0
    %3268 = vmatprep.subr.mxu0 0.0
    %3269 = vmatpush2.xpose.msra.mxu0 0.0
    %3270 = vmatprep.subr.mxu0 0.0
    %3271 = vmatpush2.xpose.msra.mxu0 0.0
    %3272 = vmatprep.subr.mxu0 0.0
    %3273 = vmatpush2.xpose.msra.mxu0 0.0
    %3274 = vmatprep.subr.mxu0 0.0
    %3275 = vmatpush2.xpose.msra.mxu0 0.0
    %3276 = vmatprep.subr.mxu0 0.0
    %3277 = vmatpush2.xpose.msra.mxu0 0.0
    %3278 = vmatprep.subr.mxu0 0.0
    %3279 = vmatpush2.xpose.msra.mxu0 0.0
    %3280 = vmatprep.mubr.f32.mxu0 0.0
    %3281 = vmatmul.mubr.f32.gmra.mxu0 %v3131
    %v3282 = vpop.f32.mrf.mxu0
    %v3283 = vadd.f32 0.0, %v3282
    %v3284 = vpop.f32.mrf.mxu0
    %3285 = vmatprep.mubr.f32.mxu0 0.0
    %3286 = vmatmul.mubr.f32.gmra.mxu0 %v3137
    %v3287 = vpop.f32.mrf.mxu0
    %v3288 = vadd.f32 0.0, %v3287
    %v3289 = vpop.f32.mrf.mxu0
    %3290 = vdwg.mxu0
    %v3291 = vmul.f32 %v3283, 0.088388346
    %v3292 = vmul.f32 %v3288, 0.088388346
    %v3293 = vlaneseq
    %v3294 = vshrl.u32 %v3293, 7
    %v3295 = vadd.s32 %v3294, 8
    %vm3296 = vcmp.lt.s32.totalorder %v3294, 0
    %v3297 = vsub.s32 0, %v3294
    %v3298 = vsel %vm3296, %v3297, %v3294
    %v3299 = vshrl.u32 %v3298, 1
    %v3300 = vand.u32 %v3298, 1
    %v3301 = vsub.s32 0, %v3300
    %v3302 = vsel %vm3296, %v3301, %v3300
    %vm3303 = vcmp.lt.s32.totalorder %v3295, 0
    %v3304 = vsub.s32 0, %v3295
    %v3305 = vsel %vm3303, %v3304, %v3295
    %v3306 = vshrl.u32 %v3305, 1
    %v3307 = vand.u32 %v3305, 1
    %v3308 = vsub.s32 0, %v3307
    %v3309 = vsel %vm3303, %v3308, %v3307
    %vm3310 = vcmp.ne.s32.totalorder %v3302, 0
    %vm3311 = vcmp.ne.s32.totalorder %v3309, 0
    %vm3312 = vcmp.lt.s32.totalorder %v3302, 0
    %vm3313 = vcmp.lt.s32.totalorder %v3309, 0
    %vm3314 = vmand %vm3312, %vm3310
    %vm3315 = vmand %vm3313, %vm3311
    %v3316 = vadd.s32 %v3302, 2
    %v3317 = vadd.s32 %v3309, 2
    %v3318 = vsel %vm3314, %v3316, %v3302
    %v3319 = vsel %vm3315, %v3317, %v3309
    %vm3320 = vcmp.lt.s32.totalorder %v739, 0
    %v3321 = vsub.s32 0, %v739
    %v3322 = vsel %vm3320, %v3321, %v739
    %v3323 = vshrl.u32 %v3322, 1
    %v3324 = vand.u32 %v3322, 1
    %v3325 = vsub.s32 0, %v3324
    %v3326 = vsel %vm3320, %v3325, %v3324
    %vm3327 = vcmp.ne.s32.totalorder %v3326, 0
    %vm3328 = vcmp.lt.s32.totalorder %v3326, 0
    %vm3329 = vmand %vm3328, %vm3327
    %v3330 = vadd.s32 %v3326, 2
    %v3331 = vsel %vm3329, %v3330, %v3326
    %vm3332 = vcmp.eq.s32.totalorder %v3318, %v3331
    %vm3333 = vcmp.eq.s32.totalorder %v3319, %v3331
    %v3334 = vsel %vm3332, %v3291, -1e+30
    %v3335 = vsel %vm3333, %v3292, -1e+30
    %vm3336 = vcmask 130048
    %v3337 = vsel %vm3336, %v3334, -inf
    %3338 = vmax.xlane.f32.xlu0 %v3337
    %v3339 = vpop.xlane.xlu0 %3338
    %v3340 = vsel %vm3336, %v3335, -inf
    %3341 = vmax.xlane.f32.xlu0 %v3340
    %v3342 = vpop.xlane.xlu0 %3341
    %v3343 = vsub.f32 %v3334, %v3339
    %v3344 = vsub.f32 %v3335, %v3342
    %v3345 = vmul.f32 %v3343, 1.442695
    %v3346 = vpow.pop %v3345
    %v3347 = vmul.f32 %v3344, 1.442695
    %v3348 = vpow.pop %v3347
    %v3349 = vsel %vm3336, %v3346, 0.0
    %3350 = vadd.xlane.f32.xlu0 %v3349
    %v3351 = vpop.xlane.xlu0 %3350
    %v3352 = vsel %vm3336, %v3348, 0.0
    %3353 = vadd.xlane.f32.xlu0 %v3352
    %v3354 = vpop.xlane.xlu0 %3353
    %v3355 = vrcp.pop %v3351
    %v3356 = vrcp.pop %v3354
    %v3357 = vmul.f32 %v3346, %v3355
    %v3358 = vmul.f32 %v3348, %v3356
    %v3360 = vsel %vm3336, %v3357, 0
    %v3363 = vsel %vm3336, %v3358, 0
    %3365 = vmatprep.subr.mxu0 0.0
    %3366 = vmatpush1.msra.mxu0 0.0
    %3367 = vmatprep.subr.mxu0 0.0
    %3368 = vmatpush1.msra.mxu0 0.0
    %3369 = vmatprep.subr.mxu0 0.0
    %3370 = vmatpush1.msra.mxu0 0.0
    %3371 = vmatprep.subr.mxu0 0.0
    %3372 = vmatpush1.msra.mxu0 0.0
    %3373 = vmatprep.subr.mxu0 0.0
    %3374 = vmatpush1.msra.mxu0 0.0
    %3375 = vmatprep.subr.mxu0 0.0
    %3376 = vmatpush1.msra.mxu0 0.0
    %3377 = vmatprep.subr.mxu0 0.0
    %3378 = vmatpush1.msra.mxu0 0.0
    %3379 = vmatprep.subr.mxu0 0.0
    %3380 = vmatpush1.msra.mxu0 0.0
    %3381 = vmatprep.subr.mxu0 0.0
    %3382 = vmatpush1.msra.mxu0 0.0
    %3383 = vmatprep.subr.mxu0 0.0
    %3384 = vmatpush1.msra.mxu0 0.0
    %3385 = vmatprep.subr.mxu0 0.0
    %3386 = vmatpush1.msra.mxu0 0.0
    %3387 = vmatprep.subr.mxu0 0.0
    %3388 = vmatpush1.msra.mxu0 0.0
    %3389 = vmatprep.subr.mxu0 0.0
    %3390 = vmatpush1.msra.mxu0 0.0
    %3391 = vmatprep.subr.mxu0 0.0
    %3392 = vmatpush1.msra.mxu0 0.0
    %3393 = vmatprep.subr.mxu0 0.0
    %3394 = vmatpush1.msra.mxu0 %v3213
    %3395 = vmatprep.subr.mxu0 0.0
    %3396 = vmatpush1.msra.mxu0 %v3208
    %3397 = vmatprep.subr.mxu0 0.0
    %3398 = vmatpush2.msra.mxu0 0.0
    %3399 = vmatprep.subr.mxu0 0.0
    %3400 = vmatpush2.msra.mxu0 0.0
    %3401 = vmatprep.subr.mxu0 0.0
    %3402 = vmatpush2.msra.mxu0 0.0
    %3403 = vmatprep.subr.mxu0 0.0
    %3404 = vmatpush2.msra.mxu0 0.0
    %3405 = vmatprep.subr.mxu0 0.0
    %3406 = vmatpush2.msra.mxu0 0.0
    %3407 = vmatprep.subr.mxu0 0.0
    %3408 = vmatpush2.msra.mxu0 0.0
    %3409 = vmatprep.subr.mxu0 0.0
    %3410 = vmatpush2.msra.mxu0 0.0
    %3411 = vmatprep.subr.mxu0 0.0
    %3412 = vmatpush2.msra.mxu0 0.0
    %3413 = vmatprep.subr.mxu0 0.0
    %3414 = vmatpush2.msra.mxu0 0.0
    %3415 = vmatprep.subr.mxu0 0.0
    %3416 = vmatpush2.msra.mxu0 0.0
    %3417 = vmatprep.subr.mxu0 0.0
    %3418 = vmatpush2.msra.mxu0 0.0
    %3419 = vmatprep.subr.mxu0 0.0
    %3420 = vmatpush2.msra.mxu0 0.0
    %3421 = vmatprep.subr.mxu0 0.0
    %3422 = vmatpush2.msra.mxu0 0.0
    %3423 = vmatprep.subr.mxu0 0.0
    %3424 = vmatpush2.msra.mxu0 0.0
    %3425 = vmatprep.subr.mxu0 0.0
    %3426 = vmatpush2.msra.mxu0 0.0
    %3427 = vmatprep.subr.mxu0 0.0
    %3428 = vmatpush2.msra.mxu0 0.0
    %3429 = vmatprep.mubr.f32.mxu0 0.0
    %3430 = vmatmul.mubr.f32.gmra.mxu0 %v3360
    %v3431 = vpop.f32.mrf.mxu0
    %v3432 = vadd.f32 0.0, %v3431
    %v3433 = vpop.f32.mrf.mxu0
    %3434 = vmatprep.mubr.f32.mxu0 0.0
    %3435 = vmatmul.mubr.f32.gmra.mxu0 %v3363
    %v3436 = vpop.f32.mrf.mxu0
    %v3437 = vadd.f32 0.0, %v3436
    %v3438 = vpop.f32.mrf.mxu0
    %3439 = vdwg.mxu0
    %vm3440 = vcmp.eq.s32.totalorder %v3331, %v3294
    %v3441 = vsel %vm3440, 0.125, 0.0
    %v3443 = vsel %vm3336, %v3441, 0
    %3445 = vmatprep.subr.mxu0 0.0
    %3446 = vmatpush1.msra.mxu0 0.0
    %3447 = vmatprep.subr.mxu0 0.0
    %3448 = vmatpush1.msra.mxu0 0.0
    %3449 = vmatprep.subr.mxu0 0.0
    %3450 = vmatpush1.msra.mxu0 0.0
    %3451 = vmatprep.subr.mxu0 0.0
    %3452 = vmatpush1.msra.mxu0 0.0
    %3453 = vmatprep.subr.mxu0 0.0
    %3454 = vmatpush1.msra.mxu0 0.0
    %3455 = vmatprep.subr.mxu0 0.0
    %3456 = vmatpush1.msra.mxu0 0.0
    %3457 = vmatprep.subr.mxu0 0.0
    %3458 = vmatpush1.msra.mxu0 0.0
    %3459 = vmatprep.subr.mxu0 0.0
    %3460 = vmatpush1.msra.mxu0 0.0
    %3461 = vmatprep.subr.mxu0 0.0
    %3462 = vmatpush1.msra.mxu0 0.0
    %3463 = vmatprep.subr.mxu0 0.0
    %3464 = vmatpush1.msra.mxu0 0.0
    %3465 = vmatprep.subr.mxu0 0.0
    %3466 = vmatpush1.msra.mxu0 0.0
    %3467 = vmatprep.subr.mxu0 0.0
    %3468 = vmatpush1.msra.mxu0 0.0
    %3469 = vmatprep.subr.mxu0 0.0
    %3470 = vmatpush1.msra.mxu0 0.0
    %3471 = vmatprep.subr.mxu0 0.0
    %3472 = vmatpush1.msra.mxu0 0.0
    %3473 = vmatprep.subr.mxu0 0.0
    %3474 = vmatpush1.msra.mxu0 %v3437
    %3475 = vmatprep.subr.mxu0 0.0
    %3476 = vmatpush1.msra.mxu0 %v3432
    %3477 = vmatprep.subr.mxu0 0.0
    %3478 = vmatpush2.msra.mxu0 0.0
    %3479 = vmatprep.subr.mxu0 0.0
    %3480 = vmatpush2.msra.mxu0 0.0
    %3481 = vmatprep.subr.mxu0 0.0
    %3482 = vmatpush2.msra.mxu0 0.0
    %3483 = vmatprep.subr.mxu0 0.0
    %3484 = vmatpush2.msra.mxu0 0.0
    %3485 = vmatprep.subr.mxu0 0.0
    %3486 = vmatpush2.msra.mxu0 0.0
    %3487 = vmatprep.subr.mxu0 0.0
    %3488 = vmatpush2.msra.mxu0 0.0
    %3489 = vmatprep.subr.mxu0 0.0
    %3490 = vmatpush2.msra.mxu0 0.0
    %3491 = vmatprep.subr.mxu0 0.0
    %3492 = vmatpush2.msra.mxu0 0.0
    %3493 = vmatprep.subr.mxu0 0.0
    %3494 = vmatpush2.msra.mxu0 0.0
    %3495 = vmatprep.subr.mxu0 0.0
    %3496 = vmatpush2.msra.mxu0 0.0
    %3497 = vmatprep.subr.mxu0 0.0
    %3498 = vmatpush2.msra.mxu0 0.0
    %3499 = vmatprep.subr.mxu0 0.0
    %3500 = vmatpush2.msra.mxu0 0.0
    %3501 = vmatprep.subr.mxu0 0.0
    %3502 = vmatpush2.msra.mxu0 0.0
    %3503 = vmatprep.subr.mxu0 0.0
    %3504 = vmatpush2.msra.mxu0 0.0
    %3505 = vmatprep.subr.mxu0 0.0
    %3506 = vmatpush2.msra.mxu0 0.0
    %3507 = vmatprep.subr.mxu0 0.0
    %3508 = vmatpush2.msra.mxu0 0.0
    %3509 = vmatprep.mubr.f32.mxu0 0.0
    %3510 = vmatmul.mubr.f32.gmra.mxu0 %v3443
    %v3511 = vpop.f32.mrf.mxu0
    %v3512 = vadd.f32 0.0, %v3511
    %v3513 = vpop.f32.mrf.mxu0
    %3514 = vdwg.mxu0
    %v3515 = vld [vmem:[%s13] sm:$0xff]
    %v3516 = vld [vmem:[%s13 + $0x8] sm:$0xff]
    %v3517 = vld [vmem:[%s13 + $0x10] sm:$0xff]
    %v3518 = vld [vmem:[%s13 + $0x18] sm:$0xff]
    %v3519 = vld [vmem:[%s13 + $0x20] sm:$0xff]
    %v3520 = vld [vmem:[%s13 + $0x28] sm:$0xff]
    %v3521 = vld [vmem:[%s13 + $0x30] sm:$0xff]
    %v3522 = vld [vmem:[%s13 + $0x38] sm:$0xff]
    %v3523 = vld [vmem:[%s13 + $0x40] sm:$0xff]
    %v3524 = vld [vmem:[%s13 + $0x48] sm:$0xff]
    %v3525 = vld [vmem:[%s13 + $0x50] sm:$0xff]
    %v3526 = vld [vmem:[%s13 + $0x58] sm:$0xff]
    %v3527 = vld [vmem:[%s13 + $0x60] sm:$0xff]
    %v3528 = vld [vmem:[%s13 + $0x68] sm:$0xff]
    %v3529 = vld [vmem:[%s13 + $0x70] sm:$0xff]
    %v3530 = vld [vmem:[%s13 + $0x78] sm:$0xff]
    %v3531 = vld [vmem:[#allocation17] sm:$0x1]
    %v3533 = vlaneseq
    %v3534 = vshrl.u32 %v3533, 7
    %v3535 = vsub.s32 0, %v3534
    %v3536 = vrot.slane %v3531, %v3535
    %3538 = vmatprep.subr.mxu0 0.0
    %3539 = vmatpush1.msra.mxu0 %v3530
    %3540 = vmatprep.subr.mxu0 0.0
    %3541 = vmatpush1.msra.mxu0 %v3529
    %3542 = vmatprep.subr.mxu0 0.0
    %3543 = vmatpush1.msra.mxu0 %v3528
    %3544 = vmatprep.subr.mxu0 0.0
    %3545 = vmatpush1.msra.mxu0 %v3527
    %3546 = vmatprep.subr.mxu0 0.0
    %3547 = vmatpush1.msra.mxu0 %v3526
    %3548 = vmatprep.subr.mxu0 0.0
    %3549 = vmatpush1.msra.mxu0 %v3525
    %3550 = vmatprep.subr.mxu0 0.0
    %3551 = vmatpush1.msra.mxu0 %v3524
    %3552 = vmatprep.subr.mxu0 0.0
    %3553 = vmatpush1.msra.mxu0 %v3523
    %3554 = vmatprep.subr.mxu0 0.0
    %3555 = vmatpush1.msra.mxu0 %v3522
    %3556 = vmatprep.subr.mxu0 0.0
    %3557 = vmatpush1.msra.mxu0 %v3521
    %3558 = vmatprep.subr.mxu0 0.0
    %3559 = vmatpush1.msra.mxu0 %v3520
    %3560 = vmatprep.subr.mxu0 0.0
    %3561 = vmatpush1.msra.mxu0 %v3519
    %3562 = vmatprep.subr.mxu0 0.0
    %3563 = vmatpush1.msra.mxu0 %v3518
    %3564 = vmatprep.subr.mxu0 0.0
    %3565 = vmatpush1.msra.mxu0 %v3517
    %3566 = vmatprep.subr.mxu0 0.0
    %3567 = vmatpush1.msra.mxu0 %v3516
    %3568 = vmatprep.subr.mxu0 0.0
    %3569 = vmatpush1.msra.mxu0 %v3515
    %3570 = vmatprep.subr.mxu0 0.0
    %3571 = vmatpush2.msra.mxu0 0.0
    %3572 = vmatprep.subr.mxu0 0.0
    %3573 = vmatpush2.msra.mxu0 0.0
    %3574 = vmatprep.subr.mxu0 0.0
    %3575 = vmatpush2.msra.mxu0 0.0
    %3576 = vmatprep.subr.mxu0 0.0
    %3577 = vmatpush2.msra.mxu0 0.0
    %3578 = vmatprep.subr.mxu0 0.0
    %3579 = vmatpush2.msra.mxu0 0.0
    %3580 = vmatprep.subr.mxu0 0.0
    %3581 = vmatpush2.msra.mxu0 0.0
    %3582 = vmatprep.subr.mxu0 0.0
    %3583 = vmatpush2.msra.mxu0 0.0
    %3584 = vmatprep.subr.mxu0 0.0
    %3585 = vmatpush2.msra.mxu0 0.0
    %3586 = vmatprep.subr.mxu0 0.0
    %3587 = vmatpush2.msra.mxu0 0.0
    %3588 = vmatprep.subr.mxu0 0.0
    %3589 = vmatpush2.msra.mxu0 0.0
    %3590 = vmatprep.subr.mxu0 0.0
    %3591 = vmatpush2.msra.mxu0 0.0
    %3592 = vmatprep.subr.mxu0 0.0
    %3593 = vmatpush2.msra.mxu0 0.0
    %3594 = vmatprep.subr.mxu0 0.0
    %3595 = vmatpush2.msra.mxu0 0.0
    %3596 = vmatprep.subr.mxu0 0.0
    %3597 = vmatpush2.msra.mxu0 0.0
    %3598 = vmatprep.subr.mxu0 0.0
    %3599 = vmatpush2.msra.mxu0 0.0
    %3600 = vmatprep.subr.mxu0 0.0
    %3601 = vmatpush2.msra.mxu0 0.0
    %3602 = vmatprep.mubr.f32.mxu0 0.0
    %3603 = vmatmul.mubr.f32.gmra.mxu0 %v3512
    %v3604 = vpop.f32.mrf.mxu0
    %v3605 = vadd.f32 %v3536, %v3604
    %v3606 = vpop.f32.mrf.mxu0
    %3607 = vdwg.mxu0
    %v3608 = vld [vmem:[%s15] sm:$0xff]
    %v3609 = vld [vmem:[%s15 + $0x8] sm:$0xff]
    %v3610 = vld [vmem:[%s15 + $0x10] sm:$0xff]
    %v3611 = vld [vmem:[%s15 + $0x18] sm:$0xff]
    %v3612 = vld [vmem:[%s15 + $0x20] sm:$0xff]
    %v3613 = vld [vmem:[%s15 + $0x28] sm:$0xff]
    %v3614 = vld [vmem:[%s15 + $0x30] sm:$0xff]
    %v3615 = vld [vmem:[%s15 + $0x38] sm:$0xff]
    %v3616 = vld [vmem:[#allocation19] sm:$0x1]
    %v3618 = vlaneseq
    %v3619 = vshrl.u32 %v3618, 7
    %v3620 = vsub.s32 0, %v3619
    %v3621 = vrot.slane %v3616, %v3620
    %v3624 = vsel %vm902, %v3605, 0
    %3626 = vmatprep.subr.mxu0 0.0
    %3627 = vmatpush1.msra.mxu0 0.0
    %3628 = vmatprep.subr.mxu0 0.0
    %3629 = vmatpush1.msra.mxu0 0.0
    %3630 = vmatprep.subr.mxu0 0.0
    %3631 = vmatpush1.msra.mxu0 0.0
    %3632 = vmatprep.subr.mxu0 0.0
    %3633 = vmatpush1.msra.mxu0 0.0
    %3634 = vmatprep.subr.mxu0 0.0
    %3635 = vmatpush1.msra.mxu0 0.0
    %3636 = vmatprep.subr.mxu0 0.0
    %3637 = vmatpush1.msra.mxu0 0.0
    %3638 = vmatprep.subr.mxu0 0.0
    %3639 = vmatpush1.msra.mxu0 0.0
    %3640 = vmatprep.subr.mxu0 0.0
    %3641 = vmatpush1.msra.mxu0 0.0
    %3642 = vmatprep.subr.mxu0 0.0
    %3643 = vmatpush1.msra.mxu0 %v3615
    %3644 = vmatprep.subr.mxu0 0.0
    %3645 = vmatpush1.msra.mxu0 %v3614
    %3646 = vmatprep.subr.mxu0 0.0
    %3647 = vmatpush1.msra.mxu0 %v3613
    %3648 = vmatprep.subr.mxu0 0.0
    %3649 = vmatpush1.msra.mxu0 %v3612
    %3650 = vmatprep.subr.mxu0 0.0
    %3651 = vmatpush1.msra.mxu0 %v3611
    %3652 = vmatprep.subr.mxu0 0.0
    %3653 = vmatpush1.msra.mxu0 %v3610
    %3654 = vmatprep.subr.mxu0 0.0
    %3655 = vmatpush1.msra.mxu0 %v3609
    %3656 = vmatprep.subr.mxu0 0.0
    %3657 = vmatpush1.msra.mxu0 %v3608
    %3658 = vmatprep.subr.mxu0 0.0
    %3659 = vmatpush2.msra.mxu0 0.0
    %3660 = vmatprep.subr.mxu0 0.0
    %3661 = vmatpush2.msra.mxu0 0.0
    %3662 = vmatprep.subr.mxu0 0.0
    %3663 = vmatpush2.msra.mxu0 0.0
    %3664 = vmatprep.subr.mxu0 0.0
    %3665 = vmatpush2.msra.mxu0 0.0
    %3666 = vmatprep.subr.mxu0 0.0
    %3667 = vmatpush2.msra.mxu0 0.0
    %3668 = vmatprep.subr.mxu0 0.0
    %3669 = vmatpush2.msra.mxu0 0.0
    %3670 = vmatprep.subr.mxu0 0.0
    %3671 = vmatpush2.msra.mxu0 0.0
    %3672 = vmatprep.subr.mxu0 0.0
    %3673 = vmatpush2.msra.mxu0 0.0
    %3674 = vmatprep.subr.mxu0 0.0
    %3675 = vmatpush2.msra.mxu0 0.0
    %3676 = vmatprep.subr.mxu0 0.0
    %3677 = vmatpush2.msra.mxu0 0.0
    %3678 = vmatprep.subr.mxu0 0.0
    %3679 = vmatpush2.msra.mxu0 0.0
    %3680 = vmatprep.subr.mxu0 0.0
    %3681 = vmatpush2.msra.mxu0 0.0
    %3682 = vmatprep.subr.mxu0 0.0
    %3683 = vmatpush2.msra.mxu0 0.0
    %3684 = vmatprep.subr.mxu0 0.0
    %3685 = vmatpush2.msra.mxu0 0.0
    %3686 = vmatprep.subr.mxu0 0.0
    %3687 = vmatpush2.msra.mxu0 0.0
    %3688 = vmatprep.subr.mxu0 0.0
    %3689 = vmatpush2.msra.mxu0 0.0
    %3690 = vmatprep.mubr.f32.mxu0 0.0
    %3691 = vmatmul.mubr.f32.gmra.mxu0 %v3624
    %v3692 = vpop.f32.mrf.mxu0
    %v3693 = vadd.f32 %v3621, %v3692
    %v3694 = vpop.f32.mrf.mxu0
    %3695 = vdwg.mxu0
    %vm3696 = vcmask 123904
    %3697 = vst.msk [vmem:[#allocation20] sm:$0x3] %vm3696, %v3693
    %3699 = vrot.lane.b32.xlu0 %v3693, 112
    %v3700 = vpop.permute.xlu0 %3699
    %3702 = vst.msk [vmem:[#allocation21] sm:$0x3] %vm3696, %v3700
    %v3703 = vld [vmem:[%s17] sm:$0x3]
    %v3704 = vmul.f32 %v3693, 0.5
    %v3705 = vmul.f32 %v3704, 1.442695
    %v3706 = vpow.pop %v3705
    %3708 = vrot.lane.b32.xlu0 %v3706, 112
    %v3709 = vpop.permute.xlu0 %3708
    %v3711 = vmul.f32 %v3703, %v3709
    %v3712 = vadd.f32 %v3693, %v3711
    %3713 = vst.msk [vmem:[#allocation23] sm:$0x3] %vm3696, %v3712
    // Predicated region
    $region110: #{motion_encoder_forward.1} parent=1 // pred_check
      _
    $region111: #{motion_encoder_forward.1} parent=1 // pred_check_branch
      %3715 = sbr.rel (0) target = $region113
    $region112: #{motion_encoder_forward.1} parent=1 // pred_region
      %s3717 = ssub.s32 32, 32
      %3718 = vsyncadd [#allocation7], %s3717
      %s3720 = sshll.u32 [#allocation20], 4
      %s3721 = int_to_ptr.vmem [resolvable:$true] %s3720
      %3723 = dma.vmem_to_hbm [thread:$0]  %s3721, 32, %s18, [#allocation7]
    $region113: #{motion_encoder_forward.1} parent=1 // pred_fallthru
      _
    // Predicated region
    $region114: #{motion_encoder_forward.1} parent=1 // pred_check
      _
    $region115: #{motion_encoder_forward.1} parent=1 // pred_check_branch
      %3725 = sbr.rel (0) target = $region117
    $region116: #{motion_encoder_forward.1} parent=1 // pred_region
      %s3727 = ssub.s32 32, 32
      %3728 = vsyncadd [#allocation22], %s3727
      %s3730 = sshll.u32 [#allocation21], 4
      %s3731 = int_to_ptr.vmem [resolvable:$true] %s3730
      %3733 = dma.vmem_to_hbm [thread:$0]  %s3731, 32, %s19, [#allocation22]
    $region117: #{motion_encoder_forward.1} parent=1 // pred_fallthru
      _
    // Predicated region
    $region118: #{motion_encoder_forward.1} parent=1 // pred_check
      _
    $region119: #{motion_encoder_forward.1} parent=1 // pred_check_branch
      %3735 = sbr.rel (0) target = $region121
    $region120: #{motion_encoder_forward.1} parent=1 // pred_region
      %s3737 = ssub.s32 32, 32
      %3738 = vsyncadd [#allocation22], %s3737
      %s3740 = sshll.u32 [#allocation23], 4
      %s3741 = int_to_ptr.vmem [resolvable:$true] %s3740
      %3743 = dma.vmem_to_hbm [thread:$0]  %s3741, 32, %s20, [#allocation22]
    $region121: #{motion_encoder_forward.1} parent=1 // pred_fallthru
      _
    // Predicated region
    $region122: #{motion_encoder_forward.1} parent=1 // pred_check
      _
    $region123: #{motion_encoder_forward.1} parent=1 // pred_check_branch
      %3745 = sbr.rel (0) target = $region125
    $region124: #{motion_encoder_forward.1} parent=1 // pred_region
      %3746 = dma.done [#allocation7], 32
    $region125: #{motion_encoder_forward.1} parent=1 // pred_fallthru
      _
    // Predicated region
    $region126: #{motion_encoder_forward.1} parent=1 // pred_check
      _
    $region127: #{motion_encoder_forward.1} parent=1 // pred_check_branch
      %3748 = sbr.rel (0) target = $region129
    $region128: #{motion_encoder_forward.1} parent=1 // pred_region
      %3749 = dma.done [#allocation22], 32
    $region129: #{motion_encoder_forward.1} parent=1 // pred_fallthru
      _
    // Predicated region
    $region130: #{motion_encoder_forward.1} parent=1 // pred_check
      _
    $region131: #{motion_encoder_forward.1} parent=1 // pred_check_branch
      %3751 = sbr.rel (0) target = $region133
    $region132: #{motion_encoder_forward.1} parent=1 // pred_region
      %3752 = dma.done [#allocation22], 32
    $region133: #{motion_encoder_forward.1} parent=1 // pred_fallthru
      _
    %3753 = vsyncpa [#allocation6], 1
    %3754 = vsyncpa [#allocation9], 1
    %3755 = vsyncpa [#allocation12], 1
    %3756 = vsyncpa [#allocation15], 1
    %3757 = vsyncpa [#allocation18], 1
    %3758 = vsyncpa [#allocation7], 1
    %3759 = vsyncpa [#allocation22], 1

</llo_original>
